<compile_context>
chip_gen: v7x
topology: tpu7x:2x2x1
jax: 0.10.0
libtpu: 0.0.40
codegen_flags: <defaults>
</compile_context>

<pallas_src>
import functools

import jax
import jax.numpy as jnp
import numpy as np
from jax.experimental import pallas as pl
from jax.experimental.pallas import tpu as pltpu

# ---- model hyper-parameters (small, consistent with the module) ----
NTOKEN = 50
NTOKEN_PAD = 128               # lane-dense padding of the vocab dimension
NINP = 32
NHID = 32
NLAYERS = 2
DENSE_EMBEDDING_N = [64, 48]   # encoder_linears: 64 -> 48 (relu), 48 -> NINP
SEQ_LEN = 8
BATCH = 2


# ------------------------- fused forward kernel -------------------------

def _fused_forward_kernel(tok_ref, enc_tab_ref,
                          w0_ref, b0_ref, w1_ref, b1_ref,
                          wih0_ref, whh0_ref, bg0_ref,
                          wih1_ref, whh1_ref, bg1_ref,
                          h0_ref, c0_ref,
                          decw_ref, decb_ref,
                          logp_ref, hT_ref, cT_ref,
                          y0_sc, y1_sc,
                          *, T, B, H):
    f32 = jnp.float32
    TB = T * B

    # ---- embedding lookup as one-hot matmul on the MXU (no gather) ----
    tok = tok_ref[...]                                               # (TB, 1) int32
    col = jax.lax.broadcasted_iota(jnp.int32, (TB, NTOKEN_PAD), 1)   # (TB, 128)
    onehot = jnp.where(col == tok, 1.0, 0.0).astype(f32)             # (TB, 128)
    emb = jnp.dot(onehot, enc_tab_ref[...],
                  preferred_element_type=f32)                        # (TB, 64)

    # ---- dense-embedding MLP: Linear + ReLU, then Linear to NINP ----
    x = jnp.dot(emb, w0_ref[...], preferred_element_type=f32) + b0_ref[...]
    x = jnp.maximum(x, 0.0)                                          # (TB, 48)
    x = jnp.dot(x, w1_ref[...], preferred_element_type=f32) + b1_ref[...]  # (TB, NINP)

    # dropout = identity (eval mode)

    # ---- 2-layer LSTM, time loop fully unrolled in-kernel ----
    layers = ((wih0_ref, whh0_ref, bg0_ref, y0_sc),
              (wih1_ref, whh1_ref, bg1_ref, y1_sc))
    out = x                                                          # (TB, Din)
    for l in range(NLAYERS):
        wih_ref, whh_ref, bg_ref, y_sc = layers[l]
        whh = whh_ref[...]                                           # (H, 4H)
        # Hoisted input projection + single bias broadcast for whole sequence.
        xproj = jnp.dot(out, wih_ref[...],
                        preferred_element_type=f32) + bg_ref[...]    # (TB, 4H)
        h = h0_ref[l].astype(f32)                                    # (B, H)
        c = c0_ref[l].astype(f32)                                    # (B, H)
        for t in range(T):                                           # unrolled
            r0 = t * B
            gates = xproj[r0:r0 + B, :] + jnp.dot(
                h, whh, preferred_element_type=f32)                  # (B, 4H)
            # PyTorch LSTM gate order: i, f, g, o
            i_g = jax.nn.sigmoid(gates[:, 0 * H:1 * H])
            f_g = jax.nn.sigmoid(gates[:, 1 * H:2 * H])
            g_g = jnp.tanh(gates[:, 2 * H:3 * H])
            o_g = jax.nn.sigmoid(gates[:, 3 * H:4 * H])
            c = f_g * c + i_g * g_g
            h = o_g * jnp.tanh(c)
            y_sc[pl.ds(r0, B), :] = h
        hT_ref[l] = h.astype(hT_ref.dtype)
        cT_ref[l] = c.astype(cT_ref.dtype)
        out = y_sc[...]                                              # (TB, H)

    # dropout = identity (eval mode)

    # ---- decoder + row-wise log_softmax (lane-dense 128-wide output) ----
    z = jnp.dot(out, decw_ref[...],
                preferred_element_type=f32) + decb_ref[...]          # (TB, 128)
    m = jnp.max(z, axis=-1, keepdims=True)
    lse = m + jnp.log(jnp.sum(jnp.exp(z - m), axis=-1, keepdims=True))
    logp_ref[...] = (z - lse).astype(logp_ref.dtype)


def rnn_model_forward(params, tokens, hidden):
    """tokens: (T, B) int32; hidden: (h0, c0) each (NLAYERS, B, NHID)."""
    T, B = tokens.shape
    h0, c0 = hidden
    tok2d = tokens.reshape(T * B, 1).astype(jnp.int32)

    kernel = functools.partial(_fused_forward_kernel, T=T, B=B, H=NHID)
    logp_pad, hT, cT = pl.pallas_call(
        kernel,
        out_shape=(
            jax.ShapeDtypeStruct((T * B, NTOKEN_PAD), jnp.float32),
            jax.ShapeDtypeStruct((NLAYERS, B, NHID), jnp.float32),
            jax.ShapeDtypeStruct((NLAYERS, B, NHID), jnp.float32),
        ),
        scratch_shapes=[pltpu.VMEM((T * B, NHID), jnp.float32),
                        pltpu.VMEM((T * B, NHID), jnp.float32)],
    )(tok2d,
      params["enc_table_pad"],
      params["enc_lin0_w_t"], params["enc_lin0_b"],
      params["enc_lin1_w_t"], params["enc_lin1_b"],
      params["lstm0_wih_t"], params["lstm0_whh_t"], params["lstm0_b"],
      params["lstm1_wih_t"], params["lstm1_whh_t"], params["lstm1_b"],
      h0, c0,
      params["dec_w_t_pad"], params["dec_b_pad"])

    # slice padded vocab lanes back to NTOKEN (cheap wrapper-side slice)
    return logp_pad[:, :NTOKEN], (hT, cT)


# ------------------------- parameter init (deterministic) -------------------------

def init_params(key):
    params = {}
    keys = jax.random.split(key, 16)
    k_it = iter(keys)

    # encoder: dense "normal" embedding weight, std = 0.1 (frozen in the module)
    enc_w = 0.1 * jax.random.normal(
        next(k_it), (NTOKEN, DENSE_EMBEDDING_N[0]), dtype=jnp.float32)
    params["encoder_weight"] = enc_w
    params["enc_table_pad"] = (
        jnp.zeros((NTOKEN_PAD, DENSE_EMBEDDING_N[0]), jnp.float32)
        .at[:NTOKEN].set(enc_w))

    # encoder_linears: xavier_uniform weights, default-uniform biases
    dims = DENSE_EMBEDDING_N + [NINP]        # [64, 48, 32]
    for i in range(len(dims) - 1):
        fan_in, fan_out = dims[i], dims[i + 1]
        bound_w = float(np.sqrt(6.0 / (fan_in + fan_out)))
        w = jax.random.uniform(next(k_it), (fan_out, fan_in),
                               minval=-bound_w, maxval=bound_w, dtype=jnp.float32)
        bound_b = 1.0 / float(np.sqrt(fan_in))
        b = jax.random.uniform(next(k_it), (fan_out,),
                               minval=-bound_b, maxval=bound_b, dtype=jnp.float32)
        params[f"enc_lin{i}_w_t"] = w.T                       # (fan_in, fan_out)
        params[f"enc_lin{i}_b"] = b.reshape(1, fan_out)

    # LSTM layers: PyTorch default init uniform(-1/sqrt(H), 1/sqrt(H))
    stdv = 1.0 / float(np.sqrt(NHID))
    for l in range(NLAYERS):
        din = NINP if l == 0 else NHID
        w_ih = jax.random.uniform(next(k_it), (4 * NHID, din),
                                  minval=-stdv, maxval=stdv, dtype=jnp.float32)
        w_hh = jax.random.uniform(next(k_it), (4 * NHID, NHID),
                                  minval=-stdv, maxval=stdv, dtype=jnp.float32)
        b_ih = jax.random.uniform(next(k_it), (4 * NHID,),
                                  minval=-stdv, maxval=stdv, dtype=jnp.float32)
        b_hh = jax.random.uniform(next(k_it), (4 * NHID,),
                                  minval=-stdv, maxval=stdv, dtype=jnp.float32)
        params[f"lstm{l}_wih_t"] = w_ih.T                     # (din, 4H)
        params[f"lstm{l}_whh_t"] = w_hh.T                     # (H, 4H)
        params[f"lstm{l}_b"] = (b_ih + b_hh).reshape(1, 4 * NHID)

    # decoder: weight uniform(-0.1, 0.1) (init_weights), bias default uniform
    dec_w = jax.random.uniform(next(k_it), (NTOKEN, NHID),
                               minval=-0.1, maxval=0.1, dtype=jnp.float32)
    bound_b = 1.0 / float(np.sqrt(NHID))
    dec_b = jax.random.uniform(next(k_it), (NTOKEN,),
                               minval=-bound_b, maxval=bound_b, dtype=jnp.float32)
    params["dec_w_t"] = dec_w.T                               # (NHID, NTOKEN)
    params["dec_b"] = dec_b.reshape(1, NTOKEN)
    # lane-dense padded decoder: zero weight columns, -1e30 bias in padded lanes
    params["dec_w_t_pad"] = (
        jnp.zeros((NHID, NTOKEN_PAD), jnp.float32).at[:, :NTOKEN].set(dec_w.T))
    params["dec_b_pad"] = (
        jnp.full((1, NTOKEN_PAD), -1e30, jnp.float32).at[:, :NTOKEN].set(dec_b))
    return params


# ------------------------- pure-JAX reference -------------------------

def reference_forward(params, tokens, hidden):
    T, B = tokens.shape
    h0, c0 = hidden
    emb = jnp.take(params["encoder_weight"], tokens, axis=0)
    x = emb.reshape(T * B, -1)
    x = jnp.maximum(x @ params["enc_lin0_w_t"] + params["enc_lin0_b"], 0.0)
    x = x @ params["enc_lin1_w_t"] + params["enc_lin1_b"]
    out = x.reshape(T, B, NINP)
    hs, cs = [], []
    for l in range(NLAYERS):
        h, c = h0[l], c0[l]
        ys = []
        for t in range(T):
            gates = (out[t] @ params[f"lstm{l}_wih_t"]
                     + h @ params[f"lstm{l}_whh_t"] + params[f"lstm{l}_b"])
            i_g = jax.nn.sigmoid(gates[:, 0 * NHID:1 * NHID])
            f_g = jax.nn.sigmoid(gates[:, 1 * NHID:2 * NHID])
            g_g = jnp.tanh(gates[:, 2 * NHID:3 * NHID])
            o_g = jax.nn.sigmoid(gates[:, 3 * NHID:4 * NHID])
            c = f_g * c + i_g * g_g
            h = o_g * jnp.tanh(c)
            ys.append(h)
        out = jnp.stack(ys)
        hs.append(h)
        cs.append(c)
    z = out.reshape(T * B, NHID) @ params["dec_w_t"] + params["dec_b"]
    logp = jax.nn.log_softmax(z, axis=1)
    return logp, (jnp.stack(hs), jnp.stack(cs))


# ------------------------- main -------------------------

if __name__ == "__main__":
    key = jax.random.PRNGKey(0)
    k_param, k_tok = jax.random.split(key)

    params = init_params(k_param)
    tokens = jax.random.randint(k_tok, (SEQ_LEN, BATCH), 0, NTOKEN, dtype=jnp.int32)
    # init_hidden(bsz): zeros (nlayers, bsz, nhid) for both h and c (LSTM)
    h0 = jnp.zeros((NLAYERS, BATCH, NHID), jnp.float32)
    c0 = jnp.zeros((NLAYERS, BATCH, NHID), jnp.float32)

    logp, (hT, cT) = rnn_model_forward(params, tokens, (h0, c0))
    jax.block_until_ready((logp, hT, cT))

    ref_logp, (ref_h, ref_c) = reference_forward(params, tokens, (h0, c0))
    np.testing.assert_allclose(np.asarray(logp), np.asarray(ref_logp), rtol=1e-4, atol=1e-4)
    np.testing.assert_allclose(np.asarray(hT), np.asarray(ref_h), rtol=1e-4, atol=1e-4)
    np.testing.assert_allclose(np.asarray(cT), np.asarray(ref_c), rtol=1e-4, atol=1e-4)

    assert logp.shape == (SEQ_LEN * BATCH, NTOKEN)
    print("KERNEL_OK")
</pallas_src>

<mosaic_0001>
module attributes {stable_mosaic.version = 11 : i64} {
  func.func @_fused_forward_kernel(%arg0: memref<16x1xi32, #tpu.memory_space<vmem>>, %arg1: memref<128x64xf32, #tpu.memory_space<vmem>>, %arg2: memref<64x48xf32, #tpu.memory_space<vmem>>, %arg3: memref<1x48xf32, #tpu.memory_space<vmem>>, %arg4: memref<48x32xf32, #tpu.memory_space<vmem>>, %arg5: memref<1x32xf32, #tpu.memory_space<vmem>>, %arg6: memref<32x128xf32, #tpu.memory_space<vmem>>, %arg7: memref<32x128xf32, #tpu.memory_space<vmem>>, %arg8: memref<1x128xf32, #tpu.memory_space<vmem>>, %arg9: memref<32x128xf32, #tpu.memory_space<vmem>>, %arg10: memref<32x128xf32, #tpu.memory_space<vmem>>, %arg11: memref<1x128xf32, #tpu.memory_space<vmem>>, %arg12: memref<2x2x32xf32, #tpu.memory_space<vmem>>, %arg13: memref<2x2x32xf32, #tpu.memory_space<vmem>>, %arg14: memref<32x128xf32, #tpu.memory_space<vmem>>, %arg15: memref<1x128xf32, #tpu.memory_space<vmem>>, %arg16: memref<16x128xf32, #tpu.memory_space<vmem>>, %arg17: memref<2x2x32xf32, #tpu.memory_space<vmem>>, %arg18: memref<2x2x32xf32, #tpu.memory_space<vmem>>, %arg19: memref<16x32xf32, #tpu.memory_space<vmem>>, %arg20: memref<16x32xf32, #tpu.memory_space<vmem>>) attributes {dimension_semantics = [], scalar_prefetch = 0 : i64, scratch_operands = 2 : i64, tpu.core_type = #tpu.core_type<tc>} {
    %c0 = arith.constant 0 : index
    %c0_0 = arith.constant 0 : index
    %0 = vector.load %arg0[%c0, %c0_0] : memref<16x1xi32, #tpu.memory_space<vmem>>, vector<16x1xi32>
    %1 = tpu.iota {dimensions = array<i32: 1>} : vector<16x128xi32>
    %2 = vector.broadcast %0 : vector<16x1xi32> to vector<16x128xi32>
    %3 = arith.cmpi eq, %1, %2 : vector<16x128xi32>
    %cst = arith.constant 1.000000e+00 : f32
    %cst_1 = arith.constant 0.000000e+00 : f32
    %4 = vector.broadcast %cst : f32 to vector<16x128xf32>
    %5 = vector.broadcast %cst_1 : f32 to vector<16x128xf32>
    %6 = arith.select %3, %4, %5 : vector<16x128xi1>, vector<16x128xf32>
    %c0_2 = arith.constant 0 : index
    %c0_3 = arith.constant 0 : index
    %7 = vector.load %arg1[%c0_2, %c0_3] : memref<128x64xf32, #tpu.memory_space<vmem>>, vector<128x64xf32>
    %cst_4 = arith.constant dense<0.000000e+00> : vector<16x64xf32>
    %8 = tpu.matmul %6, %7, %cst_4 {dimension_numbers = #tpu.dot_dimension_numbers<[1], [0], [0], [1], [0, 0, 1, 1], [], []>} : vector<16x128xf32>, vector<128x64xf32>, vector<16x64xf32> -> vector<16x64xf32>
    %c0_5 = arith.constant 0 : index
    %c0_6 = arith.constant 0 : index
    %9 = vector.load %arg2[%c0_5, %c0_6] : memref<64x48xf32, #tpu.memory_space<vmem>>, vector<64x48xf32>
    %cst_7 = arith.constant dense<0.000000e+00> : vector<16x48xf32>
    %10 = tpu.matmul %8, %9, %cst_7 {dimension_numbers = #tpu.dot_dimension_numbers<[1], [0], [0], [1], [0, 0, 1, 1], [], []>} : vector<16x64xf32>, vector<64x48xf32>, vector<16x48xf32> -> vector<16x48xf32>
    %c0_8 = arith.constant 0 : index
    %c0_9 = arith.constant 0 : index
    %11 = vector.load %arg3[%c0_8, %c0_9] : memref<1x48xf32, #tpu.memory_space<vmem>>, vector<1x48xf32>
    %12 = vector.broadcast %11 : vector<1x48xf32> to vector<16x48xf32>
    %13 = arith.addf %10, %12 : vector<16x48xf32>
    %cst_10 = arith.constant 0.000000e+00 : f32
    %14 = vector.broadcast %cst_10 : f32 to vector<16x48xf32>
    %15 = arith.maximumf %13, %14 : vector<16x48xf32>
    %c0_11 = arith.constant 0 : index
    %c0_12 = arith.constant 0 : index
    %16 = vector.load %arg4[%c0_11, %c0_12] : memref<48x32xf32, #tpu.memory_space<vmem>>, vector<48x32xf32>
    %cst_13 = arith.constant dense<0.000000e+00> : vector<16x32xf32>
    %17 = tpu.matmul %15, %16, %cst_13 {dimension_numbers = #tpu.dot_dimension_numbers<[1], [0], [0], [1], [0, 0, 1, 1], [], []>} : vector<16x48xf32>, vector<48x32xf32>, vector<16x32xf32> -> vector<16x32xf32>
    %c0_14 = arith.constant 0 : index
    %c0_15 = arith.constant 0 : index
    %18 = vector.load %arg5[%c0_14, %c0_15] : memref<1x32xf32, #tpu.memory_space<vmem>>, vector<1x32xf32>
    %19 = vector.broadcast %18 : vector<1x32xf32> to vector<16x32xf32>
    %20 = arith.addf %17, %19 : vector<16x32xf32>
    %c0_16 = arith.constant 0 : index
    %c0_17 = arith.constant 0 : index
    %21 = vector.load %arg7[%c0_16, %c0_17] : memref<32x128xf32, #tpu.memory_space<vmem>>, vector<32x128xf32>
    %c0_18 = arith.constant 0 : index
    %c0_19 = arith.constant 0 : index
    %22 = vector.load %arg6[%c0_18, %c0_19] : memref<32x128xf32, #tpu.memory_space<vmem>>, vector<32x128xf32>
    %cst_20 = arith.constant dense<0.000000e+00> : vector<16x128xf32>
    %23 = tpu.matmul %20, %22, %cst_20 {dimension_numbers = #tpu.dot_dimension_numbers<[1], [0], [0], [1], [0, 0, 1, 1], [], []>} : vector<16x32xf32>, vector<32x128xf32>, vector<16x128xf32> -> vector<16x128xf32>
    %c0_21 = arith.constant 0 : index
    %c0_22 = arith.constant 0 : index
    %24 = vector.load %arg8[%c0_21, %c0_22] : memref<1x128xf32, #tpu.memory_space<vmem>>, vector<1x128xf32>
    %25 = vector.broadcast %24 : vector<1x128xf32> to vector<16x128xf32>
    %26 = arith.addf %23, %25 : vector<16x128xf32>
    %c0_23 = arith.constant 0 : index
    %c0_24 = arith.constant 0 : index
    %c0_25 = arith.constant 0 : index
    %27 = vector.load %arg12[%c0_23, %c0_24, %c0_25] : memref<2x2x32xf32, #tpu.memory_space<vmem>>, vector<1x2x32xf32>
    %28 = vector.shape_cast %27 : vector<1x2x32xf32> to vector<2x32xf32>
    %c0_26 = arith.constant 0 : index
    %c0_27 = arith.constant 0 : index
    %c0_28 = arith.constant 0 : index
    %29 = vector.load %arg13[%c0_26, %c0_27, %c0_28] : memref<2x2x32xf32, #tpu.memory_space<vmem>>, vector<1x2x32xf32>
    %30 = vector.shape_cast %29 : vector<1x2x32xf32> to vector<2x32xf32>
    %31 = vector.extract_strided_slice %26 {offsets = [0, 0], sizes = [2, 128], strides = [1, 1]} : vector<16x128xf32> to vector<2x128xf32>
    %cst_29 = arith.constant dense<0.000000e+00> : vector<2x128xf32>
    %32 = tpu.matmul %28, %21, %cst_29 {dimension_numbers = #tpu.dot_dimension_numbers<[1], [0], [0], [1], [0, 0, 1, 1], [], []>} : vector<2x32xf32>, vector<32x128xf32>, vector<2x128xf32> -> vector<2x128xf32>
    %33 = arith.addf %31, %32 : vector<2x128xf32>
    %34 = vector.extract_strided_slice %33 {offsets = [0, 0], sizes = [2, 32], strides = [1, 1]} : vector<2x128xf32> to vector<2x32xf32>
    %35 = arith.negf %34 : vector<2x32xf32>
    %36 = math.exp %35 : vector<2x32xf32>
    %cst_30 = arith.constant 1.000000e+00 : f32
    %37 = vector.broadcast %cst_30 : f32 to vector<2x32xf32>
    %38 = arith.addf %37, %36 : vector<2x32xf32>
    %39 = arith.divf %37, %38 : vector<2x32xf32>
    %40 = vector.extract_strided_slice %33 {offsets = [0, 32], sizes = [2, 32], strides = [1, 1]} : vector<2x128xf32> to vector<2x32xf32>
    %41 = arith.negf %40 : vector<2x32xf32>
    %42 = math.exp %41 : vector<2x32xf32>
    %cst_31 = arith.constant 1.000000e+00 : f32
    %43 = vector.broadcast %cst_31 : f32 to vector<2x32xf32>
    %44 = arith.addf %43, %42 : vector<2x32xf32>
    %45 = arith.divf %43, %44 : vector<2x32xf32>
    %46 = vector.extract_strided_slice %33 {offsets = [0, 64], sizes = [2, 32], strides = [1, 1]} : vector<2x128xf32> to vector<2x32xf32>
    %47 = math.tanh %46 : vector<2x32xf32>
    %48 = vector.extract_strided_slice %33 {offsets = [0, 96], sizes = [2, 32], strides = [1, 1]} : vector<2x128xf32> to vector<2x32xf32>
    %49 = arith.negf %48 : vector<2x32xf32>
    %50 = math.exp %49 : vector<2x32xf32>
    %cst_32 = arith.constant 1.000000e+00 : f32
    %51 = vector.broadcast %cst_32 : f32 to vector<2x32xf32>
    %52 = arith.addf %51, %50 : vector<2x32xf32>
    %53 = arith.divf %51, %52 : vector<2x32xf32>
    %54 = arith.mulf %45, %30 : vector<2x32xf32>
    %55 = arith.mulf %39, %47 : vector<2x32xf32>
    %56 = arith.addf %54, %55 : vector<2x32xf32>
    %57 = math.tanh %56 : vector<2x32xf32>
    %58 = arith.mulf %53, %57 : vector<2x32xf32>
    %c0_33 = arith.constant 0 : index
    %c0_34 = arith.constant 0 : index
    %59 = vector.load %arg19[%c0_33, %c0_34] : memref<16x32xf32, #tpu.memory_space<vmem>>, vector<2x32xf32>
    tpu.vector_store %arg19[%c0_33, %c0_34], %58 {strides = array<i32>} : memref<16x32xf32, #tpu.memory_space<vmem>>, vector<2x32xf32>,
    %60 = vector.extract_strided_slice %26 {offsets = [2, 0], sizes = [2, 128], strides = [1, 1]} : vector<16x128xf32> to vector<2x128xf32>
    %cst_35 = arith.constant dense<0.000000e+00> : vector<2x128xf32>
    %61 = tpu.matmul %58, %21, %cst_35 {dimension_numbers = #tpu.dot_dimension_numbers<[1], [0], [0], [1], [0, 0, 1, 1], [], []>} : vector<2x32xf32>, vector<32x128xf32>, vector<2x128xf32> -> vector<2x128xf32>
    %62 = arith.addf %60, %61 : vector<2x128xf32>
    %63 = vector.extract_strided_slice %62 {offsets = [0, 0], sizes = [2, 32], strides = [1, 1]} : vector<2x128xf32> to vector<2x32xf32>
    %64 = arith.negf %63 : vector<2x32xf32>
    %65 = math.exp %64 : vector<2x32xf32>
    %cst_36 = arith.constant 1.000000e+00 : f32
    %66 = vector.broadcast %cst_36 : f32 to vector<2x32xf32>
    %67 = arith.addf %66, %65 : vector<2x32xf32>
    %68 = arith.divf %66, %67 : vector<2x32xf32>
    %69 = vector.extract_strided_slice %62 {offsets = [0, 32], sizes = [2, 32], strides = [1, 1]} : vector<2x128xf32> to vector<2x32xf32>
    %70 = arith.negf %69 : vector<2x32xf32>
    %71 = math.exp %70 : vector<2x32xf32>
    %cst_37 = arith.constant 1.000000e+00 : f32
    %72 = vector.broadcast %cst_37 : f32 to vector<2x32xf32>
    %73 = arith.addf %72, %71 : vector<2x32xf32>
    %74 = arith.divf %72, %73 : vector<2x32xf32>
    %75 = vector.extract_strided_slice %62 {offsets = [0, 64], sizes = [2, 32], strides = [1, 1]} : vector<2x128xf32> to vector<2x32xf32>
    %76 = math.tanh %75 : vector<2x32xf32>
    %77 = vector.extract_strided_slice %62 {offsets = [0, 96], sizes = [2, 32], strides = [1, 1]} : vector<2x128xf32> to vector<2x32xf32>
    %78 = arith.negf %77 : vector<2x32xf32>
    %79 = math.exp %78 : vector<2x32xf32>
    %cst_38 = arith.constant 1.000000e+00 : f32
    %80 = vector.broadcast %cst_38 : f32 to vector<2x32xf32>
    %81 = arith.addf %80, %79 : vector<2x32xf32>
    %82 = arith.divf %80, %81 : vector<2x32xf32>
    %83 = arith.mulf %74, %56 : vector<2x32xf32>
    %84 = arith.mulf %68, %76 : vector<2x32xf32>
    %85 = arith.addf %83, %84 : vector<2x32xf32>
    %86 = math.tanh %85 : vector<2x32xf32>
    %87 = arith.mulf %82, %86 : vector<2x32xf32>
    %c2 = arith.constant 2 : index
    %c0_39 = arith.constant 0 : index
    %88 = vector.load %arg19[%c2, %c0_39] : memref<16x32xf32, #tpu.memory_space<vmem>>, vector<2x32xf32>
    tpu.vector_store %arg19[%c2, %c0_39], %87 {strides = array<i32>} : memref<16x32xf32, #tpu.memory_space<vmem>>, vector<2x32xf32>,
    %89 = vector.extract_strided_slice %26 {offsets = [4, 0], sizes = [2, 128], strides = [1, 1]} : vector<16x128xf32> to vector<2x128xf32>
    %cst_40 = arith.constant dense<0.000000e+00> : vector<2x128xf32>
    %90 = tpu.matmul %87, %21, %cst_40 {dimension_numbers = #tpu.dot_dimension_numbers<[1], [0], [0], [1], [0, 0, 1, 1], [], []>} : vector<2x32xf32>, vector<32x128xf32>, vector<2x128xf32> -> vector<2x128xf32>
    %91 = arith.addf %89, %90 : vector<2x128xf32>
    %92 = vector.extract_strided_slice %91 {offsets = [0, 0], sizes = [2, 32], strides = [1, 1]} : vector<2x128xf32> to vector<2x32xf32>
    %93 = arith.negf %92 : vector<2x32xf32>
    %94 = math.exp %93 : vector<2x32xf32>
    %cst_41 = arith.constant 1.000000e+00 : f32
    %95 = vector.broadcast %cst_41 : f32 to vector<2x32xf32>
    %96 = arith.addf %95, %94 : vector<2x32xf32>
    %97 = arith.divf %95, %96 : vector<2x32xf32>
    %98 = vector.extract_strided_slice %91 {offsets = [0, 32], sizes = [2, 32], strides = [1, 1]} : vector<2x128xf32> to vector<2x32xf32>
    %99 = arith.negf %98 : vector<2x32xf32>
    %100 = math.exp %99 : vector<2x32xf32>
    %cst_42 = arith.constant 1.000000e+00 : f32
    %101 = vector.broadcast %cst_42 : f32 to vector<2x32xf32>
    %102 = arith.addf %101, %100 : vector<2x32xf32>
    %103 = arith.divf %101, %102 : vector<2x32xf32>
    %104 = vector.extract_strided_slice %91 {offsets = [0, 64], sizes = [2, 32], strides = [1, 1]} : vector<2x128xf32> to vector<2x32xf32>
    %105 = math.tanh %104 : vector<2x32xf32>
    %106 = vector.extract_strided_slice %91 {offsets = [0, 96], sizes = [2, 32], strides = [1, 1]} : vector<2x128xf32> to vector<2x32xf32>
    %107 = arith.negf %106 : vector<2x32xf32>
    %108 = math.exp %107 : vector<2x32xf32>
    %cst_43 = arith.constant 1.000000e+00 : f32
    %109 = vector.broadcast %cst_43 : f32 to vector<2x32xf32>
    %110 = arith.addf %109, %108 : vector<2x32xf32>
    %111 = arith.divf %109, %110 : vector<2x32xf32>
    %112 = arith.mulf %103, %85 : vector<2x32xf32>
    %113 = arith.mulf %97, %105 : vector<2x32xf32>
    %114 = arith.addf %112, %113 : vector<2x32xf32>
    %115 = math.tanh %114 : vector<2x32xf32>
    %116 = arith.mulf %111, %115 : vector<2x32xf32>
    %c4 = arith.constant 4 : index
    %c0_44 = arith.constant 0 : index
    %117 = vector.load %arg19[%c4, %c0_44] : memref<16x32xf32, #tpu.memory_space<vmem>>, vector<2x32xf32>
    tpu.vector_store %arg19[%c4, %c0_44], %116 {strides = array<i32>} : memref<16x32xf32, #tpu.memory_space<vmem>>, vector<2x32xf32>,
    %118 = vector.extract_strided_slice %26 {offsets = [6, 0], sizes = [2, 128], strides = [1, 1]} : vector<16x128xf32> to vector<2x128xf32>
    %cst_45 = arith.constant dense<0.000000e+00> : vector<2x128xf32>
    %119 = tpu.matmul %116, %21, %cst_45 {dimension_numbers = #tpu.dot_dimension_numbers<[1], [0], [0], [1], [0, 0, 1, 1], [], []>} : vector<2x32xf32>, vector<32x128xf32>, vector<2x128xf32> -> vector<2x128xf32>
    %120 = arith.addf %118, %119 : vector<2x128xf32>
    %121 = vector.extract_strided_slice %120 {offsets = [0, 0], sizes = [2, 32], strides = [1, 1]} : vector<2x128xf32> to vector<2x32xf32>
    %122 = arith.negf %121 : vector<2x32xf32>
    %123 = math.exp %122 : vector<2x32xf32>
    %cst_46 = arith.constant 1.000000e+00 : f32
    %124 = vector.broadcast %cst_46 : f32 to vector<2x32xf32>
    %125 = arith.addf %124, %123 : vector<2x32xf32>
    %126 = arith.divf %124, %125 : vector<2x32xf32>
    %127 = vector.extract_strided_slice %120 {offsets = [0, 32], sizes = [2, 32], strides = [1, 1]} : vector<2x128xf32> to vector<2x32xf32>
    %128 = arith.negf %127 : vector<2x32xf32>
    %129 = math.exp %128 : vector<2x32xf32>
    %cst_47 = arith.constant 1.000000e+00 : f32
    %130 = vector.broadcast %cst_47 : f32 to vector<2x32xf32>
    %131 = arith.addf %130, %129 : vector<2x32xf32>
    %132 = arith.divf %130, %131 : vector<2x32xf32>
    %133 = vector.extract_strided_slice %120 {offsets = [0, 64], sizes = [2, 32], strides = [1, 1]} : vector<2x128xf32> to vector<2x32xf32>
    %134 = math.tanh %133 : vector<2x32xf32>
    %135 = vector.extract_strided_slice %120 {offsets = [0, 96], sizes = [2, 32], strides = [1, 1]} : vector<2x128xf32> to vector<2x32xf32>
    %136 = arith.negf %135 : vector<2x32xf32>
    %137 = math.exp %136 : vector<2x32xf32>
    %cst_48 = arith.constant 1.000000e+00 : f32
    %138 = vector.broadcast %cst_48 : f32 to vector<2x32xf32>
    %139 = arith.addf %138, %137 : vector<2x32xf32>
    %140 = arith.divf %138, %139 : vector<2x32xf32>
    %141 = arith.mulf %132, %114 : vector<2x32xf32>
    %142 = arith.mulf %126, %134 : vector<2x32xf32>
    %143 = arith.addf %141, %142 : vector<2x32xf32>
    %144 = math.tanh %143 : vector<2x32xf32>
    %145 = arith.mulf %140, %144 : vector<2x32xf32>
    %c6 = arith.constant 6 : index
    %c0_49 = arith.constant 0 : index
    %146 = vector.load %arg19[%c6, %c0_49] : memref<16x32xf32, #tpu.memory_space<vmem>>, vector<2x32xf32>
    tpu.vector_store %arg19[%c6, %c0_49], %145 {strides = array<i32>} : memref<16x32xf32, #tpu.memory_space<vmem>>, vector<2x32xf32>,
    %147 = vector.extract_strided_slice %26 {offsets = [8, 0], sizes = [2, 128], strides = [1, 1]} : vector<16x128xf32> to vector<2x128xf32>
    %cst_50 = arith.constant dense<0.000000e+00> : vector<2x128xf32>
    %148 = tpu.matmul %145, %21, %cst_50 {dimension_numbers = #tpu.dot_dimension_numbers<[1], [0], [0], [1], [0, 0, 1, 1], [], []>} : vector<2x32xf32>, vector<32x128xf32>, vector<2x128xf32> -> vector<2x128xf32>
    %149 = arith.addf %147, %148 : vector<2x128xf32>
    %150 = vector.extract_strided_slice %149 {offsets = [0, 0], sizes = [2, 32], strides = [1, 1]} : vector<2x128xf32> to vector<2x32xf32>
    %151 = arith.negf %150 : vector<2x32xf32>
    %152 = math.exp %151 : vector<2x32xf32>
    %cst_51 = arith.constant 1.000000e+00 : f32
    %153 = vector.broadcast %cst_51 : f32 to vector<2x32xf32>
    %154 = arith.addf %153, %152 : vector<2x32xf32>
    %155 = arith.divf %153, %154 : vector<2x32xf32>
    %156 = vector.extract_strided_slice %149 {offsets = [0, 32], sizes = [2, 32], strides = [1, 1]} : vector<2x128xf32> to vector<2x32xf32>
    %157 = arith.negf %156 : vector<2x32xf32>
    %158 = math.exp %157 : vector<2x32xf32>
    %cst_52 = arith.constant 1.000000e+00 : f32
    %159 = vector.broadcast %cst_52 : f32 to vector<2x32xf32>
    %160 = arith.addf %159, %158 : vector<2x32xf32>
    %161 = arith.divf %159, %160 : vector<2x32xf32>
    %162 = vector.extract_strided_slice %149 {offsets = [0, 64], sizes = [2, 32], strides = [1, 1]} : vector<2x128xf32> to vector<2x32xf32>
    %163 = math.tanh %162 : vector<2x32xf32>
    %164 = vector.extract_strided_slice %149 {offsets = [0, 96], sizes = [2, 32], strides = [1, 1]} : vector<2x128xf32> to vector<2x32xf32>
    %165 = arith.negf %164 : vector<2x32xf32>
    %166 = math.exp %165 : vector<2x32xf32>
    %cst_53 = arith.constant 1.000000e+00 : f32
    %167 = vector.broadcast %cst_53 : f32 to vector<2x32xf32>
    %168 = arith.addf %167, %166 : vector<2x32xf32>
    %169 = arith.divf %167, %168 : vector<2x32xf32>
    %170 = arith.mulf %161, %143 : vector<2x32xf32>
    %171 = arith.mulf %155, %163 : vector<2x32xf32>
    %172 = arith.addf %170, %171 : vector<2x32xf32>
    %173 = math.tanh %172 : vector<2x32xf32>
    %174 = arith.mulf %169, %173 : vector<2x32xf32>
    %c8 = arith.constant 8 : index
    %c0_54 = arith.constant 0 : index
    %175 = vector.load %arg19[%c8, %c0_54] : memref<16x32xf32, #tpu.memory_space<vmem>>, vector<2x32xf32>
    tpu.vector_store %arg19[%c8, %c0_54], %174 {strides = array<i32>} : memref<16x32xf32, #tpu.memory_space<vmem>>, vector<2x32xf32>,
    %176 = vector.extract_strided_slice %26 {offsets = [10, 0], sizes = [2, 128], strides = [1, 1]} : vector<16x128xf32> to vector<2x128xf32>
    %cst_55 = arith.constant dense<0.000000e+00> : vector<2x128xf32>
    %177 = tpu.matmul %174, %21, %cst_55 {dimension_numbers = #tpu.dot_dimension_numbers<[1], [0], [0], [1], [0, 0, 1, 1], [], []>} : vector<2x32xf32>, vector<32x128xf32>, vector<2x128xf32> -> vector<2x128xf32>
    %178 = arith.addf %176, %177 : vector<2x128xf32>
    %179 = vector.extract_strided_slice %178 {offsets = [0, 0], sizes = [2, 32], strides = [1, 1]} : vector<2x128xf32> to vector<2x32xf32>
    %180 = arith.negf %179 : vector<2x32xf32>
    %181 = math.exp %180 : vector<2x32xf32>
    %cst_56 = arith.constant 1.000000e+00 : f32
    %182 = vector.broadcast %cst_56 : f32 to vector<2x32xf32>
    %183 = arith.addf %182, %181 : vector<2x32xf32>
    %184 = arith.divf %182, %183 : vector<2x32xf32>
    %185 = vector.extract_strided_slice %178 {offsets = [0, 32], sizes = [2, 32], strides = [1, 1]} : vector<2x128xf32> to vector<2x32xf32>
    %186 = arith.negf %185 : vector<2x32xf32>
    %187 = math.exp %186 : vector<2x32xf32>
    %cst_57 = arith.constant 1.000000e+00 : f32
    %188 = vector.broadcast %cst_57 : f32 to vector<2x32xf32>
    %189 = arith.addf %188, %187 : vector<2x32xf32>
    %190 = arith.divf %188, %189 : vector<2x32xf32>
    %191 = vector.extract_strided_slice %178 {offsets = [0, 64], sizes = [2, 32], strides = [1, 1]} : vector<2x128xf32> to vector<2x32xf32>
    %192 = math.tanh %191 : vector<2x32xf32>
    %193 = vector.extract_strided_slice %178 {offsets = [0, 96], sizes = [2, 32], strides = [1, 1]} : vector<2x128xf32> to vector<2x32xf32>
    %194 = arith.negf %193 : vector<2x32xf32>
    %195 = math.exp %194 : vector<2x32xf32>
    %cst_58 = arith.constant 1.000000e+00 : f32
    %196 = vector.broadcast %cst_58 : f32 to vector<2x32xf32>
    %197 = arith.addf %196, %195 : vector<2x32xf32>
    %198 = arith.divf %196, %197 : vector<2x32xf32>
    %199 = arith.mulf %190, %172 : vector<2x32xf32>
    %200 = arith.mulf %184, %192 : vector<2x32xf32>
    %201 = arith.addf %199, %200 : vector<2x32xf32>
    %202 = math.tanh %201 : vector<2x32xf32>
    %203 = arith.mulf %198, %202 : vector<2x32xf32>
    %c10 = arith.constant 10 : index
    %c0_59 = arith.constant 0 : index
    %204 = vector.load %arg19[%c10, %c0_59] : memref<16x32xf32, #tpu.memory_space<vmem>>, vector<2x32xf32>
    tpu.vector_store %arg19[%c10, %c0_59], %203 {strides = array<i32>} : memref<16x32xf32, #tpu.memory_space<vmem>>, vector<2x32xf32>,
    %205 = vector.extract_strided_slice %26 {offsets = [12, 0], sizes = [2, 128], strides = [1, 1]} : vector<16x128xf32> to vector<2x128xf32>
    %cst_60 = arith.constant dense<0.000000e+00> : vector<2x128xf32>
    %206 = tpu.matmul %203, %21, %cst_60 {dimension_numbers = #tpu.dot_dimension_numbers<[1], [0], [0], [1], [0, 0, 1, 1], [], []>} : vector<2x32xf32>, vector<32x128xf32>, vector<2x128xf32> -> vector<2x128xf32>
    %207 = arith.addf %205, %206 : vector<2x128xf32>
    %208 = vector.extract_strided_slice %207 {offsets = [0, 0], sizes = [2, 32], strides = [1, 1]} : vector<2x128xf32> to vector<2x32xf32>
    %209 = arith.negf %208 : vector<2x32xf32>
    %210 = math.exp %209 : vector<2x32xf32>
    %cst_61 = arith.constant 1.000000e+00 : f32
    %211 = vector.broadcast %cst_61 : f32 to vector<2x32xf32>
    %212 = arith.addf %211, %210 : vector<2x32xf32>
    %213 = arith.divf %211, %212 : vector<2x32xf32>
    %214 = vector.extract_strided_slice %207 {offsets = [0, 32], sizes = [2, 32], strides = [1, 1]} : vector<2x128xf32> to vector<2x32xf32>
    %215 = arith.negf %214 : vector<2x32xf32>
    %216 = math.exp %215 : vector<2x32xf32>
    %cst_62 = arith.constant 1.000000e+00 : f32
    %217 = vector.broadcast %cst_62 : f32 to vector<2x32xf32>
    %218 = arith.addf %217, %216 : vector<2x32xf32>
    %219 = arith.divf %217, %218 : vector<2x32xf32>
    %220 = vector.extract_strided_slice %207 {offsets = [0, 64], sizes = [2, 32], strides = [1, 1]} : vector<2x128xf32> to vector<2x32xf32>
    %221 = math.tanh %220 : vector<2x32xf32>
    %222 = vector.extract_strided_slice %207 {offsets = [0, 96], sizes = [2, 32], strides = [1, 1]} : vector<2x128xf32> to vector<2x32xf32>
    %223 = arith.negf %222 : vector<2x32xf32>
    %224 = math.exp %223 : vector<2x32xf32>
    %cst_63 = arith.constant 1.000000e+00 : f32
    %225 = vector.broadcast %cst_63 : f32 to vector<2x32xf32>
    %226 = arith.addf %225, %224 : vector<2x32xf32>
    %227 = arith.divf %225, %226 : vector<2x32xf32>
    %228 = arith.mulf %219, %201 : vector<2x32xf32>
    %229 = arith.mulf %213, %221 : vector<2x32xf32>
    %230 = arith.addf %228, %229 : vector<2x32xf32>
    %231 = math.tanh %230 : vector<2x32xf32>
    %232 = arith.mulf %227, %231 : vector<2x32xf32>
    %c12 = arith.constant 12 : index
    %c0_64 = arith.constant 0 : index
    %233 = vector.load %arg19[%c12, %c0_64] : memref<16x32xf32, #tpu.memory_space<vmem>>, vector<2x32xf32>
    tpu.vector_store %arg19[%c12, %c0_64], %232 {strides = array<i32>} : memref<16x32xf32, #tpu.memory_space<vmem>>, vector<2x32xf32>,
    %234 = vector.extract_strided_slice %26 {offsets = [14, 0], sizes = [2, 128], strides = [1, 1]} : vector<16x128xf32> to vector<2x128xf32>
    %cst_65 = arith.constant dense<0.000000e+00> : vector<2x128xf32>
    %235 = tpu.matmul %232, %21, %cst_65 {dimension_numbers = #tpu.dot_dimension_numbers<[1], [0], [0], [1], [0, 0, 1, 1], [], []>} : vector<2x32xf32>, vector<32x128xf32>, vector<2x128xf32> -> vector<2x128xf32>
    %236 = arith.addf %234, %235 : vector<2x128xf32>
    %237 = vector.extract_strided_slice %236 {offsets = [0, 0], sizes = [2, 32], strides = [1, 1]} : vector<2x128xf32> to vector<2x32xf32>
    %238 = arith.negf %237 : vector<2x32xf32>
    %239 = math.exp %238 : vector<2x32xf32>
    %cst_66 = arith.constant 1.000000e+00 : f32
    %240 = vector.broadcast %cst_66 : f32 to vector<2x32xf32>
    %241 = arith.addf %240, %239 : vector<2x32xf32>
    %242 = arith.divf %240, %241 : vector<2x32xf32>
    %243 = vector.extract_strided_slice %236 {offsets = [0, 32], sizes = [2, 32], strides = [1, 1]} : vector<2x128xf32> to vector<2x32xf32>
    %244 = arith.negf %243 : vector<2x32xf32>
    %245 = math.exp %244 : vector<2x32xf32>
    %cst_67 = arith.constant 1.000000e+00 : f32
    %246 = vector.broadcast %cst_67 : f32 to vector<2x32xf32>
    %247 = arith.addf %246, %245 : vector<2x32xf32>
    %248 = arith.divf %246, %247 : vector<2x32xf32>
    %249 = vector.extract_strided_slice %236 {offsets = [0, 64], sizes = [2, 32], strides = [1, 1]} : vector<2x128xf32> to vector<2x32xf32>
    %250 = math.tanh %249 : vector<2x32xf32>
    %251 = vector.extract_strided_slice %236 {offsets = [0, 96], sizes = [2, 32], strides = [1, 1]} : vector<2x128xf32> to vector<2x32xf32>
    %252 = arith.negf %251 : vector<2x32xf32>
    %253 = math.exp %252 : vector<2x32xf32>
    %cst_68 = arith.constant 1.000000e+00 : f32
    %254 = vector.broadcast %cst_68 : f32 to vector<2x32xf32>
    %255 = arith.addf %254, %253 : vector<2x32xf32>
    %256 = arith.divf %254, %255 : vector<2x32xf32>
    %257 = arith.mulf %248, %230 : vector<2x32xf32>
    %258 = arith.mulf %242, %250 : vector<2x32xf32>
    %259 = arith.addf %257, %258 : vector<2x32xf32>
    %260 = math.tanh %259 : vector<2x32xf32>
    %261 = arith.mulf %256, %260 : vector<2x32xf32>
    %c14 = arith.constant 14 : index
    %c0_69 = arith.constant 0 : index
    %262 = vector.load %arg19[%c14, %c0_69] : memref<16x32xf32, #tpu.memory_space<vmem>>, vector<2x32xf32>
    tpu.vector_store %arg19[%c14, %c0_69], %261 {strides = array<i32>} : memref<16x32xf32, #tpu.memory_space<vmem>>, vector<2x32xf32>,
    %c0_70 = arith.constant 0 : index
    %c0_71 = arith.constant 0 : index
    %c0_72 = arith.constant 0 : index
    %263 = vector.load %arg17[%c0_70, %c0_71, %c0_72] : memref<2x2x32xf32, #tpu.memory_space<vmem>>, vector<1x2x32xf32>
    %264 = vector.shape_cast %263 : vector<1x2x32xf32> to vector<2x32xf32>
    %265 = vector.shape_cast %261 : vector<2x32xf32> to vector<1x2x32xf32>
    tpu.vector_store %arg17[%c0_70, %c0_71, %c0_72], %265 {strides = array<i32>} : memref<2x2x32xf32, #tpu.memory_space<vmem>>, vector<1x2x32xf32>,
    %c0_73 = arith.constant 0 : index
    %c0_74 = arith.constant 0 : index
    %c0_75 = arith.constant 0 : index
    %266 = vector.load %arg18[%c0_73, %c0_74, %c0_75] : memref<2x2x32xf32, #tpu.memory_space<vmem>>, vector<1x2x32xf32>
    %267 = vector.shape_cast %266 : vector<1x2x32xf32> to vector<2x32xf32>
    %268 = vector.shape_cast %259 : vector<2x32xf32> to vector<1x2x32xf32>
    tpu.vector_store %arg18[%c0_73, %c0_74, %c0_75], %268 {strides = array<i32>} : memref<2x2x32xf32, #tpu.memory_space<vmem>>, vector<1x2x32xf32>,
    %c0_76 = arith.constant 0 : index
    %c0_77 = arith.constant 0 : index
    %269 = vector.load %arg19[%c0_76, %c0_77] : memref<16x32xf32, #tpu.memory_space<vmem>>, vector<16x32xf32>
    %c0_78 = arith.constant 0 : index
    %c0_79 = arith.constant 0 : index
    %270 = vector.load %arg10[%c0_78, %c0_79] : memref<32x128xf32, #tpu.memory_space<vmem>>, vector<32x128xf32>
    %c0_80 = arith.constant 0 : index
    %c0_81 = arith.constant 0 : index
    %271 = vector.load %arg9[%c0_80, %c0_81] : memref<32x128xf32, #tpu.memory_space<vmem>>, vector<32x128xf32>
    %cst_82 = arith.constant dense<0.000000e+00> : vector<16x128xf32>
    %272 = tpu.matmul %269, %271, %cst_82 {dimension_numbers = #tpu.dot_dimension_numbers<[1], [0], [0], [1], [0, 0, 1, 1], [], []>} : vector<16x32xf32>, vector<32x128xf32>, vector<16x128xf32> -> vector<16x128xf32>
    %c0_83 = arith.constant 0 : index
    %c0_84 = arith.constant 0 : index
    %273 = vector.load %arg11[%c0_83, %c0_84] : memref<1x128xf32, #tpu.memory_space<vmem>>, vector<1x128xf32>
    %274 = vector.broadcast %273 : vector<1x128xf32> to vector<16x128xf32>
    %275 = arith.addf %272, %274 : vector<16x128xf32>
    %c1 = arith.constant 1 : index
    %c0_85 = arith.constant 0 : index
    %c0_86 = arith.constant 0 : index
    %276 = vector.load %arg12[%c1, %c0_85, %c0_86] : memref<2x2x32xf32, #tpu.memory_space<vmem>>, vector<1x2x32xf32>
    %277 = vector.shape_cast %276 : vector<1x2x32xf32> to vector<2x32xf32>
    %c1_87 = arith.constant 1 : index
    %c0_88 = arith.constant 0 : index
    %c0_89 = arith.constant 0 : index
    %278 = vector.load %arg13[%c1_87, %c0_88, %c0_89] : memref<2x2x32xf32, #tpu.memory_space<vmem>>, vector<1x2x32xf32>
    %279 = vector.shape_cast %278 : vector<1x2x32xf32> to vector<2x32xf32>
    %280 = vector.extract_strided_slice %275 {offsets = [0, 0], sizes = [2, 128], strides = [1, 1]} : vector<16x128xf32> to vector<2x128xf32>
    %cst_90 = arith.constant dense<0.000000e+00> : vector<2x128xf32>
    %281 = tpu.matmul %277, %270, %cst_90 {dimension_numbers = #tpu.dot_dimension_numbers<[1], [0], [0], [1], [0, 0, 1, 1], [], []>} : vector<2x32xf32>, vector<32x128xf32>, vector<2x128xf32> -> vector<2x128xf32>
    %282 = arith.addf %280, %281 : vector<2x128xf32>
    %283 = vector.extract_strided_slice %282 {offsets = [0, 0], sizes = [2, 32], strides = [1, 1]} : vector<2x128xf32> to vector<2x32xf32>
    %284 = arith.negf %283 : vector<2x32xf32>
    %285 = math.exp %284 : vector<2x32xf32>
    %cst_91 = arith.constant 1.000000e+00 : f32
    %286 = vector.broadcast %cst_91 : f32 to vector<2x32xf32>
    %287 = arith.addf %286, %285 : vector<2x32xf32>
    %288 = arith.divf %286, %287 : vector<2x32xf32>
    %289 = vector.extract_strided_slice %282 {offsets = [0, 32], sizes = [2, 32], strides = [1, 1]} : vector<2x128xf32> to vector<2x32xf32>
    %290 = arith.negf %289 : vector<2x32xf32>
    %291 = math.exp %290 : vector<2x32xf32>
    %cst_92 = arith.constant 1.000000e+00 : f32
    %292 = vector.broadcast %cst_92 : f32 to vector<2x32xf32>
    %293 = arith.addf %292, %291 : vector<2x32xf32>
    %294 = arith.divf %292, %293 : vector<2x32xf32>
    %295 = vector.extract_strided_slice %282 {offsets = [0, 64], sizes = [2, 32], strides = [1, 1]} : vector<2x128xf32> to vector<2x32xf32>
    %296 = math.tanh %295 : vector<2x32xf32>
    %297 = vector.extract_strided_slice %282 {offsets = [0, 96], sizes = [2, 32], strides = [1, 1]} : vector<2x128xf32> to vector<2x32xf32>
    %298 = arith.negf %297 : vector<2x32xf32>
    %299 = math.exp %298 : vector<2x32xf32>
    %cst_93 = arith.constant 1.000000e+00 : f32
    %300 = vector.broadcast %cst_93 : f32 to vector<2x32xf32>
    %301 = arith.addf %300, %299 : vector<2x32xf32>
    %302 = arith.divf %300, %301 : vector<2x32xf32>
    %303 = arith.mulf %294, %279 : vector<2x32xf32>
    %304 = arith.mulf %288, %296 : vector<2x32xf32>
    %305 = arith.addf %303, %304 : vector<2x32xf32>
    %306 = math.tanh %305 : vector<2x32xf32>
    %307 = arith.mulf %302, %306 : vector<2x32xf32>
    %c0_94 = arith.constant 0 : index
    %c0_95 = arith.constant 0 : index
    %308 = vector.load %arg20[%c0_94, %c0_95] : memref<16x32xf32, #tpu.memory_space<vmem>>, vector<2x32xf32>
    tpu.vector_store %arg20[%c0_94, %c0_95], %307 {strides = array<i32>} : memref<16x32xf32, #tpu.memory_space<vmem>>, vector<2x32xf32>,
    %309 = vector.extract_strided_slice %275 {offsets = [2, 0], sizes = [2, 128], strides = [1, 1]} : vector<16x128xf32> to vector<2x128xf32>
    %cst_96 = arith.constant dense<0.000000e+00> : vector<2x128xf32>
    %310 = tpu.matmul %307, %270, %cst_96 {dimension_numbers = #tpu.dot_dimension_numbers<[1], [0], [0], [1], [0, 0, 1, 1], [], []>} : vector<2x32xf32>, vector<32x128xf32>, vector<2x128xf32> -> vector<2x128xf32>
    %311 = arith.addf %309, %310 : vector<2x128xf32>
    %312 = vector.extract_strided_slice %311 {offsets = [0, 0], sizes = [2, 32], strides = [1, 1]} : vector<2x128xf32> to vector<2x32xf32>
    %313 = arith.negf %312 : vector<2x32xf32>
    %314 = math.exp %313 : vector<2x32xf32>
    %cst_97 = arith.constant 1.000000e+00 : f32
    %315 = vector.broadcast %cst_97 : f32 to vector<2x32xf32>
    %316 = arith.addf %315, %314 : vector<2x32xf32>
    %317 = arith.divf %315, %316 : vector<2x32xf32>
    %318 = vector.extract_strided_slice %311 {offsets = [0, 32], sizes = [2, 32], strides = [1, 1]} : vector<2x128xf32> to vector<2x32xf32>
    %319 = arith.negf %318 : vector<2x32xf32>
    %320 = math.exp %319 : vector<2x32xf32>
    %cst_98 = arith.constant 1.000000e+00 : f32
    %321 = vector.broadcast %cst_98 : f32 to vector<2x32xf32>
    %322 = arith.addf %321, %320 : vector<2x32xf32>
    %323 = arith.divf %321, %322 : vector<2x32xf32>
    %324 = vector.extract_strided_slice %311 {offsets = [0, 64], sizes = [2, 32], strides = [1, 1]} : vector<2x128xf32> to vector<2x32xf32>
    %325 = math.tanh %324 : vector<2x32xf32>
    %326 = vector.extract_strided_slice %311 {offsets = [0, 96], sizes = [2, 32], strides = [1, 1]} : vector<2x128xf32> to vector<2x32xf32>
    %327 = arith.negf %326 : vector<2x32xf32>
    %328 = math.exp %327 : vector<2x32xf32>
    %cst_99 = arith.constant 1.000000e+00 : f32
    %329 = vector.broadcast %cst_99 : f32 to vector<2x32xf32>
    %330 = arith.addf %329, %328 : vector<2x32xf32>
    %331 = arith.divf %329, %330 : vector<2x32xf32>
    %332 = arith.mulf %323, %305 : vector<2x32xf32>
    %333 = arith.mulf %317, %325 : vector<2x32xf32>
    %334 = arith.addf %332, %333 : vector<2x32xf32>
    %335 = math.tanh %334 : vector<2x32xf32>
    %336 = arith.mulf %331, %335 : vector<2x32xf32>
    %c2_100 = arith.constant 2 : index
    %c0_101 = arith.constant 0 : index
    %337 = vector.load %arg20[%c2_100, %c0_101] : memref<16x32xf32, #tpu.memory_space<vmem>>, vector<2x32xf32>
    tpu.vector_store %arg20[%c2_100, %c0_101], %336 {strides = array<i32>} : memref<16x32xf32, #tpu.memory_space<vmem>>, vector<2x32xf32>,
    %338 = vector.extract_strided_slice %275 {offsets = [4, 0], sizes = [2, 128], strides = [1, 1]} : vector<16x128xf32> to vector<2x128xf32>
    %cst_102 = arith.constant dense<0.000000e+00> : vector<2x128xf32>
    %339 = tpu.matmul %336, %270, %cst_102 {dimension_numbers = #tpu.dot_dimension_numbers<[1], [0], [0], [1], [0, 0, 1, 1], [], []>} : vector<2x32xf32>, vector<32x128xf32>, vector<2x128xf32> -> vector<2x128xf32>
    %340 = arith.addf %338, %339 : vector<2x128xf32>
    %341 = vector.extract_strided_slice %340 {offsets = [0, 0], sizes = [2, 32], strides = [1, 1]} : vector<2x128xf32> to vector<2x32xf32>
    %342 = arith.negf %341 : vector<2x32xf32>
    %343 = math.exp %342 : vector<2x32xf32>
    %cst_103 = arith.constant 1.000000e+00 : f32
    %344 = vector.broadcast %cst_103 : f32 to vector<2x32xf32>
    %345 = arith.addf %344, %343 : vector<2x32xf32>
    %346 = arith.divf %344, %345 : vector<2x32xf32>
    %347 = vector.extract_strided_slice %340 {offsets = [0, 32], sizes = [2, 32], strides = [1, 1]} : vector<2x128xf32> to vector<2x32xf32>
    %348 = arith.negf %347 : vector<2x32xf32>
    %349 = math.exp %348 : vector<2x32xf32>
    %cst_104 = arith.constant 1.000000e+00 : f32
    %350 = vector.broadcast %cst_104 : f32 to vector<2x32xf32>
    %351 = arith.addf %350, %349 : vector<2x32xf32>
    %352 = arith.divf %350, %351 : vector<2x32xf32>
    %353 = vector.extract_strided_slice %340 {offsets = [0, 64], sizes = [2, 32], strides = [1, 1]} : vector<2x128xf32> to vector<2x32xf32>
    %354 = math.tanh %353 : vector<2x32xf32>
    %355 = vector.extract_strided_slice %340 {offsets = [0, 96], sizes = [2, 32], strides = [1, 1]} : vector<2x128xf32> to vector<2x32xf32>
    %356 = arith.negf %355 : vector<2x32xf32>
    %357 = math.exp %356 : vector<2x32xf32>
    %cst_105 = arith.constant 1.000000e+00 : f32
    %358 = vector.broadcast %cst_105 : f32 to vector<2x32xf32>
    %359 = arith.addf %358, %357 : vector<2x32xf32>
    %360 = arith.divf %358, %359 : vector<2x32xf32>
    %361 = arith.mulf %352, %334 : vector<2x32xf32>
    %362 = arith.mulf %346, %354 : vector<2x32xf32>
    %363 = arith.addf %361, %362 : vector<2x32xf32>
    %364 = math.tanh %363 : vector<2x32xf32>
    %365 = arith.mulf %360, %364 : vector<2x32xf32>
    %c4_106 = arith.constant 4 : index
    %c0_107 = arith.constant 0 : index
    %366 = vector.load %arg20[%c4_106, %c0_107] : memref<16x32xf32, #tpu.memory_space<vmem>>, vector<2x32xf32>
    tpu.vector_store %arg20[%c4_106, %c0_107], %365 {strides = array<i32>} : memref<16x32xf32, #tpu.memory_space<vmem>>, vector<2x32xf32>,
    %367 = vector.extract_strided_slice %275 {offsets = [6, 0], sizes = [2, 128], strides = [1, 1]} : vector<16x128xf32> to vector<2x128xf32>
    %cst_108 = arith.constant dense<0.000000e+00> : vector<2x128xf32>
    %368 = tpu.matmul %365, %270, %cst_108 {dimension_numbers = #tpu.dot_dimension_numbers<[1], [0], [0], [1], [0, 0, 1, 1], [], []>} : vector<2x32xf32>, vector<32x128xf32>, vector<2x128xf32> -> vector<2x128xf32>
    %369 = arith.addf %367, %368 : vector<2x128xf32>
    %370 = vector.extract_strided_slice %369 {offsets = [0, 0], sizes = [2, 32], strides = [1, 1]} : vector<2x128xf32> to vector<2x32xf32>
    %371 = arith.negf %370 : vector<2x32xf32>
    %372 = math.exp %371 : vector<2x32xf32>
    %cst_109 = arith.constant 1.000000e+00 : f32
    %373 = vector.broadcast %cst_109 : f32 to vector<2x32xf32>
    %374 = arith.addf %373, %372 : vector<2x32xf32>
    %375 = arith.divf %373, %374 : vector<2x32xf32>
    %376 = vector.extract_strided_slice %369 {offsets = [0, 32], sizes = [2, 32], strides = [1, 1]} : vector<2x128xf32> to vector<2x32xf32>
    %377 = arith.negf %376 : vector<2x32xf32>
    %378 = math.exp %377 : vector<2x32xf32>
    %cst_110 = arith.constant 1.000000e+00 : f32
    %379 = vector.broadcast %cst_110 : f32 to vector<2x32xf32>
    %380 = arith.addf %379, %378 : vector<2x32xf32>
    %381 = arith.divf %379, %380 : vector<2x32xf32>
    %382 = vector.extract_strided_slice %369 {offsets = [0, 64], sizes = [2, 32], strides = [1, 1]} : vector<2x128xf32> to vector<2x32xf32>
    %383 = math.tanh %382 : vector<2x32xf32>
    %384 = vector.extract_strided_slice %369 {offsets = [0, 96], sizes = [2, 32], strides = [1, 1]} : vector<2x128xf32> to vector<2x32xf32>
    %385 = arith.negf %384 : vector<2x32xf32>
    %386 = math.exp %385 : vector<2x32xf32>
    %cst_111 = arith.constant 1.000000e+00 : f32
    %387 = vector.broadcast %cst_111 : f32 to vector<2x32xf32>
    %388 = arith.addf %387, %386 : vector<2x32xf32>
    %389 = arith.divf %387, %388 : vector<2x32xf32>
    %390 = arith.mulf %381, %363 : vector<2x32xf32>
    %391 = arith.mulf %375, %383 : vector<2x32xf32>
    %392 = arith.addf %390, %391 : vector<2x32xf32>
    %393 = math.tanh %392 : vector<2x32xf32>
    %394 = arith.mulf %389, %393 : vector<2x32xf32>
    %c6_112 = arith.constant 6 : index
    %c0_113 = arith.constant 0 : index
    %395 = vector.load %arg20[%c6_112, %c0_113] : memref<16x32xf32, #tpu.memory_space<vmem>>, vector<2x32xf32>
    tpu.vector_store %arg20[%c6_112, %c0_113], %394 {strides = array<i32>} : memref<16x32xf32, #tpu.memory_space<vmem>>, vector<2x32xf32>,
    %396 = vector.extract_strided_slice %275 {offsets = [8, 0], sizes = [2, 128], strides = [1, 1]} : vector<16x128xf32> to vector<2x128xf32>
    %cst_114 = arith.constant dense<0.000000e+00> : vector<2x128xf32>
    %397 = tpu.matmul %394, %270, %cst_114 {dimension_numbers = #tpu.dot_dimension_numbers<[1], [0], [0], [1], [0, 0, 1, 1], [], []>} : vector<2x32xf32>, vector<32x128xf32>, vector<2x128xf32> -> vector<2x128xf32>
    %398 = arith.addf %396, %397 : vector<2x128xf32>
    %399 = vector.extract_strided_slice %398 {offsets = [0, 0], sizes = [2, 32], strides = [1, 1]} : vector<2x128xf32> to vector<2x32xf32>
    %400 = arith.negf %399 : vector<2x32xf32>
    %401 = math.exp %400 : vector<2x32xf32>
    %cst_115 = arith.constant 1.000000e+00 : f32
    %402 = vector.broadcast %cst_115 : f32 to vector<2x32xf32>
    %403 = arith.addf %402, %401 : vector<2x32xf32>
    %404 = arith.divf %402, %403 : vector<2x32xf32>
    %405 = vector.extract_strided_slice %398 {offsets = [0, 32], sizes = [2, 32], strides = [1, 1]} : vector<2x128xf32> to vector<2x32xf32>
    %406 = arith.negf %405 : vector<2x32xf32>
    %407 = math.exp %406 : vector<2x32xf32>
    %cst_116 = arith.constant 1.000000e+00 : f32
    %408 = vector.broadcast %cst_116 : f32 to vector<2x32xf32>
    %409 = arith.addf %408, %407 : vector<2x32xf32>
    %410 = arith.divf %408, %409 : vector<2x32xf32>
    %411 = vector.extract_strided_slice %398 {offsets = [0, 64], sizes = [2, 32], strides = [1, 1]} : vector<2x128xf32> to vector<2x32xf32>
    %412 = math.tanh %411 : vector<2x32xf32>
    %413 = vector.extract_strided_slice %398 {offsets = [0, 96], sizes = [2, 32], strides = [1, 1]} : vector<2x128xf32> to vector<2x32xf32>
    %414 = arith.negf %413 : vector<2x32xf32>
    %415 = math.exp %414 : vector<2x32xf32>
    %cst_117 = arith.constant 1.000000e+00 : f32
    %416 = vector.broadcast %cst_117 : f32 to vector<2x32xf32>
    %417 = arith.addf %416, %415 : vector<2x32xf32>
    %418 = arith.divf %416, %417 : vector<2x32xf32>
    %419 = arith.mulf %410, %392 : vector<2x32xf32>
    %420 = arith.mulf %404, %412 : vector<2x32xf32>
    %421 = arith.addf %419, %420 : vector<2x32xf32>
    %422 = math.tanh %421 : vector<2x32xf32>
    %423 = arith.mulf %418, %422 : vector<2x32xf32>
    %c8_118 = arith.constant 8 : index
    %c0_119 = arith.constant 0 : index
    %424 = vector.load %arg20[%c8_118, %c0_119] : memref<16x32xf32, #tpu.memory_space<vmem>>, vector<2x32xf32>
    tpu.vector_store %arg20[%c8_118, %c0_119], %423 {strides = array<i32>} : memref<16x32xf32, #tpu.memory_space<vmem>>, vector<2x32xf32>,
    %425 = vector.extract_strided_slice %275 {offsets = [10, 0], sizes = [2, 128], strides = [1, 1]} : vector<16x128xf32> to vector<2x128xf32>
    %cst_120 = arith.constant dense<0.000000e+00> : vector<2x128xf32>
    %426 = tpu.matmul %423, %270, %cst_120 {dimension_numbers = #tpu.dot_dimension_numbers<[1], [0], [0], [1], [0, 0, 1, 1], [], []>} : vector<2x32xf32>, vector<32x128xf32>, vector<2x128xf32> -> vector<2x128xf32>
    %427 = arith.addf %425, %426 : vector<2x128xf32>
    %428 = vector.extract_strided_slice %427 {offsets = [0, 0], sizes = [2, 32], strides = [1, 1]} : vector<2x128xf32> to vector<2x32xf32>
    %429 = arith.negf %428 : vector<2x32xf32>
    %430 = math.exp %429 : vector<2x32xf32>
    %cst_121 = arith.constant 1.000000e+00 : f32
    %431 = vector.broadcast %cst_121 : f32 to vector<2x32xf32>
    %432 = arith.addf %431, %430 : vector<2x32xf32>
    %433 = arith.divf %431, %432 : vector<2x32xf32>
    %434 = vector.extract_strided_slice %427 {offsets = [0, 32], sizes = [2, 32], strides = [1, 1]} : vector<2x128xf32> to vector<2x32xf32>
    %435 = arith.negf %434 : vector<2x32xf32>
    %436 = math.exp %435 : vector<2x32xf32>
    %cst_122 = arith.constant 1.000000e+00 : f32
    %437 = vector.broadcast %cst_122 : f32 to vector<2x32xf32>
    %438 = arith.addf %437, %436 : vector<2x32xf32>
    %439 = arith.divf %437, %438 : vector<2x32xf32>
    %440 = vector.extract_strided_slice %427 {offsets = [0, 64], sizes = [2, 32], strides = [1, 1]} : vector<2x128xf32> to vector<2x32xf32>
    %441 = math.tanh %440 : vector<2x32xf32>
    %442 = vector.extract_strided_slice %427 {offsets = [0, 96], sizes = [2, 32], strides = [1, 1]} : vector<2x128xf32> to vector<2x32xf32>
    %443 = arith.negf %442 : vector<2x32xf32>
    %444 = math.exp %443 : vector<2x32xf32>
    %cst_123 = arith.constant 1.000000e+00 : f32
    %445 = vector.broadcast %cst_123 : f32 to vector<2x32xf32>
    %446 = arith.addf %445, %444 : vector<2x32xf32>
    %447 = arith.divf %445, %446 : vector<2x32xf32>
    %448 = arith.mulf %439, %421 : vector<2x32xf32>
    %449 = arith.mulf %433, %441 : vector<2x32xf32>
    %450 = arith.addf %448, %449 : vector<2x32xf32>
    %451 = math.tanh %450 : vector<2x32xf32>
    %452 = arith.mulf %447, %451 : vector<2x32xf32>
    %c10_124 = arith.constant 10 : index
    %c0_125 = arith.constant 0 : index
    %453 = vector.load %arg20[%c10_124, %c0_125] : memref<16x32xf32, #tpu.memory_space<vmem>>, vector<2x32xf32>
    tpu.vector_store %arg20[%c10_124, %c0_125], %452 {strides = array<i32>} : memref<16x32xf32, #tpu.memory_space<vmem>>, vector<2x32xf32>,
    %454 = vector.extract_strided_slice %275 {offsets = [12, 0], sizes = [2, 128], strides = [1, 1]} : vector<16x128xf32> to vector<2x128xf32>
    %cst_126 = arith.constant dense<0.000000e+00> : vector<2x128xf32>
    %455 = tpu.matmul %452, %270, %cst_126 {dimension_numbers = #tpu.dot_dimension_numbers<[1], [0], [0], [1], [0, 0, 1, 1], [], []>} : vector<2x32xf32>, vector<32x128xf32>, vector<2x128xf32> -> vector<2x128xf32>
    %456 = arith.addf %454, %455 : vector<2x128xf32>
    %457 = vector.extract_strided_slice %456 {offsets = [0, 0], sizes = [2, 32], strides = [1, 1]} : vector<2x128xf32> to vector<2x32xf32>
    %458 = arith.negf %457 : vector<2x32xf32>
    %459 = math.exp %458 : vector<2x32xf32>
    %cst_127 = arith.constant 1.000000e+00 : f32
    %460 = vector.broadcast %cst_127 : f32 to vector<2x32xf32>
    %461 = arith.addf %460, %459 : vector<2x32xf32>
    %462 = arith.divf %460, %461 : vector<2x32xf32>
    %463 = vector.extract_strided_slice %456 {offsets = [0, 32], sizes = [2, 32], strides = [1, 1]} : vector<2x128xf32> to vector<2x32xf32>
    %464 = arith.negf %463 : vector<2x32xf32>
    %465 = math.exp %464 : vector<2x32xf32>
    %cst_128 = arith.constant 1.000000e+00 : f32
    %466 = vector.broadcast %cst_128 : f32 to vector<2x32xf32>
    %467 = arith.addf %466, %465 : vector<2x32xf32>
    %468 = arith.divf %466, %467 : vector<2x32xf32>
    %469 = vector.extract_strided_slice %456 {offsets = [0, 64], sizes = [2, 32], strides = [1, 1]} : vector<2x128xf32> to vector<2x32xf32>
    %470 = math.tanh %469 : vector<2x32xf32>
    %471 = vector.extract_strided_slice %456 {offsets = [0, 96], sizes = [2, 32], strides = [1, 1]} : vector<2x128xf32> to vector<2x32xf32>
    %472 = arith.negf %471 : vector<2x32xf32>
    %473 = math.exp %472 : vector<2x32xf32>
    %cst_129 = arith.constant 1.000000e+00 : f32
    %474 = vector.broadcast %cst_129 : f32 to vector<2x32xf32>
    %475 = arith.addf %474, %473 : vector<2x32xf32>
    %476 = arith.divf %474, %475 : vector<2x32xf32>
    %477 = arith.mulf %468, %450 : vector<2x32xf32>
    %478 = arith.mulf %462, %470 : vector<2x32xf32>
    %479 = arith.addf %477, %478 : vector<2x32xf32>
    %480 = math.tanh %479 : vector<2x32xf32>
    %481 = arith.mulf %476, %480 : vector<2x32xf32>
    %c12_130 = arith.constant 12 : index
    %c0_131 = arith.constant 0 : index
    %482 = vector.load %arg20[%c12_130, %c0_131] : memref<16x32xf32, #tpu.memory_space<vmem>>, vector<2x32xf32>
    tpu.vector_store %arg20[%c12_130, %c0_131], %481 {strides = array<i32>} : memref<16x32xf32, #tpu.memory_space<vmem>>, vector<2x32xf32>,
    %483 = vector.extract_strided_slice %275 {offsets = [14, 0], sizes = [2, 128], strides = [1, 1]} : vector<16x128xf32> to vector<2x128xf32>
    %cst_132 = arith.constant dense<0.000000e+00> : vector<2x128xf32>
    %484 = tpu.matmul %481, %270, %cst_132 {dimension_numbers = #tpu.dot_dimension_numbers<[1], [0], [0], [1], [0, 0, 1, 1], [], []>} : vector<2x32xf32>, vector<32x128xf32>, vector<2x128xf32> -> vector<2x128xf32>
    %485 = arith.addf %483, %484 : vector<2x128xf32>
    %486 = vector.extract_strided_slice %485 {offsets = [0, 0], sizes = [2, 32], strides = [1, 1]} : vector<2x128xf32> to vector<2x32xf32>
    %487 = arith.negf %486 : vector<2x32xf32>
    %488 = math.exp %487 : vector<2x32xf32>
    %cst_133 = arith.constant 1.000000e+00 : f32
    %489 = vector.broadcast %cst_133 : f32 to vector<2x32xf32>
    %490 = arith.addf %489, %488 : vector<2x32xf32>
    %491 = arith.divf %489, %490 : vector<2x32xf32>
    %492 = vector.extract_strided_slice %485 {offsets = [0, 32], sizes = [2, 32], strides = [1, 1]} : vector<2x128xf32> to vector<2x32xf32>
    %493 = arith.negf %492 : vector<2x32xf32>
    %494 = math.exp %493 : vector<2x32xf32>
    %cst_134 = arith.constant 1.000000e+00 : f32
    %495 = vector.broadcast %cst_134 : f32 to vector<2x32xf32>
    %496 = arith.addf %495, %494 : vector<2x32xf32>
    %497 = arith.divf %495, %496 : vector<2x32xf32>
    %498 = vector.extract_strided_slice %485 {offsets = [0, 64], sizes = [2, 32], strides = [1, 1]} : vector<2x128xf32> to vector<2x32xf32>
    %499 = math.tanh %498 : vector<2x32xf32>
    %500 = vector.extract_strided_slice %485 {offsets = [0, 96], sizes = [2, 32], strides = [1, 1]} : vector<2x128xf32> to vector<2x32xf32>
    %501 = arith.negf %500 : vector<2x32xf32>
    %502 = math.exp %501 : vector<2x32xf32>
    %cst_135 = arith.constant 1.000000e+00 : f32
    %503 = vector.broadcast %cst_135 : f32 to vector<2x32xf32>
    %504 = arith.addf %503, %502 : vector<2x32xf32>
    %505 = arith.divf %503, %504 : vector<2x32xf32>
    %506 = arith.mulf %497, %479 : vector<2x32xf32>
    %507 = arith.mulf %491, %499 : vector<2x32xf32>
    %508 = arith.addf %506, %507 : vector<2x32xf32>
    %509 = math.tanh %508 : vector<2x32xf32>
    %510 = arith.mulf %505, %509 : vector<2x32xf32>
    %c14_136 = arith.constant 14 : index
    %c0_137 = arith.constant 0 : index
    %511 = vector.load %arg20[%c14_136, %c0_137] : memref<16x32xf32, #tpu.memory_space<vmem>>, vector<2x32xf32>
    tpu.vector_store %arg20[%c14_136, %c0_137], %510 {strides = array<i32>} : memref<16x32xf32, #tpu.memory_space<vmem>>, vector<2x32xf32>,
    %c1_138 = arith.constant 1 : index
    %c0_139 = arith.constant 0 : index
    %c0_140 = arith.constant 0 : index
    %512 = vector.load %arg17[%c1_138, %c0_139, %c0_140] : memref<2x2x32xf32, #tpu.memory_space<vmem>>, vector<1x2x32xf32>
    %513 = vector.shape_cast %512 : vector<1x2x32xf32> to vector<2x32xf32>
    %514 = vector.shape_cast %510 : vector<2x32xf32> to vector<1x2x32xf32>
    tpu.vector_store %arg17[%c1_138, %c0_139, %c0_140], %514 {strides = array<i32>} : memref<2x2x32xf32, #tpu.memory_space<vmem>>, vector<1x2x32xf32>,
    %c1_141 = arith.constant 1 : index
    %c0_142 = arith.constant 0 : index
    %c0_143 = arith.constant 0 : index
    %515 = vector.load %arg18[%c1_141, %c0_142, %c0_143] : memref<2x2x32xf32, #tpu.memory_space<vmem>>, vector<1x2x32xf32>
    %516 = vector.shape_cast %515 : vector<1x2x32xf32> to vector<2x32xf32>
    %517 = vector.shape_cast %508 : vector<2x32xf32> to vector<1x2x32xf32>
    tpu.vector_store %arg18[%c1_141, %c0_142, %c0_143], %517 {strides = array<i32>} : memref<2x2x32xf32, #tpu.memory_space<vmem>>, vector<1x2x32xf32>,
    %c0_144 = arith.constant 0 : index
    %c0_145 = arith.constant 0 : index
    %518 = vector.load %arg20[%c0_144, %c0_145] : memref<16x32xf32, #tpu.memory_space<vmem>>, vector<16x32xf32>
    %c0_146 = arith.constant 0 : index
    %c0_147 = arith.constant 0 : index
    %519 = vector.load %arg14[%c0_146, %c0_147] : memref<32x128xf32, #tpu.memory_space<vmem>>, vector<32x128xf32>
    %cst_148 = arith.constant dense<0.000000e+00> : vector<16x128xf32>
    %520 = tpu.matmul %518, %519, %cst_148 {dimension_numbers = #tpu.dot_dimension_numbers<[1], [0], [0], [1], [0, 0, 1, 1], [], []>} : vector<16x32xf32>, vector<32x128xf32>, vector<16x128xf32> -> vector<16x128xf32>
    %c0_149 = arith.constant 0 : index
    %c0_150 = arith.constant 0 : index
    %521 = vector.load %arg15[%c0_149, %c0_150] : memref<1x128xf32, #tpu.memory_space<vmem>>, vector<1x128xf32>
    %522 = vector.broadcast %521 : vector<1x128xf32> to vector<16x128xf32>
    %523 = arith.addf %520, %522 : vector<16x128xf32>
    %cst_151 = arith.constant dense<0xFF800000> : vector<16xf32>
    %524 = vector.multi_reduction <maximumf>, %523, %cst_151 [1] : vector<16x128xf32> to vector<16xf32>
    %525 = vector.shape_cast %524 : vector<16xf32> to vector<16x1xf32>
    %526 = vector.broadcast %525 : vector<16x1xf32> to vector<16x128xf32>
    %527 = arith.subf %523, %526 : vector<16x128xf32>
    %528 = math.exp %527 : vector<16x128xf32>
    %cst_152 = arith.constant dense<0.000000e+00> : vector<16xf32>
    %529 = vector.multi_reduction <add>, %528, %cst_152 [1] : vector<16x128xf32> to vector<16xf32>
    %530 = vector.shape_cast %529 : vector<16xf32> to vector<16x1xf32>
    %531 = math.log %530 : vector<16x1xf32>
    %532 = arith.addf %525, %531 : vector<16x1xf32>
    %533 = vector.broadcast %532 : vector<16x1xf32> to vector<16x128xf32>
    %534 = arith.subf %523, %533 : vector<16x128xf32>
    %c0_153 = arith.constant 0 : index
    %c0_154 = arith.constant 0 : index
    %535 = vector.load %arg16[%c0_153, %c0_154] : memref<16x128xf32, #tpu.memory_space<vmem>>, vector<16x128xf32>
    tpu.vector_store %arg16[%c0_153, %c0_154], %534 {strides = array<i32>} : memref<16x128xf32, #tpu.memory_space<vmem>>, vector<16x128xf32>,
    return
  }
}

</mosaic_0001>

<llo_original>
// kernel: tpu_custom_call.1
$region0: #{tpu_custom_call.1}
  #allocation0 [shape = 'u32[]', space=smem, size = 0x4, offset = 0x4, fixed_abs, tag = 'smem constant byte address 0x4 - core index']
  #allocation1 [shape = 'u32[144,128]{1,0:T(1,128)}', space=vmem, size = 0x12000, scoped, tag = 'internal scratch']
  #allocation2 [shape = 'f32[16,32]{1,0:T(8,128)}', space=vmem, size = 0x2000, scoped, tag = 'scratch operand']
  #allocation3 [shape = 'f32[16,32]{1,0:T(8,128)}', space=vmem, size = 0x2000, scoped, tag = 'scratch operand']
  %s0 = inlined_call_operand.vmem [shape: s32[16,1], index: 0, kind: input, shape index: {}]
  %s1 = inlined_call_operand.vmem [shape: f32[128,64], index: 1, kind: input, shape index: {}]
  %s2 = inlined_call_operand.vmem [shape: f32[64,48], index: 2, kind: input, shape index: {}]
  %s3 = inlined_call_operand.vmem [shape: f32[1,48], index: 3, kind: input, shape index: {}]
  %s4 = inlined_call_operand.vmem [shape: f32[48,32], index: 4, kind: input, shape index: {}]
  %s5 = inlined_call_operand.vmem [shape: f32[1,32], index: 5, kind: input, shape index: {}]
  %s6 = inlined_call_operand.vmem [shape: f32[32,128], index: 6, kind: input, shape index: {}]
  %s7 = inlined_call_operand.vmem [shape: f32[32,128], index: 7, kind: input, shape index: {}]
  %s8 = inlined_call_operand.vmem [shape: f32[1,128], index: 8, kind: input, shape index: {}]
  %s9 = inlined_call_operand.vmem [shape: f32[32,128], index: 9, kind: input, shape index: {}]
  %s10 = inlined_call_operand.vmem [shape: f32[32,128], index: 10, kind: input, shape index: {}]
  %s11 = inlined_call_operand.vmem [shape: f32[1,128], index: 11, kind: input, shape index: {}]
  %s12 = inlined_call_operand.vmem [shape: f32[2,2,32], index: 12, kind: input, shape index: {}]
  %s13 = inlined_call_operand.vmem [shape: f32[2,2,32], index: 13, kind: input, shape index: {}]
  %s14 = inlined_call_operand.vmem [shape: f32[32,128], index: 14, kind: input, shape index: {}]
  %s15 = inlined_call_operand.vmem [shape: f32[1,128], index: 15, kind: input, shape index: {}]
  %s16 = inlined_call_operand.hbm [shape: f32[16,128], index: 16, kind: output, shape index: {0}]
  %s17 = inlined_call_operand.hbm [shape: f32[2,2,32], index: 17, kind: output, shape index: {1}]
  %s18 = inlined_call_operand.hbm [shape: f32[2,2,32], index: 18, kind: output, shape index: {2}]
  %19 = xla_tuple %s16, %s17, %s18
  %s20 = sld [smem:[#allocation0]]
  $region90: #{tpu_custom_call.1} parent=0
    _
  %s22 = ssub.s32 1, %s20
  %s23 = scalar_select 0, %s22, %s20
  $region1: #{tpu_custom_call.1} parent=0
    #allocation4 [shape = 'u8[8192]{0}', space=vmem, size = 0x2000, scoped, tag = 'output window, operand 0, single buffered']
    #allocation5 [shape = 's32[1]{0}', space=sflag, size = 0x4, scoped, tag = 'scoped memory for tpu_custom_call.1']
    #allocation6 [shape = 'u8[2048]{0}', space=vmem, size = 0x800, scoped, tag = 'output window, operand 1, single buffered']
    #allocation7 [shape = 's32[1]{0}', space=sflag, size = 0x4, scoped, tag = 'scoped memory for tpu_custom_call.1']
    #allocation8 [shape = 'u8[2048]{0}', space=vmem, size = 0x800, scoped, tag = 'output window, operand 2, single buffered']
    %24 = vsyncpa [#allocation5], 0
    %25 = vsyncpa [#allocation7], 0
    // Predicated region
    $region2: #{tpu_custom_call.1} parent=1 // pred_check
      _
    $region3: #{tpu_custom_call.1} parent=1 // pred_check_branch
      %27 = sbr.rel (0) target = $region5
    $region4: #{tpu_custom_call.1} parent=1 // pred_region
      _
    $region5: #{tpu_custom_call.1} parent=1 // pred_fallthru
      _
    // Predicated region
    $region6: #{tpu_custom_call.1} parent=1 // pred_check
      _
    $region7: #{tpu_custom_call.1} parent=1 // pred_check_branch
      %29 = sbr.rel (0) target = $region9
    $region8: #{tpu_custom_call.1} parent=1 // pred_region
      _
    $region9: #{tpu_custom_call.1} parent=1 // pred_fallthru
      _
    // Predicated region
    $region10: #{tpu_custom_call.1} parent=1 // pred_check
      _
    $region11: #{tpu_custom_call.1} parent=1 // pred_check_branch
      %31 = sbr.rel (0) target = $region13
    $region12: #{tpu_custom_call.1} parent=1 // pred_region
      _
    $region13: #{tpu_custom_call.1} parent=1 // pred_fallthru
      _
    // Predicated region
    $region14: #{tpu_custom_call.1} parent=1 // pred_check
      _
    $region15: #{tpu_custom_call.1} parent=1 // pred_check_branch
      %33 = sbr.rel (0) target = $region17
    $region16: #{tpu_custom_call.1} parent=1 // pred_region
      _
    $region17: #{tpu_custom_call.1} parent=1 // pred_fallthru
      _
    // Predicated region
    $region18: #{tpu_custom_call.1} parent=1 // pred_check
      _
    $region19: #{tpu_custom_call.1} parent=1 // pred_check_branch
      %35 = sbr.rel (0) target = $region21
    $region20: #{tpu_custom_call.1} parent=1 // pred_region
      _
    $region21: #{tpu_custom_call.1} parent=1 // pred_fallthru
      _
    // Predicated region
    $region22: #{tpu_custom_call.1} parent=1 // pred_check
      _
    $region23: #{tpu_custom_call.1} parent=1 // pred_check_branch
      %37 = sbr.rel (0) target = $region25
    $region24: #{tpu_custom_call.1} parent=1 // pred_region
      _
    $region25: #{tpu_custom_call.1} parent=1 // pred_fallthru
      _
    // Predicated region
    $region26: #{tpu_custom_call.1} parent=1 // pred_check
      _
    $region27: #{tpu_custom_call.1} parent=1 // pred_check_branch
      %39 = sbr.rel (0) target = $region29
    $region28: #{tpu_custom_call.1} parent=1 // pred_region
      _
    $region29: #{tpu_custom_call.1} parent=1 // pred_fallthru
      _
    // Predicated region
    $region30: #{tpu_custom_call.1} parent=1 // pred_check
      _
    $region31: #{tpu_custom_call.1} parent=1 // pred_check_branch
      %41 = sbr.rel (0) target = $region33
    $region32: #{tpu_custom_call.1} parent=1 // pred_region
      _
    $region33: #{tpu_custom_call.1} parent=1 // pred_fallthru
      _
    // Predicated region
    $region34: #{tpu_custom_call.1} parent=1 // pred_check
      _
    $region35: #{tpu_custom_call.1} parent=1 // pred_check_branch
      %43 = sbr.rel (0) target = $region37
    $region36: #{tpu_custom_call.1} parent=1 // pred_region
      _
    $region37: #{tpu_custom_call.1} parent=1 // pred_fallthru
      _
    // Predicated region
    $region38: #{tpu_custom_call.1} parent=1 // pred_check
      _
    $region39: #{tpu_custom_call.1} parent=1 // pred_check_branch
      %45 = sbr.rel (0) target = $region41
    $region40: #{tpu_custom_call.1} parent=1 // pred_region
      _
    $region41: #{tpu_custom_call.1} parent=1 // pred_fallthru
      _
    // Predicated region
    $region42: #{tpu_custom_call.1} parent=1 // pred_check
      _
    $region43: #{tpu_custom_call.1} parent=1 // pred_check_branch
      %47 = sbr.rel (0) target = $region45
    $region44: #{tpu_custom_call.1} parent=1 // pred_region
      _
    $region45: #{tpu_custom_call.1} parent=1 // pred_fallthru
      _
    // Predicated region
    $region46: #{tpu_custom_call.1} parent=1 // pred_check
      _
    $region47: #{tpu_custom_call.1} parent=1 // pred_check_branch
      %49 = sbr.rel (0) target = $region49
    $region48: #{tpu_custom_call.1} parent=1 // pred_region
      _
    $region49: #{tpu_custom_call.1} parent=1 // pred_fallthru
      _
    // Predicated region
    $region50: #{tpu_custom_call.1} parent=1 // pred_check
      _
    $region51: #{tpu_custom_call.1} parent=1 // pred_check_branch
      %51 = sbr.rel (0) target = $region53
    $region52: #{tpu_custom_call.1} parent=1 // pred_region
      _
    $region53: #{tpu_custom_call.1} parent=1 // pred_fallthru
      _
    // Predicated region
    $region54: #{tpu_custom_call.1} parent=1 // pred_check
      _
    $region55: #{tpu_custom_call.1} parent=1 // pred_check_branch
      %53 = sbr.rel (0) target = $region57
    $region56: #{tpu_custom_call.1} parent=1 // pred_region
      _
    $region57: #{tpu_custom_call.1} parent=1 // pred_fallthru
      _
    // Predicated region
    $region58: #{tpu_custom_call.1} parent=1 // pred_check
      _
    $region59: #{tpu_custom_call.1} parent=1 // pred_check_branch
      %55 = sbr.rel (0) target = $region61
    $region60: #{tpu_custom_call.1} parent=1 // pred_region
      _
    $region61: #{tpu_custom_call.1} parent=1 // pred_fallthru
      _
    // Predicated region
    $region62: #{tpu_custom_call.1} parent=1 // pred_check
      _
    $region63: #{tpu_custom_call.1} parent=1 // pred_check_branch
      %57 = sbr.rel (0) target = $region65
    $region64: #{tpu_custom_call.1} parent=1 // pred_region
      _
    $region65: #{tpu_custom_call.1} parent=1 // pred_fallthru
      _
    %v58 = vld [vmem:[%s0] sm:$0xff]
    %v59 = vld [vmem:[%s0 + $0x8] sm:$0xff]
    %v60 = vlaneseq
    %v61 = vand.u32 %v60, 127
    %62 = vset.pattern.permute.xlu0 0
    %63 = vperm.xlu0 %62, %v58
    %v64 = vpop.permute.xlu0 %63
    %65 = vset.pattern.permute.xlu0 0
    %66 = vperm.xlu0 %65, %v59
    %v67 = vpop.permute.xlu0 %66
    %vm68 = vcmp.eq.s32.totalorder %v61, %v64
    %vm69 = vcmp.eq.s32.totalorder %v61, %v67
    %v70 = vsel %vm68, 1.0, 0.0
    %v71 = vsel %vm69, 1.0, 0.0
    %v72 = vld [vmem:[%s1] sm:$0xff]
    %v73 = vld [vmem:[%s1 + $0x8] sm:$0xff]
    %v74 = vld [vmem:[%s1 + $0x10] sm:$0xff]
    %v75 = vld [vmem:[%s1 + $0x18] sm:$0xff]
    %v76 = vld [vmem:[%s1 + $0x20] sm:$0xff]
    %v77 = vld [vmem:[%s1 + $0x28] sm:$0xff]
    %v78 = vld [vmem:[%s1 + $0x30] sm:$0xff]
    %v79 = vld [vmem:[%s1 + $0x38] sm:$0xff]
    %v80 = vld [vmem:[%s1 + $0x40] sm:$0xff]
    %v81 = vld [vmem:[%s1 + $0x48] sm:$0xff]
    %v82 = vld [vmem:[%s1 + $0x50] sm:$0xff]
    %v83 = vld [vmem:[%s1 + $0x58] sm:$0xff]
    %v84 = vld [vmem:[%s1 + $0x60] sm:$0xff]
    %v85 = vld [vmem:[%s1 + $0x68] sm:$0xff]
    %v86 = vld [vmem:[%s1 + $0x70] sm:$0xff]
    %v87 = vld [vmem:[%s1 + $0x78] sm:$0xff]
    %88 = vmatprep.subr.mxu0 0.0
    %89 = vmatpush1.msra.mxu0 %v72
    %90 = vmatprep.subr.mxu0 0.0
    %91 = vmatpush1.msra.mxu0 %v73
    %92 = vmatprep.subr.mxu0 0.0
    %93 = vmatpush1.msra.mxu0 %v74
    %94 = vmatprep.subr.mxu0 0.0
    %95 = vmatpush1.msra.mxu0 %v75
    %96 = vmatprep.subr.mxu0 0.0
    %97 = vmatpush1.msra.mxu0 %v76
    %98 = vmatprep.subr.mxu0 0.0
    %99 = vmatpush1.msra.mxu0 %v77
    %100 = vmatprep.subr.mxu0 0.0
    %101 = vmatpush1.msra.mxu0 %v78
    %102 = vmatprep.subr.mxu0 0.0
    %103 = vmatpush1.msra.mxu0 %v79
    %104 = vmatprep.subr.mxu0 0.0
    %105 = vmatpush1.msra.mxu0 %v80
    %106 = vmatprep.subr.mxu0 0.0
    %107 = vmatpush1.msra.mxu0 %v81
    %108 = vmatprep.subr.mxu0 0.0
    %109 = vmatpush1.msra.mxu0 %v82
    %110 = vmatprep.subr.mxu0 0.0
    %111 = vmatpush1.msra.mxu0 %v83
    %112 = vmatprep.subr.mxu0 0.0
    %113 = vmatpush1.msra.mxu0 %v84
    %114 = vmatprep.subr.mxu0 0.0
    %115 = vmatpush1.msra.mxu0 %v85
    %116 = vmatprep.subr.mxu0 0.0
    %117 = vmatpush1.msra.mxu0 %v86
    %118 = vmatprep.subr.mxu0 0.0
    %119 = vmatpush1.msra.mxu0 %v87
    %120 = vmatprep.subr.mxu0 0.0
    %121 = vmatpush1.msra.mxu0 0.0
    %122 = vmatprep.subr.mxu0 0.0
    %123 = vmatpush1.msra.mxu0 0.0
    %124 = vmatprep.subr.mxu0 0.0
    %125 = vmatpush1.msra.mxu0 0.0
    %126 = vmatprep.subr.mxu0 0.0
    %127 = vmatpush1.msra.mxu0 0.0
    %128 = vmatprep.subr.mxu0 0.0
    %129 = vmatpush1.msra.mxu0 0.0
    %130 = vmatprep.subr.mxu0 0.0
    %131 = vmatpush1.msra.mxu0 0.0
    %132 = vmatprep.subr.mxu0 0.0
    %133 = vmatpush1.msra.mxu0 0.0
    %134 = vmatprep.subr.mxu0 0.0
    %135 = vmatpush1.msra.mxu0 0.0
    %136 = vmatprep.subr.mxu0 0.0
    %137 = vmatpush1.msra.mxu0 0.0
    %138 = vmatprep.subr.mxu0 0.0
    %139 = vmatpush1.msra.mxu0 0.0
    %140 = vmatprep.subr.mxu0 0.0
    %141 = vmatpush1.msra.mxu0 0.0
    %142 = vmatprep.subr.mxu0 0.0
    %143 = vmatpush1.msra.mxu0 0.0
    %144 = vmatprep.subr.mxu0 0.0
    %145 = vmatpush1.msra.mxu0 0.0
    %146 = vmatprep.subr.mxu0 0.0
    %147 = vmatpush1.msra.mxu0 0.0
    %148 = vmatprep.subr.mxu0 0.0
    %149 = vmatpush1.msra.mxu0 0.0
    %150 = vmatprep.subr.mxu0 0.0
    %151 = vmatpush1.msra.mxu0 0.0
    %152 = vmatprep.mubr.f32.mxu0 0.0
    %153 = vmatmul.mubr.f32.gmra.mrb[0].mxu0 %v70
    %v154 = vpop.f32.mrb[0].mxu0
    %v155 = vadd.f32 0.0, %v154
    %v156 = vpop.f32.mrb[0].mxu0
    %157 = vmatprep.mubr.f32.mxu0 0.0
    %158 = vmatmul.mubr.f32.gmra.mrb[0].mxu0 %v71
    %v159 = vpop.f32.mrb[0].mxu0
    %v160 = vadd.f32 0.0, %v159
    %v161 = vpop.f32.mrb[0].mxu0
    %162 = vdwg.mxu0
    %v163 = vld [vmem:[%s2] sm:$0xff]
    %v164 = vld [vmem:[%s2 + $0x8] sm:$0xff]
    %v165 = vld [vmem:[%s2 + $0x10] sm:$0xff]
    %v166 = vld [vmem:[%s2 + $0x18] sm:$0xff]
    %v167 = vld [vmem:[%s2 + $0x20] sm:$0xff]
    %v168 = vld [vmem:[%s2 + $0x28] sm:$0xff]
    %v169 = vld [vmem:[%s2 + $0x30] sm:$0xff]
    %v170 = vld [vmem:[%s2 + $0x38] sm:$0xff]
    %v171 = vld [vmem:[%s3] sm:$0x1]
    %v173 = vlaneseq
    %v174 = vshrl.u32 %v173, 7
    %v175 = vsub.s32 0, %v174
    %v176 = vrot.slane %v171, %v175
    %vm178 = vcmask 523264
    %v180 = vsel %vm178, %v155, 0
    %v183 = vsel %vm178, %v160, 0
    %185 = vmatprep.subr.mxu0 0.0
    %186 = vmatpush1.msra.mxu0 %v163
    %187 = vmatprep.subr.mxu0 0.0
    %188 = vmatpush1.msra.mxu0 %v164
    %189 = vmatprep.subr.mxu0 0.0
    %190 = vmatpush1.msra.mxu0 %v165
    %191 = vmatprep.subr.mxu0 0.0
    %192 = vmatpush1.msra.mxu0 %v166
    %193 = vmatprep.subr.mxu0 0.0
    %194 = vmatpush1.msra.mxu0 %v167
    %195 = vmatprep.subr.mxu0 0.0
    %196 = vmatpush1.msra.mxu0 %v168
    %197 = vmatprep.subr.mxu0 0.0
    %198 = vmatpush1.msra.mxu0 %v169
    %199 = vmatprep.subr.mxu0 0.0
    %200 = vmatpush1.msra.mxu0 %v170
    %201 = vmatprep.subr.mxu0 0.0
    %202 = vmatpush1.msra.mxu0 0.0
    %203 = vmatprep.subr.mxu0 0.0
    %204 = vmatpush1.msra.mxu0 0.0
    %205 = vmatprep.subr.mxu0 0.0
    %206 = vmatpush1.msra.mxu0 0.0
    %207 = vmatprep.subr.mxu0 0.0
    %208 = vmatpush1.msra.mxu0 0.0
    %209 = vmatprep.subr.mxu0 0.0
    %210 = vmatpush1.msra.mxu0 0.0
    %211 = vmatprep.subr.mxu0 0.0
    %212 = vmatpush1.msra.mxu0 0.0
    %213 = vmatprep.subr.mxu0 0.0
    %214 = vmatpush1.msra.mxu0 0.0
    %215 = vmatprep.subr.mxu0 0.0
    %216 = vmatpush1.msra.mxu0 0.0
    %217 = vmatprep.subr.mxu0 0.0
    %218 = vmatpush1.msra.mxu0 0.0
    %219 = vmatprep.subr.mxu0 0.0
    %220 = vmatpush1.msra.mxu0 0.0
    %221 = vmatprep.subr.mxu0 0.0
    %222 = vmatpush1.msra.mxu0 0.0
    %223 = vmatprep.subr.mxu0 0.0
    %224 = vmatpush1.msra.mxu0 0.0
    %225 = vmatprep.subr.mxu0 0.0
    %226 = vmatpush1.msra.mxu0 0.0
    %227 = vmatprep.subr.mxu0 0.0
    %228 = vmatpush1.msra.mxu0 0.0
    %229 = vmatprep.subr.mxu0 0.0
    %230 = vmatpush1.msra.mxu0 0.0
    %231 = vmatprep.subr.mxu0 0.0
    %232 = vmatpush1.msra.mxu0 0.0
    %233 = vmatprep.subr.mxu0 0.0
    %234 = vmatpush1.msra.mxu0 0.0
    %235 = vmatprep.subr.mxu0 0.0
    %236 = vmatpush1.msra.mxu0 0.0
    %237 = vmatprep.subr.mxu0 0.0
    %238 = vmatpush1.msra.mxu0 0.0
    %239 = vmatprep.subr.mxu0 0.0
    %240 = vmatpush1.msra.mxu0 0.0
    %241 = vmatprep.subr.mxu0 0.0
    %242 = vmatpush1.msra.mxu0 0.0
    %243 = vmatprep.subr.mxu0 0.0
    %244 = vmatpush1.msra.mxu0 0.0
    %245 = vmatprep.subr.mxu0 0.0
    %246 = vmatpush1.msra.mxu0 0.0
    %247 = vmatprep.subr.mxu0 0.0
    %248 = vmatpush1.msra.mxu0 0.0
    %249 = vmatprep.mubr.f32.mxu0 0.0
    %250 = vmatmul.mubr.f32.gmra.mrb[0].mxu0 %v180
    %v251 = vpop.f32.mrb[0].mxu0
    %v252 = vadd.f32 %v176, %v251
    %v253 = vpop.f32.mrb[0].mxu0
    %254 = vmatprep.mubr.f32.mxu0 0.0
    %255 = vmatmul.mubr.f32.gmra.mrb[0].mxu0 %v183
    %v256 = vpop.f32.mrb[0].mxu0
    %v257 = vadd.f32 %v176, %v256
    %v258 = vpop.f32.mrb[0].mxu0
    %259 = vdwg.mxu0
    %v260 = vmax.f32 %v252, 0.0
    %v261 = vmax.f32 %v257, 0.0
    %v262 = vld [vmem:[%s4] sm:$0xff]
    %v263 = vld [vmem:[%s4 + $0x8] sm:$0xff]
    %v264 = vld [vmem:[%s4 + $0x10] sm:$0xff]
    %v265 = vld [vmem:[%s4 + $0x18] sm:$0xff]
    %v266 = vld [vmem:[%s4 + $0x20] sm:$0xff]
    %v267 = vld [vmem:[%s4 + $0x28] sm:$0xff]
    %v268 = vld [vmem:[%s5] sm:$0x1]
    %v270 = vlaneseq
    %v271 = vshrl.u32 %v270, 7
    %v272 = vsub.s32 0, %v271
    %v273 = vrot.slane %v268, %v272
    %vm275 = vcmask 392192
    %v277 = vsel %vm275, %v260, 0
    %v280 = vsel %vm275, %v261, 0
    %282 = vmatprep.subr.mxu0 0.0
    %283 = vmatpush1.msra.mxu0 %v262
    %284 = vmatprep.subr.mxu0 0.0
    %285 = vmatpush1.msra.mxu0 %v263
    %286 = vmatprep.subr.mxu0 0.0
    %287 = vmatpush1.msra.mxu0 %v264
    %288 = vmatprep.subr.mxu0 0.0
    %289 = vmatpush1.msra.mxu0 %v265
    %290 = vmatprep.subr.mxu0 0.0
    %291 = vmatpush1.msra.mxu0 %v266
    %292 = vmatprep.subr.mxu0 0.0
    %293 = vmatpush1.msra.mxu0 %v267
    %294 = vmatprep.subr.mxu0 0.0
    %295 = vmatpush1.msra.mxu0 0.0
    %296 = vmatprep.subr.mxu0 0.0
    %297 = vmatpush1.msra.mxu0 0.0
    %298 = vmatprep.subr.mxu0 0.0
    %299 = vmatpush1.msra.mxu0 0.0
    %300 = vmatprep.subr.mxu0 0.0
    %301 = vmatpush1.msra.mxu0 0.0
    %302 = vmatprep.subr.mxu0 0.0
    %303 = vmatpush1.msra.mxu0 0.0
    %304 = vmatprep.subr.mxu0 0.0
    %305 = vmatpush1.msra.mxu0 0.0
    %306 = vmatprep.subr.mxu0 0.0
    %307 = vmatpush1.msra.mxu0 0.0
    %308 = vmatprep.subr.mxu0 0.0
    %309 = vmatpush1.msra.mxu0 0.0
    %310 = vmatprep.subr.mxu0 0.0
    %311 = vmatpush1.msra.mxu0 0.0
    %312 = vmatprep.subr.mxu0 0.0
    %313 = vmatpush1.msra.mxu0 0.0
    %314 = vmatprep.subr.mxu0 0.0
    %315 = vmatpush1.msra.mxu0 0.0
    %316 = vmatprep.subr.mxu0 0.0
    %317 = vmatpush1.msra.mxu0 0.0
    %318 = vmatprep.subr.mxu0 0.0
    %319 = vmatpush1.msra.mxu0 0.0
    %320 = vmatprep.subr.mxu0 0.0
    %321 = vmatpush1.msra.mxu0 0.0
    %322 = vmatprep.subr.mxu0 0.0
    %323 = vmatpush1.msra.mxu0 0.0
    %324 = vmatprep.subr.mxu0 0.0
    %325 = vmatpush1.msra.mxu0 0.0
    %326 = vmatprep.subr.mxu0 0.0
    %327 = vmatpush1.msra.mxu0 0.0
    %328 = vmatprep.subr.mxu0 0.0
    %329 = vmatpush1.msra.mxu0 0.0
    %330 = vmatprep.subr.mxu0 0.0
    %331 = vmatpush1.msra.mxu0 0.0
    %332 = vmatprep.subr.mxu0 0.0
    %333 = vmatpush1.msra.mxu0 0.0
    %334 = vmatprep.subr.mxu0 0.0
    %335 = vmatpush1.msra.mxu0 0.0
    %336 = vmatprep.subr.mxu0 0.0
    %337 = vmatpush1.msra.mxu0 0.0
    %338 = vmatprep.subr.mxu0 0.0
    %339 = vmatpush1.msra.mxu0 0.0
    %340 = vmatprep.subr.mxu0 0.0
    %341 = vmatpush1.msra.mxu0 0.0
    %342 = vmatprep.subr.mxu0 0.0
    %343 = vmatpush1.msra.mxu0 0.0
    %344 = vmatprep.subr.mxu0 0.0
    %345 = vmatpush1.msra.mxu0 0.0
    %346 = vmatprep.mubr.f32.mxu0 0.0
    %347 = vmatmul.mubr.f32.gmra.mrb[0].mxu0 %v277
    %v348 = vpop.f32.mrb[0].mxu0
    %v349 = vadd.f32 %v273, %v348
    %v350 = vpop.f32.mrb[0].mxu0
    %351 = vmatprep.mubr.f32.mxu0 0.0
    %352 = vmatmul.mubr.f32.gmra.mrb[0].mxu0 %v280
    %v353 = vpop.f32.mrb[0].mxu0
    %v354 = vadd.f32 %v273, %v353
    %v355 = vpop.f32.mrb[0].mxu0
    %356 = vdwg.mxu0
    %v357 = vld [vmem:[%s7] sm:$0xff]
    %v358 = vld [vmem:[%s7 + $0x8] sm:$0xff]
    %v359 = vld [vmem:[%s7 + $0x10] sm:$0xff]
    %v360 = vld [vmem:[%s7 + $0x18] sm:$0xff]
    %v361 = vld [vmem:[%s6] sm:$0xff]
    %v362 = vld [vmem:[%s6 + $0x8] sm:$0xff]
    %v363 = vld [vmem:[%s6 + $0x10] sm:$0xff]
    %v364 = vld [vmem:[%s6 + $0x18] sm:$0xff]
    %v365 = vld [vmem:[%s8] sm:$0x1]
    %v367 = vlaneseq
    %v368 = vshrl.u32 %v367, 7
    %v369 = vsub.s32 0, %v368
    %v370 = vrot.slane %v365, %v369
    %vm372 = vcmask 261120
    %v374 = vsel %vm372, %v349, 0
    %v377 = vsel %vm372, %v354, 0
    %379 = vmatprep.subr.mxu0 0.0
    %380 = vmatpush1.msra.mxu0 %v361
    %381 = vmatprep.subr.mxu0 0.0
    %382 = vmatpush1.msra.mxu0 %v362
    %383 = vmatprep.subr.mxu0 0.0
    %384 = vmatpush1.msra.mxu0 %v363
    %385 = vmatprep.subr.mxu0 0.0
    %386 = vmatpush1.msra.mxu0 %v364
    %387 = vmatprep.subr.mxu0 0.0
    %388 = vmatpush1.msra.mxu0 0.0
    %389 = vmatprep.subr.mxu0 0.0
    %390 = vmatpush1.msra.mxu0 0.0
    %391 = vmatprep.subr.mxu0 0.0
    %392 = vmatpush1.msra.mxu0 0.0
    %393 = vmatprep.subr.mxu0 0.0
    %394 = vmatpush1.msra.mxu0 0.0
    %395 = vmatprep.subr.mxu0 0.0
    %396 = vmatpush1.msra.mxu0 0.0
    %397 = vmatprep.subr.mxu0 0.0
    %398 = vmatpush1.msra.mxu0 0.0
    %399 = vmatprep.subr.mxu0 0.0
    %400 = vmatpush1.msra.mxu0 0.0
    %401 = vmatprep.subr.mxu0 0.0
    %402 = vmatpush1.msra.mxu0 0.0
    %403 = vmatprep.subr.mxu0 0.0
    %404 = vmatpush1.msra.mxu0 0.0
    %405 = vmatprep.subr.mxu0 0.0
    %406 = vmatpush1.msra.mxu0 0.0
    %407 = vmatprep.subr.mxu0 0.0
    %408 = vmatpush1.msra.mxu0 0.0
    %409 = vmatprep.subr.mxu0 0.0
    %410 = vmatpush1.msra.mxu0 0.0
    %411 = vmatprep.subr.mxu0 0.0
    %412 = vmatpush1.msra.mxu0 0.0
    %413 = vmatprep.subr.mxu0 0.0
    %414 = vmatpush1.msra.mxu0 0.0
    %415 = vmatprep.subr.mxu0 0.0
    %416 = vmatpush1.msra.mxu0 0.0
    %417 = vmatprep.subr.mxu0 0.0
    %418 = vmatpush1.msra.mxu0 0.0
    %419 = vmatprep.subr.mxu0 0.0
    %420 = vmatpush1.msra.mxu0 0.0
    %421 = vmatprep.subr.mxu0 0.0
    %422 = vmatpush1.msra.mxu0 0.0
    %423 = vmatprep.subr.mxu0 0.0
    %424 = vmatpush1.msra.mxu0 0.0
    %425 = vmatprep.subr.mxu0 0.0
    %426 = vmatpush1.msra.mxu0 0.0
    %427 = vmatprep.subr.mxu0 0.0
    %428 = vmatpush1.msra.mxu0 0.0
    %429 = vmatprep.subr.mxu0 0.0
    %430 = vmatpush1.msra.mxu0 0.0
    %431 = vmatprep.subr.mxu0 0.0
    %432 = vmatpush1.msra.mxu0 0.0
    %433 = vmatprep.subr.mxu0 0.0
    %434 = vmatpush1.msra.mxu0 0.0
    %435 = vmatprep.subr.mxu0 0.0
    %436 = vmatpush1.msra.mxu0 0.0
    %437 = vmatprep.subr.mxu0 0.0
    %438 = vmatpush1.msra.mxu0 0.0
    %439 = vmatprep.subr.mxu0 0.0
    %440 = vmatpush1.msra.mxu0 0.0
    %441 = vmatprep.subr.mxu0 0.0
    %442 = vmatpush1.msra.mxu0 0.0
    %443 = vmatprep.mubr.f32.mxu0 0.0
    %444 = vmatmul.mubr.f32.gmra.mrb[0].mxu0 %v374
    %v445 = vpop.f32.mrb[0].mxu0
    %v446 = vadd.f32 %v370, %v445
    %v447 = vpop.f32.mrb[0].mxu0
    %448 = vmatprep.mubr.f32.mxu0 0.0
    %449 = vmatmul.mubr.f32.gmra.mrb[0].mxu0 %v377
    %v450 = vpop.f32.mrb[0].mxu0
    %v451 = vadd.f32 %v370, %v450
    %v452 = vpop.f32.mrb[0].mxu0
    %453 = vdwg.mxu0
    %v454 = vld [vmem:[%s12] sm:$0x3]
    %v455 = vld [vmem:[%s13] sm:$0x3]
    %v457 = vsel %vm372, %v454, 0
    %459 = vmatprep.subr.mxu0 0.0
    %460 = vmatpush1.msra.mxu0 %v357
    %461 = vmatprep.subr.mxu0 0.0
    %462 = vmatpush1.msra.mxu0 %v358
    %463 = vmatprep.subr.mxu0 0.0
    %464 = vmatpush1.msra.mxu0 %v359
    %465 = vmatprep.subr.mxu0 0.0
    %466 = vmatpush1.msra.mxu0 %v360
    %467 = vmatprep.subr.mxu0 0.0
    %468 = vmatpush1.msra.mxu0 0.0
    %469 = vmatprep.subr.mxu0 0.0
    %470 = vmatpush1.msra.mxu0 0.0
    %471 = vmatprep.subr.mxu0 0.0
    %472 = vmatpush1.msra.mxu0 0.0
    %473 = vmatprep.subr.mxu0 0.0
    %474 = vmatpush1.msra.mxu0 0.0
    %475 = vmatprep.subr.mxu0 0.0
    %476 = vmatpush1.msra.mxu0 0.0
    %477 = vmatprep.subr.mxu0 0.0
    %478 = vmatpush1.msra.mxu0 0.0
    %479 = vmatprep.subr.mxu0 0.0
    %480 = vmatpush1.msra.mxu0 0.0
    %481 = vmatprep.subr.mxu0 0.0
    %482 = vmatpush1.msra.mxu0 0.0
    %483 = vmatprep.subr.mxu0 0.0
    %484 = vmatpush1.msra.mxu0 0.0
    %485 = vmatprep.subr.mxu0 0.0
    %486 = vmatpush1.msra.mxu0 0.0
    %487 = vmatprep.subr.mxu0 0.0
    %488 = vmatpush1.msra.mxu0 0.0
    %489 = vmatprep.subr.mxu0 0.0
    %490 = vmatpush1.msra.mxu0 0.0
    %491 = vmatprep.subr.mxu0 0.0
    %492 = vmatpush1.msra.mxu0 0.0
    %493 = vmatprep.subr.mxu0 0.0
    %494 = vmatpush1.msra.mxu0 0.0
    %495 = vmatprep.subr.mxu0 0.0
    %496 = vmatpush1.msra.mxu0 0.0
    %497 = vmatprep.subr.mxu0 0.0
    %498 = vmatpush1.msra.mxu0 0.0
    %499 = vmatprep.subr.mxu0 0.0
    %500 = vmatpush1.msra.mxu0 0.0
    %501 = vmatprep.subr.mxu0 0.0
    %502 = vmatpush1.msra.mxu0 0.0
    %503 = vmatprep.subr.mxu0 0.0
    %504 = vmatpush1.msra.mxu0 0.0
    %505 = vmatprep.subr.mxu0 0.0
    %506 = vmatpush1.msra.mxu0 0.0
    %507 = vmatprep.subr.mxu0 0.0
    %508 = vmatpush1.msra.mxu0 0.0
    %509 = vmatprep.subr.mxu0 0.0
    %510 = vmatpush1.msra.mxu0 0.0
    %511 = vmatprep.subr.mxu0 0.0
    %512 = vmatpush1.msra.mxu0 0.0
    %513 = vmatprep.subr.mxu0 0.0
    %514 = vmatpush1.msra.mxu0 0.0
    %515 = vmatprep.subr.mxu0 0.0
    %516 = vmatpush1.msra.mxu0 0.0
    %517 = vmatprep.subr.mxu0 0.0
    %518 = vmatpush1.msra.mxu0 0.0
    %519 = vmatprep.subr.mxu0 0.0
    %520 = vmatpush1.msra.mxu0 0.0
    %521 = vmatprep.subr.mxu0 0.0
    %522 = vmatpush1.msra.mxu0 0.0
    %523 = vmatprep.mubr.f32.mxu0 0.0
    %524 = vmatmul.mubr.f32.gmra.mrb[0].mxu0 %v457
    %v525 = vpop.f32.mrb[0].mxu0
    %v526 = vadd.f32 0.0, %v525
    %v527 = vpop.f32.mrb[0].mxu0
    %528 = vdwg.mxu0
    %v529 = vadd.f32 %v446, %v526
    %v530 = vxor.u32 %v529, 2147483648
    %v531 = vmul.f32 %v530, 1.442695
    %v532 = vpow.pop %v531
    %v533 = vadd.f32 %v532, 1.0
    %v534 = vrcp.pop %v533
    %v535 = vmul.f32 1.0, %v534
    %v536 = vtanh.pop %v529
    %538 = vrot.lane.b32.xlu0 %v455, 32
    %v539 = vpop.permute.xlu0 %538
    %v541 = vmul.f32 %v535, %v539
    %543 = vrot.lane.b32.xlu0 %v536, 64
    %v544 = vpop.permute.xlu0 %543
    %v546 = vmul.f32 %v535, %v544
    %548 = vrot.lane.b32.xlu0 %v546, 32
    %v549 = vpop.permute.xlu0 %548
    %v551 = vadd.f32 %v541, %v549
    %v552 = vtanh.pop %v551
    %554 = vrot.lane.b32.xlu0 %v552, 64
    %v555 = vpop.permute.xlu0 %554
    %v557 = vmul.f32 %v535, %v555
    %559 = vrot.lane.b32.xlu0 %v557, 32
    %v560 = vpop.permute.xlu0 %559
    %vm562 = vcmask 254976
    %563 = vst.msk [vmem:[#allocation2] sm:$0x3] %vm562, %v560
    %v564 = vsel %vm372, %v560, 0
    %566 = vmatprep.subr.mxu0 0.0
    %567 = vmatpush1.msra.mxu0 %v357
    %568 = vmatprep.subr.mxu0 0.0
    %569 = vmatpush1.msra.mxu0 %v358
    %570 = vmatprep.subr.mxu0 0.0
    %571 = vmatpush1.msra.mxu0 %v359
    %572 = vmatprep.subr.mxu0 0.0
    %573 = vmatpush1.msra.mxu0 %v360
    %574 = vmatprep.subr.mxu0 0.0
    %575 = vmatpush1.msra.mxu0 0.0
    %576 = vmatprep.subr.mxu0 0.0
    %577 = vmatpush1.msra.mxu0 0.0
    %578 = vmatprep.subr.mxu0 0.0
    %579 = vmatpush1.msra.mxu0 0.0
    %580 = vmatprep.subr.mxu0 0.0
    %581 = vmatpush1.msra.mxu0 0.0
    %582 = vmatprep.subr.mxu0 0.0
    %583 = vmatpush1.msra.mxu0 0.0
    %584 = vmatprep.subr.mxu0 0.0
    %585 = vmatpush1.msra.mxu0 0.0
    %586 = vmatprep.subr.mxu0 0.0
    %587 = vmatpush1.msra.mxu0 0.0
    %588 = vmatprep.subr.mxu0 0.0
    %589 = vmatpush1.msra.mxu0 0.0
    %590 = vmatprep.subr.mxu0 0.0
    %591 = vmatpush1.msra.mxu0 0.0
    %592 = vmatprep.subr.mxu0 0.0
    %593 = vmatpush1.msra.mxu0 0.0
    %594 = vmatprep.subr.mxu0 0.0
    %595 = vmatpush1.msra.mxu0 0.0
    %596 = vmatprep.subr.mxu0 0.0
    %597 = vmatpush1.msra.mxu0 0.0
    %598 = vmatprep.subr.mxu0 0.0
    %599 = vmatpush1.msra.mxu0 0.0
    %600 = vmatprep.subr.mxu0 0.0
    %601 = vmatpush1.msra.mxu0 0.0
    %602 = vmatprep.subr.mxu0 0.0
    %603 = vmatpush1.msra.mxu0 0.0
    %604 = vmatprep.subr.mxu0 0.0
    %605 = vmatpush1.msra.mxu0 0.0
    %606 = vmatprep.subr.mxu0 0.0
    %607 = vmatpush1.msra.mxu0 0.0
    %608 = vmatprep.subr.mxu0 0.0
    %609 = vmatpush1.msra.mxu0 0.0
    %610 = vmatprep.subr.mxu0 0.0
    %611 = vmatpush1.msra.mxu0 0.0
    %612 = vmatprep.subr.mxu0 0.0
    %613 = vmatpush1.msra.mxu0 0.0
    %614 = vmatprep.subr.mxu0 0.0
    %615 = vmatpush1.msra.mxu0 0.0
    %616 = vmatprep.subr.mxu0 0.0
    %617 = vmatpush1.msra.mxu0 0.0
    %618 = vmatprep.subr.mxu0 0.0
    %619 = vmatpush1.msra.mxu0 0.0
    %620 = vmatprep.subr.mxu0 0.0
    %621 = vmatpush1.msra.mxu0 0.0
    %622 = vmatprep.subr.mxu0 0.0
    %623 = vmatpush1.msra.mxu0 0.0
    %624 = vmatprep.subr.mxu0 0.0
    %625 = vmatpush1.msra.mxu0 0.0
    %626 = vmatprep.subr.mxu0 0.0
    %627 = vmatpush1.msra.mxu0 0.0
    %628 = vmatprep.subr.mxu0 0.0
    %629 = vmatpush1.msra.mxu0 0.0
    %630 = vmatprep.mubr.f32.mxu0 0.0
    %631 = vmatmul.mubr.f32.gmra.mrb[0].mxu0 %v564
    %v632 = vpop.f32.mrb[0].mxu0
    %v633 = vadd.f32 0.0, %v632
    %v634 = vpop.f32.mrb[0].mxu0
    %635 = vdwg.mxu0
    %v637 = vrot.slane %v633, 6
    %v639 = vadd.f32 %v446, %v637
    %v640 = vxor.u32 %v639, 2147483648
    %v641 = vmul.f32 %v640, 1.442695
    %v642 = vpow.pop %v641
    %v643 = vadd.f32 %v642, 1.0
    %v644 = vrcp.pop %v643
    %v645 = vmul.f32 1.0, %v644
    %v646 = vtanh.pop %v639
    %v648 = vrot.slane %v551, 6
    %v650 = vmul.f32 %v645, %v648
    %652 = vrot.lane.b32.xlu0 %v646, 64
    %v653 = vpop.permute.xlu0 %652
    %v655 = vmul.f32 %v645, %v653
    %657 = vrot.lane.b32.xlu0 %v655, 32
    %v658 = vpop.permute.xlu0 %657
    %v660 = vadd.f32 %v650, %v658
    %v661 = vtanh.pop %v660
    %663 = vrot.lane.b32.xlu0 %v661, 64
    %v664 = vpop.permute.xlu0 %663
    %v666 = vmul.f32 %v645, %v664
    %668 = vrot.lane.b32.xlu0 %v666, 32
    %v669 = vpop.permute.xlu0 %668
    %vm671 = vcmask 257026
    %672 = vst.msk [vmem:[#allocation2] sm:$0xc] %vm671, %v669
    %v673 = vrot.slane %v666, 2
    %674 = vrot.lane.b32.xlu0 %v673, 32
    %v675 = vpop.permute.xlu0 %674
    %v676 = vsel %vm372, %v675, 0
    %678 = vmatprep.subr.mxu0 0.0
    %679 = vmatpush1.msra.mxu0 %v357
    %680 = vmatprep.subr.mxu0 0.0
    %681 = vmatpush1.msra.mxu0 %v358
    %682 = vmatprep.subr.mxu0 0.0
    %683 = vmatpush1.msra.mxu0 %v359
    %684 = vmatprep.subr.mxu0 0.0
    %685 = vmatpush1.msra.mxu0 %v360
    %686 = vmatprep.subr.mxu0 0.0
    %687 = vmatpush1.msra.mxu0 0.0
    %688 = vmatprep.subr.mxu0 0.0
    %689 = vmatpush1.msra.mxu0 0.0
    %690 = vmatprep.subr.mxu0 0.0
    %691 = vmatpush1.msra.mxu0 0.0
    %692 = vmatprep.subr.mxu0 0.0
    %693 = vmatpush1.msra.mxu0 0.0
    %694 = vmatprep.subr.mxu0 0.0
    %695 = vmatpush1.msra.mxu0 0.0
    %696 = vmatprep.subr.mxu0 0.0
    %697 = vmatpush1.msra.mxu0 0.0
    %698 = vmatprep.subr.mxu0 0.0
    %699 = vmatpush1.msra.mxu0 0.0
    %700 = vmatprep.subr.mxu0 0.0
    %701 = vmatpush1.msra.mxu0 0.0
    %702 = vmatprep.subr.mxu0 0.0
    %703 = vmatpush1.msra.mxu0 0.0
    %704 = vmatprep.subr.mxu0 0.0
    %705 = vmatpush1.msra.mxu0 0.0
    %706 = vmatprep.subr.mxu0 0.0
    %707 = vmatpush1.msra.mxu0 0.0
    %708 = vmatprep.subr.mxu0 0.0
    %709 = vmatpush1.msra.mxu0 0.0
    %710 = vmatprep.subr.mxu0 0.0
    %711 = vmatpush1.msra.mxu0 0.0
    %712 = vmatprep.subr.mxu0 0.0
    %713 = vmatpush1.msra.mxu0 0.0
    %714 = vmatprep.subr.mxu0 0.0
    %715 = vmatpush1.msra.mxu0 0.0
    %716 = vmatprep.subr.mxu0 0.0
    %717 = vmatpush1.msra.mxu0 0.0
    %718 = vmatprep.subr.mxu0 0.0
    %719 = vmatpush1.msra.mxu0 0.0
    %720 = vmatprep.subr.mxu0 0.0
    %721 = vmatpush1.msra.mxu0 0.0
    %722 = vmatprep.subr.mxu0 0.0
    %723 = vmatpush1.msra.mxu0 0.0
    %724 = vmatprep.subr.mxu0 0.0
    %725 = vmatpush1.msra.mxu0 0.0
    %726 = vmatprep.subr.mxu0 0.0
    %727 = vmatpush1.msra.mxu0 0.0
    %728 = vmatprep.subr.mxu0 0.0
    %729 = vmatpush1.msra.mxu0 0.0
    %730 = vmatprep.subr.mxu0 0.0
    %731 = vmatpush1.msra.mxu0 0.0
    %732 = vmatprep.subr.mxu0 0.0
    %733 = vmatpush1.msra.mxu0 0.0
    %734 = vmatprep.subr.mxu0 0.0
    %735 = vmatpush1.msra.mxu0 0.0
    %736 = vmatprep.subr.mxu0 0.0
    %737 = vmatpush1.msra.mxu0 0.0
    %738 = vmatprep.subr.mxu0 0.0
    %739 = vmatpush1.msra.mxu0 0.0
    %740 = vmatprep.subr.mxu0 0.0
    %741 = vmatpush1.msra.mxu0 0.0
    %742 = vmatprep.mubr.f32.mxu0 0.0
    %743 = vmatmul.mubr.f32.gmra.mrb[0].mxu0 %v676
    %v744 = vpop.f32.mrb[0].mxu0
    %v745 = vadd.f32 0.0, %v744
    %v746 = vpop.f32.mrb[0].mxu0
    %747 = vdwg.mxu0
    %v749 = vrot.slane %v745, 4
    %v751 = vadd.f32 %v446, %v749
    %v752 = vxor.u32 %v751, 2147483648
    %v753 = vmul.f32 %v752, 1.442695
    %v754 = vpow.pop %v753
    %v755 = vadd.f32 %v754, 1.0
    %v756 = vrcp.pop %v755
    %v757 = vmul.f32 1.0, %v756
    %v758 = vtanh.pop %v751
    %v760 = vrot.slane %v660, 6
    %v762 = vmul.f32 %v757, %v760
    %764 = vrot.lane.b32.xlu0 %v758, 64
    %v765 = vpop.permute.xlu0 %764
    %v767 = vmul.f32 %v757, %v765
    %769 = vrot.lane.b32.xlu0 %v767, 32
    %v770 = vpop.permute.xlu0 %769
    %v772 = vadd.f32 %v762, %v770
    %v773 = vtanh.pop %v772
    %775 = vrot.lane.b32.xlu0 %v773, 64
    %v776 = vpop.permute.xlu0 %775
    %v778 = vmul.f32 %v757, %v776
    %780 = vrot.lane.b32.xlu0 %v778, 32
    %v781 = vpop.permute.xlu0 %780
    %vm783 = vcmask 259076
    %784 = vst.msk [vmem:[#allocation2] sm:$0x30] %vm783, %v781
    %v785 = vrot.slane %v778, 4
    %786 = vrot.lane.b32.xlu0 %v785, 32
    %v787 = vpop.permute.xlu0 %786
    %v788 = vsel %vm372, %v787, 0
    %790 = vmatprep.subr.mxu0 0.0
    %791 = vmatpush1.msra.mxu0 %v357
    %792 = vmatprep.subr.mxu0 0.0
    %793 = vmatpush1.msra.mxu0 %v358
    %794 = vmatprep.subr.mxu0 0.0
    %795 = vmatpush1.msra.mxu0 %v359
    %796 = vmatprep.subr.mxu0 0.0
    %797 = vmatpush1.msra.mxu0 %v360
    %798 = vmatprep.subr.mxu0 0.0
    %799 = vmatpush1.msra.mxu0 0.0
    %800 = vmatprep.subr.mxu0 0.0
    %801 = vmatpush1.msra.mxu0 0.0
    %802 = vmatprep.subr.mxu0 0.0
    %803 = vmatpush1.msra.mxu0 0.0
    %804 = vmatprep.subr.mxu0 0.0
    %805 = vmatpush1.msra.mxu0 0.0
    %806 = vmatprep.subr.mxu0 0.0
    %807 = vmatpush1.msra.mxu0 0.0
    %808 = vmatprep.subr.mxu0 0.0
    %809 = vmatpush1.msra.mxu0 0.0
    %810 = vmatprep.subr.mxu0 0.0
    %811 = vmatpush1.msra.mxu0 0.0
    %812 = vmatprep.subr.mxu0 0.0
    %813 = vmatpush1.msra.mxu0 0.0
    %814 = vmatprep.subr.mxu0 0.0
    %815 = vmatpush1.msra.mxu0 0.0
    %816 = vmatprep.subr.mxu0 0.0
    %817 = vmatpush1.msra.mxu0 0.0
    %818 = vmatprep.subr.mxu0 0.0
    %819 = vmatpush1.msra.mxu0 0.0
    %820 = vmatprep.subr.mxu0 0.0
    %821 = vmatpush1.msra.mxu0 0.0
    %822 = vmatprep.subr.mxu0 0.0
    %823 = vmatpush1.msra.mxu0 0.0
    %824 = vmatprep.subr.mxu0 0.0
    %825 = vmatpush1.msra.mxu0 0.0
    %826 = vmatprep.subr.mxu0 0.0
    %827 = vmatpush1.msra.mxu0 0.0
    %828 = vmatprep.subr.mxu0 0.0
    %829 = vmatpush1.msra.mxu0 0.0
    %830 = vmatprep.subr.mxu0 0.0
    %831 = vmatpush1.msra.mxu0 0.0
    %832 = vmatprep.subr.mxu0 0.0
    %833 = vmatpush1.msra.mxu0 0.0
    %834 = vmatprep.subr.mxu0 0.0
    %835 = vmatpush1.msra.mxu0 0.0
    %836 = vmatprep.subr.mxu0 0.0
    %837 = vmatpush1.msra.mxu0 0.0
    %838 = vmatprep.subr.mxu0 0.0
    %839 = vmatpush1.msra.mxu0 0.0
    %840 = vmatprep.subr.mxu0 0.0
    %841 = vmatpush1.msra.mxu0 0.0
    %842 = vmatprep.subr.mxu0 0.0
    %843 = vmatpush1.msra.mxu0 0.0
    %844 = vmatprep.subr.mxu0 0.0
    %845 = vmatpush1.msra.mxu0 0.0
    %846 = vmatprep.subr.mxu0 0.0
    %847 = vmatpush1.msra.mxu0 0.0
    %848 = vmatprep.subr.mxu0 0.0
    %849 = vmatpush1.msra.mxu0 0.0
    %850 = vmatprep.subr.mxu0 0.0
    %851 = vmatpush1.msra.mxu0 0.0
    %852 = vmatprep.subr.mxu0 0.0
    %853 = vmatpush1.msra.mxu0 0.0
    %854 = vmatprep.mubr.f32.mxu0 0.0
    %855 = vmatmul.mubr.f32.gmra.mrb[0].mxu0 %v788
    %v856 = vpop.f32.mrb[0].mxu0
    %v857 = vadd.f32 0.0, %v856
    %v858 = vpop.f32.mrb[0].mxu0
    %859 = vdwg.mxu0
    %v861 = vrot.slane %v857, 2
    %v863 = vadd.f32 %v446, %v861
    %v864 = vxor.u32 %v863, 2147483648
    %v865 = vmul.f32 %v864, 1.442695
    %v866 = vpow.pop %v865
    %v867 = vadd.f32 %v866, 1.0
    %v868 = vrcp.pop %v867
    %v869 = vmul.f32 1.0, %v868
    %v870 = vtanh.pop %v863
    %v872 = vrot.slane %v772, 6
    %v874 = vmul.f32 %v869, %v872
    %876 = vrot.lane.b32.xlu0 %v870, 64
    %v877 = vpop.permute.xlu0 %876
    %v879 = vmul.f32 %v869, %v877
    %881 = vrot.lane.b32.xlu0 %v879, 32
    %v882 = vpop.permute.xlu0 %881
    %v884 = vadd.f32 %v874, %v882
    %v885 = vtanh.pop %v884
    %887 = vrot.lane.b32.xlu0 %v885, 64
    %v888 = vpop.permute.xlu0 %887
    %v890 = vmul.f32 %v869, %v888
    %892 = vrot.lane.b32.xlu0 %v890, 32
    %v893 = vpop.permute.xlu0 %892
    %vm895 = vcmask 261126
    %896 = vst.msk [vmem:[#allocation2] sm:$0xc0] %vm895, %v893
    %v897 = vrot.slane %v890, 6
    %898 = vrot.lane.b32.xlu0 %v897, 32
    %v899 = vpop.permute.xlu0 %898
    %v900 = vsel %vm372, %v899, 0
    %902 = vmatprep.subr.mxu0 0.0
    %903 = vmatpush1.msra.mxu0 %v357
    %904 = vmatprep.subr.mxu0 0.0
    %905 = vmatpush1.msra.mxu0 %v358
    %906 = vmatprep.subr.mxu0 0.0
    %907 = vmatpush1.msra.mxu0 %v359
    %908 = vmatprep.subr.mxu0 0.0
    %909 = vmatpush1.msra.mxu0 %v360
    %910 = vmatprep.subr.mxu0 0.0
    %911 = vmatpush1.msra.mxu0 0.0
    %912 = vmatprep.subr.mxu0 0.0
    %913 = vmatpush1.msra.mxu0 0.0
    %914 = vmatprep.subr.mxu0 0.0
    %915 = vmatpush1.msra.mxu0 0.0
    %916 = vmatprep.subr.mxu0 0.0
    %917 = vmatpush1.msra.mxu0 0.0
    %918 = vmatprep.subr.mxu0 0.0
    %919 = vmatpush1.msra.mxu0 0.0
    %920 = vmatprep.subr.mxu0 0.0
    %921 = vmatpush1.msra.mxu0 0.0
    %922 = vmatprep.subr.mxu0 0.0
    %923 = vmatpush1.msra.mxu0 0.0
    %924 = vmatprep.subr.mxu0 0.0
    %925 = vmatpush1.msra.mxu0 0.0
    %926 = vmatprep.subr.mxu0 0.0
    %927 = vmatpush1.msra.mxu0 0.0
    %928 = vmatprep.subr.mxu0 0.0
    %929 = vmatpush1.msra.mxu0 0.0
    %930 = vmatprep.subr.mxu0 0.0
    %931 = vmatpush1.msra.mxu0 0.0
    %932 = vmatprep.subr.mxu0 0.0
    %933 = vmatpush1.msra.mxu0 0.0
    %934 = vmatprep.subr.mxu0 0.0
    %935 = vmatpush1.msra.mxu0 0.0
    %936 = vmatprep.subr.mxu0 0.0
    %937 = vmatpush1.msra.mxu0 0.0
    %938 = vmatprep.subr.mxu0 0.0
    %939 = vmatpush1.msra.mxu0 0.0
    %940 = vmatprep.subr.mxu0 0.0
    %941 = vmatpush1.msra.mxu0 0.0
    %942 = vmatprep.subr.mxu0 0.0
    %943 = vmatpush1.msra.mxu0 0.0
    %944 = vmatprep.subr.mxu0 0.0
    %945 = vmatpush1.msra.mxu0 0.0
    %946 = vmatprep.subr.mxu0 0.0
    %947 = vmatpush1.msra.mxu0 0.0
    %948 = vmatprep.subr.mxu0 0.0
    %949 = vmatpush1.msra.mxu0 0.0
    %950 = vmatprep.subr.mxu0 0.0
    %951 = vmatpush1.msra.mxu0 0.0
    %952 = vmatprep.subr.mxu0 0.0
    %953 = vmatpush1.msra.mxu0 0.0
    %954 = vmatprep.subr.mxu0 0.0
    %955 = vmatpush1.msra.mxu0 0.0
    %956 = vmatprep.subr.mxu0 0.0
    %957 = vmatpush1.msra.mxu0 0.0
    %958 = vmatprep.subr.mxu0 0.0
    %959 = vmatpush1.msra.mxu0 0.0
    %960 = vmatprep.subr.mxu0 0.0
    %961 = vmatpush1.msra.mxu0 0.0
    %962 = vmatprep.subr.mxu0 0.0
    %963 = vmatpush1.msra.mxu0 0.0
    %964 = vmatprep.subr.mxu0 0.0
    %965 = vmatpush1.msra.mxu0 0.0
    %966 = vmatprep.mubr.f32.mxu0 0.0
    %967 = vmatmul.mubr.f32.gmra.mrb[0].mxu0 %v900
    %v968 = vpop.f32.mrb[0].mxu0
    %v969 = vadd.f32 0.0, %v968
    %v970 = vpop.f32.mrb[0].mxu0
    %971 = vdwg.mxu0
    %v972 = vadd.f32 %v451, %v969
    %v973 = vxor.u32 %v972, 2147483648
    %v974 = vmul.f32 %v973, 1.442695
    %v975 = vpow.pop %v974
    %v976 = vadd.f32 %v975, 1.0
    %v977 = vrcp.pop %v976
    %v978 = vmul.f32 1.0, %v977
    %v979 = vtanh.pop %v972
    %v981 = vrot.slane %v884, 6
    %v983 = vmul.f32 %v978, %v981
    %985 = vrot.lane.b32.xlu0 %v979, 64
    %v986 = vpop.permute.xlu0 %985
    %v988 = vmul.f32 %v978, %v986
    %990 = vrot.lane.b32.xlu0 %v988, 32
    %v991 = vpop.permute.xlu0 %990
    %v993 = vadd.f32 %v983, %v991
    %v994 = vtanh.pop %v993
    %996 = vrot.lane.b32.xlu0 %v994, 64
    %v997 = vpop.permute.xlu0 %996
    %v999 = vmul.f32 %v978, %v997
    %1001 = vrot.lane.b32.xlu0 %v999, 32
    %v1002 = vpop.permute.xlu0 %1001
    %1004 = vst.msk [vmem:[#allocation2 + $0x8] sm:$0x3] %vm562, %v1002
    %v1005 = vsel %vm372, %v1002, 0
    %1007 = vmatprep.subr.mxu0 0.0
    %1008 = vmatpush1.msra.mxu0 %v357
    %1009 = vmatprep.subr.mxu0 0.0
    %1010 = vmatpush1.msra.mxu0 %v358
    %1011 = vmatprep.subr.mxu0 0.0
    %1012 = vmatpush1.msra.mxu0 %v359
    %1013 = vmatprep.subr.mxu0 0.0
    %1014 = vmatpush1.msra.mxu0 %v360
    %1015 = vmatprep.subr.mxu0 0.0
    %1016 = vmatpush1.msra.mxu0 0.0
    %1017 = vmatprep.subr.mxu0 0.0
    %1018 = vmatpush1.msra.mxu0 0.0
    %1019 = vmatprep.subr.mxu0 0.0
    %1020 = vmatpush1.msra.mxu0 0.0
    %1021 = vmatprep.subr.mxu0 0.0
    %1022 = vmatpush1.msra.mxu0 0.0
    %1023 = vmatprep.subr.mxu0 0.0
    %1024 = vmatpush1.msra.mxu0 0.0
    %1025 = vmatprep.subr.mxu0 0.0
    %1026 = vmatpush1.msra.mxu0 0.0
    %1027 = vmatprep.subr.mxu0 0.0
    %1028 = vmatpush1.msra.mxu0 0.0
    %1029 = vmatprep.subr.mxu0 0.0
    %1030 = vmatpush1.msra.mxu0 0.0
    %1031 = vmatprep.subr.mxu0 0.0
    %1032 = vmatpush1.msra.mxu0 0.0
    %1033 = vmatprep.subr.mxu0 0.0
    %1034 = vmatpush1.msra.mxu0 0.0
    %1035 = vmatprep.subr.mxu0 0.0
    %1036 = vmatpush1.msra.mxu0 0.0
    %1037 = vmatprep.subr.mxu0 0.0
    %1038 = vmatpush1.msra.mxu0 0.0
    %1039 = vmatprep.subr.mxu0 0.0
    %1040 = vmatpush1.msra.mxu0 0.0
    %1041 = vmatprep.subr.mxu0 0.0
    %1042 = vmatpush1.msra.mxu0 0.0
    %1043 = vmatprep.subr.mxu0 0.0
    %1044 = vmatpush1.msra.mxu0 0.0
    %1045 = vmatprep.subr.mxu0 0.0
    %1046 = vmatpush1.msra.mxu0 0.0
    %1047 = vmatprep.subr.mxu0 0.0
    %1048 = vmatpush1.msra.mxu0 0.0
    %1049 = vmatprep.subr.mxu0 0.0
    %1050 = vmatpush1.msra.mxu0 0.0
    %1051 = vmatprep.subr.mxu0 0.0
    %1052 = vmatpush1.msra.mxu0 0.0
    %1053 = vmatprep.subr.mxu0 0.0
    %1054 = vmatpush1.msra.mxu0 0.0
    %1055 = vmatprep.subr.mxu0 0.0
    %1056 = vmatpush1.msra.mxu0 0.0
    %1057 = vmatprep.subr.mxu0 0.0
    %1058 = vmatpush1.msra.mxu0 0.0
    %1059 = vmatprep.subr.mxu0 0.0
    %1060 = vmatpush1.msra.mxu0 0.0
    %1061 = vmatprep.subr.mxu0 0.0
    %1062 = vmatpush1.msra.mxu0 0.0
    %1063 = vmatprep.subr.mxu0 0.0
    %1064 = vmatpush1.msra.mxu0 0.0
    %1065 = vmatprep.subr.mxu0 0.0
    %1066 = vmatpush1.msra.mxu0 0.0
    %1067 = vmatprep.subr.mxu0 0.0
    %1068 = vmatpush1.msra.mxu0 0.0
    %1069 = vmatprep.subr.mxu0 0.0
    %1070 = vmatpush1.msra.mxu0 0.0
    %1071 = vmatprep.mubr.f32.mxu0 0.0
    %1072 = vmatmul.mubr.f32.gmra.mrb[0].mxu0 %v1005
    %v1073 = vpop.f32.mrb[0].mxu0
    %v1074 = vadd.f32 0.0, %v1073
    %v1075 = vpop.f32.mrb[0].mxu0
    %1076 = vdwg.mxu0
    %v1078 = vrot.slane %v1074, 6
    %v1080 = vadd.f32 %v451, %v1078
    %v1081 = vxor.u32 %v1080, 2147483648
    %v1082 = vmul.f32 %v1081, 1.442695
    %v1083 = vpow.pop %v1082
    %v1084 = vadd.f32 %v1083, 1.0
    %v1085 = vrcp.pop %v1084
    %v1086 = vmul.f32 1.0, %v1085
    %v1087 = vtanh.pop %v1080
    %v1089 = vrot.slane %v993, 6
    %v1091 = vmul.f32 %v1086, %v1089
    %1093 = vrot.lane.b32.xlu0 %v1087, 64
    %v1094 = vpop.permute.xlu0 %1093
    %v1096 = vmul.f32 %v1086, %v1094
    %1098 = vrot.lane.b32.xlu0 %v1096, 32
    %v1099 = vpop.permute.xlu0 %1098
    %v1101 = vadd.f32 %v1091, %v1099
    %v1102 = vtanh.pop %v1101
    %1104 = vrot.lane.b32.xlu0 %v1102, 64
    %v1105 = vpop.permute.xlu0 %1104
    %v1107 = vmul.f32 %v1086, %v1105
    %1109 = vrot.lane.b32.xlu0 %v1107, 32
    %v1110 = vpop.permute.xlu0 %1109
    %1112 = vst.msk [vmem:[#allocation2 + $0x8] sm:$0xc] %vm671, %v1110
    %v1113 = vrot.slane %v1107, 2
    %1114 = vrot.lane.b32.xlu0 %v1113, 32
    %v1115 = vpop.permute.xlu0 %1114
    %v1116 = vsel %vm372, %v1115, 0
    %1118 = vmatprep.subr.mxu0 0.0
    %1119 = vmatpush1.msra.mxu0 %v357
    %1120 = vmatprep.subr.mxu0 0.0
    %1121 = vmatpush1.msra.mxu0 %v358
    %1122 = vmatprep.subr.mxu0 0.0
    %1123 = vmatpush1.msra.mxu0 %v359
    %1124 = vmatprep.subr.mxu0 0.0
    %1125 = vmatpush1.msra.mxu0 %v360
    %1126 = vmatprep.subr.mxu0 0.0
    %1127 = vmatpush1.msra.mxu0 0.0
    %1128 = vmatprep.subr.mxu0 0.0
    %1129 = vmatpush1.msra.mxu0 0.0
    %1130 = vmatprep.subr.mxu0 0.0
    %1131 = vmatpush1.msra.mxu0 0.0
    %1132 = vmatprep.subr.mxu0 0.0
    %1133 = vmatpush1.msra.mxu0 0.0
    %1134 = vmatprep.subr.mxu0 0.0
    %1135 = vmatpush1.msra.mxu0 0.0
    %1136 = vmatprep.subr.mxu0 0.0
    %1137 = vmatpush1.msra.mxu0 0.0
    %1138 = vmatprep.subr.mxu0 0.0
    %1139 = vmatpush1.msra.mxu0 0.0
    %1140 = vmatprep.subr.mxu0 0.0
    %1141 = vmatpush1.msra.mxu0 0.0
    %1142 = vmatprep.subr.mxu0 0.0
    %1143 = vmatpush1.msra.mxu0 0.0
    %1144 = vmatprep.subr.mxu0 0.0
    %1145 = vmatpush1.msra.mxu0 0.0
    %1146 = vmatprep.subr.mxu0 0.0
    %1147 = vmatpush1.msra.mxu0 0.0
    %1148 = vmatprep.subr.mxu0 0.0
    %1149 = vmatpush1.msra.mxu0 0.0
    %1150 = vmatprep.subr.mxu0 0.0
    %1151 = vmatpush1.msra.mxu0 0.0
    %1152 = vmatprep.subr.mxu0 0.0
    %1153 = vmatpush1.msra.mxu0 0.0
    %1154 = vmatprep.subr.mxu0 0.0
    %1155 = vmatpush1.msra.mxu0 0.0
    %1156 = vmatprep.subr.mxu0 0.0
    %1157 = vmatpush1.msra.mxu0 0.0
    %1158 = vmatprep.subr.mxu0 0.0
    %1159 = vmatpush1.msra.mxu0 0.0
    %1160 = vmatprep.subr.mxu0 0.0
    %1161 = vmatpush1.msra.mxu0 0.0
    %1162 = vmatprep.subr.mxu0 0.0
    %1163 = vmatpush1.msra.mxu0 0.0
    %1164 = vmatprep.subr.mxu0 0.0
    %1165 = vmatpush1.msra.mxu0 0.0
    %1166 = vmatprep.subr.mxu0 0.0
    %1167 = vmatpush1.msra.mxu0 0.0
    %1168 = vmatprep.subr.mxu0 0.0
    %1169 = vmatpush1.msra.mxu0 0.0
    %1170 = vmatprep.subr.mxu0 0.0
    %1171 = vmatpush1.msra.mxu0 0.0
    %1172 = vmatprep.subr.mxu0 0.0
    %1173 = vmatpush1.msra.mxu0 0.0
    %1174 = vmatprep.subr.mxu0 0.0
    %1175 = vmatpush1.msra.mxu0 0.0
    %1176 = vmatprep.subr.mxu0 0.0
    %1177 = vmatpush1.msra.mxu0 0.0
    %1178 = vmatprep.subr.mxu0 0.0
    %1179 = vmatpush1.msra.mxu0 0.0
    %1180 = vmatprep.subr.mxu0 0.0
    %1181 = vmatpush1.msra.mxu0 0.0
    %1182 = vmatprep.mubr.f32.mxu0 0.0
    %1183 = vmatmul.mubr.f32.gmra.mrb[0].mxu0 %v1116
    %v1184 = vpop.f32.mrb[0].mxu0
    %v1185 = vadd.f32 0.0, %v1184
    %v1186 = vpop.f32.mrb[0].mxu0
    %1187 = vdwg.mxu0
    %v1189 = vrot.slane %v1185, 4
    %v1191 = vadd.f32 %v451, %v1189
    %v1192 = vxor.u32 %v1191, 2147483648
    %v1193 = vmul.f32 %v1192, 1.442695
    %v1194 = vpow.pop %v1193
    %v1195 = vadd.f32 %v1194, 1.0
    %v1196 = vrcp.pop %v1195
    %v1197 = vmul.f32 1.0, %v1196
    %v1198 = vtanh.pop %v1191
    %v1200 = vrot.slane %v1101, 6
    %v1202 = vmul.f32 %v1197, %v1200
    %1204 = vrot.lane.b32.xlu0 %v1198, 64
    %v1205 = vpop.permute.xlu0 %1204
    %v1207 = vmul.f32 %v1197, %v1205
    %1209 = vrot.lane.b32.xlu0 %v1207, 32
    %v1210 = vpop.permute.xlu0 %1209
    %v1212 = vadd.f32 %v1202, %v1210
    %v1213 = vtanh.pop %v1212
    %1215 = vrot.lane.b32.xlu0 %v1213, 64
    %v1216 = vpop.permute.xlu0 %1215
    %v1218 = vmul.f32 %v1197, %v1216
    %1220 = vrot.lane.b32.xlu0 %v1218, 32
    %v1221 = vpop.permute.xlu0 %1220
    %1223 = vst.msk [vmem:[#allocation2 + $0x8] sm:$0x30] %vm783, %v1221
    %v1224 = vrot.slane %v1218, 4
    %1225 = vrot.lane.b32.xlu0 %v1224, 32
    %v1226 = vpop.permute.xlu0 %1225
    %v1227 = vsel %vm372, %v1226, 0
    %1229 = vmatprep.subr.mxu0 0.0
    %1230 = vmatpush1.msra.mxu0 %v357
    %1231 = vmatprep.subr.mxu0 0.0
    %1232 = vmatpush1.msra.mxu0 %v358
    %1233 = vmatprep.subr.mxu0 0.0
    %1234 = vmatpush1.msra.mxu0 %v359
    %1235 = vmatprep.subr.mxu0 0.0
    %1236 = vmatpush1.msra.mxu0 %v360
    %1237 = vmatprep.subr.mxu0 0.0
    %1238 = vmatpush1.msra.mxu0 0.0
    %1239 = vmatprep.subr.mxu0 0.0
    %1240 = vmatpush1.msra.mxu0 0.0
    %1241 = vmatprep.subr.mxu0 0.0
    %1242 = vmatpush1.msra.mxu0 0.0
    %1243 = vmatprep.subr.mxu0 0.0
    %1244 = vmatpush1.msra.mxu0 0.0
    %1245 = vmatprep.subr.mxu0 0.0
    %1246 = vmatpush1.msra.mxu0 0.0
    %1247 = vmatprep.subr.mxu0 0.0
    %1248 = vmatpush1.msra.mxu0 0.0
    %1249 = vmatprep.subr.mxu0 0.0
    %1250 = vmatpush1.msra.mxu0 0.0
    %1251 = vmatprep.subr.mxu0 0.0
    %1252 = vmatpush1.msra.mxu0 0.0
    %1253 = vmatprep.subr.mxu0 0.0
    %1254 = vmatpush1.msra.mxu0 0.0
    %1255 = vmatprep.subr.mxu0 0.0
    %1256 = vmatpush1.msra.mxu0 0.0
    %1257 = vmatprep.subr.mxu0 0.0
    %1258 = vmatpush1.msra.mxu0 0.0
    %1259 = vmatprep.subr.mxu0 0.0
    %1260 = vmatpush1.msra.mxu0 0.0
    %1261 = vmatprep.subr.mxu0 0.0
    %1262 = vmatpush1.msra.mxu0 0.0
    %1263 = vmatprep.subr.mxu0 0.0
    %1264 = vmatpush1.msra.mxu0 0.0
    %1265 = vmatprep.subr.mxu0 0.0
    %1266 = vmatpush1.msra.mxu0 0.0
    %1267 = vmatprep.subr.mxu0 0.0
    %1268 = vmatpush1.msra.mxu0 0.0
    %1269 = vmatprep.subr.mxu0 0.0
    %1270 = vmatpush1.msra.mxu0 0.0
    %1271 = vmatprep.subr.mxu0 0.0
    %1272 = vmatpush1.msra.mxu0 0.0
    %1273 = vmatprep.subr.mxu0 0.0
    %1274 = vmatpush1.msra.mxu0 0.0
    %1275 = vmatprep.subr.mxu0 0.0
    %1276 = vmatpush1.msra.mxu0 0.0
    %1277 = vmatprep.subr.mxu0 0.0
    %1278 = vmatpush1.msra.mxu0 0.0
    %1279 = vmatprep.subr.mxu0 0.0
    %1280 = vmatpush1.msra.mxu0 0.0
    %1281 = vmatprep.subr.mxu0 0.0
    %1282 = vmatpush1.msra.mxu0 0.0
    %1283 = vmatprep.subr.mxu0 0.0
    %1284 = vmatpush1.msra.mxu0 0.0
    %1285 = vmatprep.subr.mxu0 0.0
    %1286 = vmatpush1.msra.mxu0 0.0
    %1287 = vmatprep.subr.mxu0 0.0
    %1288 = vmatpush1.msra.mxu0 0.0
    %1289 = vmatprep.subr.mxu0 0.0
    %1290 = vmatpush1.msra.mxu0 0.0
    %1291 = vmatprep.subr.mxu0 0.0
    %1292 = vmatpush1.msra.mxu0 0.0
    %1293 = vmatprep.mubr.f32.mxu0 0.0
    %1294 = vmatmul.mubr.f32.gmra.mrb[0].mxu0 %v1227
    %v1295 = vpop.f32.mrb[0].mxu0
    %v1296 = vadd.f32 0.0, %v1295
    %v1297 = vpop.f32.mrb[0].mxu0
    %1298 = vdwg.mxu0
    %v1300 = vrot.slane %v1296, 2
    %v1302 = vadd.f32 %v451, %v1300
    %v1303 = vxor.u32 %v1302, 2147483648
    %v1304 = vmul.f32 %v1303, 1.442695
    %v1305 = vpow.pop %v1304
    %v1306 = vadd.f32 %v1305, 1.0
    %v1307 = vrcp.pop %v1306
    %v1308 = vmul.f32 1.0, %v1307
    %v1309 = vtanh.pop %v1302
    %v1311 = vrot.slane %v1212, 6
    %v1313 = vmul.f32 %v1308, %v1311
    %1315 = vrot.lane.b32.xlu0 %v1309, 64
    %v1316 = vpop.permute.xlu0 %1315
    %v1318 = vmul.f32 %v1308, %v1316
    %1320 = vrot.lane.b32.xlu0 %v1318, 32
    %v1321 = vpop.permute.xlu0 %1320
    %v1323 = vadd.f32 %v1313, %v1321
    %v1324 = vtanh.pop %v1323
    %1326 = vrot.lane.b32.xlu0 %v1324, 64
    %v1327 = vpop.permute.xlu0 %1326
    %v1329 = vmul.f32 %v1308, %v1327
    %1331 = vrot.lane.b32.xlu0 %v1329, 32
    %v1332 = vpop.permute.xlu0 %1331
    %1334 = vst.msk [vmem:[#allocation2 + $0x8] sm:$0xc0] %vm895, %v1332
    %1335 = vst.msk [vmem:[#allocation6 - $0x6] sm:$0xc0] %vm895, %v1332
    %1337 = vrot.lane.b32.xlu0 %v1323, 96
    %v1338 = vpop.permute.xlu0 %1337
    %1340 = vst.msk [vmem:[#allocation8 - $0x6] sm:$0xc0] %vm895, %v1338
    %v1341 = vld [vmem:[#allocation2] sm:$0xff]
    %v1342 = vld [vmem:[#allocation2 + $0x8] sm:$0xff]
    %v1343 = vld [vmem:[%s10] sm:$0xff]
    %v1344 = vld [vmem:[%s10 + $0x8] sm:$0xff]
    %v1345 = vld [vmem:[%s10 + $0x10] sm:$0xff]
    %v1346 = vld [vmem:[%s10 + $0x18] sm:$0xff]
    %v1347 = vld [vmem:[%s9] sm:$0xff]
    %v1348 = vld [vmem:[%s9 + $0x8] sm:$0xff]
    %v1349 = vld [vmem:[%s9 + $0x10] sm:$0xff]
    %v1350 = vld [vmem:[%s9 + $0x18] sm:$0xff]
    %v1351 = vld [vmem:[%s11] sm:$0x1]
    %v1353 = vlaneseq
    %v1354 = vshrl.u32 %v1353, 7
    %v1355 = vsub.s32 0, %v1354
    %v1356 = vrot.slane %v1351, %v1355
    %v1359 = vsel %vm372, %v1341, 0
    %v1362 = vsel %vm372, %v1342, 0
    %1364 = vmatprep.subr.mxu0 0.0
    %1365 = vmatpush1.msra.mxu0 %v1347
    %1366 = vmatprep.subr.mxu0 0.0
    %1367 = vmatpush1.msra.mxu0 %v1348
    %1368 = vmatprep.subr.mxu0 0.0
    %1369 = vmatpush1.msra.mxu0 %v1349
    %1370 = vmatprep.subr.mxu0 0.0
    %1371 = vmatpush1.msra.mxu0 %v1350
    %1372 = vmatprep.subr.mxu0 0.0
    %1373 = vmatpush1.msra.mxu0 0.0
    %1374 = vmatprep.subr.mxu0 0.0
    %1375 = vmatpush1.msra.mxu0 0.0
    %1376 = vmatprep.subr.mxu0 0.0
    %1377 = vmatpush1.msra.mxu0 0.0
    %1378 = vmatprep.subr.mxu0 0.0
    %1379 = vmatpush1.msra.mxu0 0.0
    %1380 = vmatprep.subr.mxu0 0.0
    %1381 = vmatpush1.msra.mxu0 0.0
    %1382 = vmatprep.subr.mxu0 0.0
    %1383 = vmatpush1.msra.mxu0 0.0
    %1384 = vmatprep.subr.mxu0 0.0
    %1385 = vmatpush1.msra.mxu0 0.0
    %1386 = vmatprep.subr.mxu0 0.0
    %1387 = vmatpush1.msra.mxu0 0.0
    %1388 = vmatprep.subr.mxu0 0.0
    %1389 = vmatpush1.msra.mxu0 0.0
    %1390 = vmatprep.subr.mxu0 0.0
    %1391 = vmatpush1.msra.mxu0 0.0
    %1392 = vmatprep.subr.mxu0 0.0
    %1393 = vmatpush1.msra.mxu0 0.0
    %1394 = vmatprep.subr.mxu0 0.0
    %1395 = vmatpush1.msra.mxu0 0.0
    %1396 = vmatprep.subr.mxu0 0.0
    %1397 = vmatpush1.msra.mxu0 0.0
    %1398 = vmatprep.subr.mxu0 0.0
    %1399 = vmatpush1.msra.mxu0 0.0
    %1400 = vmatprep.subr.mxu0 0.0
    %1401 = vmatpush1.msra.mxu0 0.0
    %1402 = vmatprep.subr.mxu0 0.0
    %1403 = vmatpush1.msra.mxu0 0.0
    %1404 = vmatprep.subr.mxu0 0.0
    %1405 = vmatpush1.msra.mxu0 0.0
    %1406 = vmatprep.subr.mxu0 0.0
    %1407 = vmatpush1.msra.mxu0 0.0
    %1408 = vmatprep.subr.mxu0 0.0
    %1409 = vmatpush1.msra.mxu0 0.0
    %1410 = vmatprep.subr.mxu0 0.0
    %1411 = vmatpush1.msra.mxu0 0.0
    %1412 = vmatprep.subr.mxu0 0.0
    %1413 = vmatpush1.msra.mxu0 0.0
    %1414 = vmatprep.subr.mxu0 0.0
    %1415 = vmatpush1.msra.mxu0 0.0
    %1416 = vmatprep.subr.mxu0 0.0
    %1417 = vmatpush1.msra.mxu0 0.0
    %1418 = vmatprep.subr.mxu0 0.0
    %1419 = vmatpush1.msra.mxu0 0.0
    %1420 = vmatprep.subr.mxu0 0.0
    %1421 = vmatpush1.msra.mxu0 0.0
    %1422 = vmatprep.subr.mxu0 0.0
    %1423 = vmatpush1.msra.mxu0 0.0
    %1424 = vmatprep.subr.mxu0 0.0
    %1425 = vmatpush1.msra.mxu0 0.0
    %1426 = vmatprep.subr.mxu0 0.0
    %1427 = vmatpush1.msra.mxu0 0.0
    %1428 = vmatprep.mubr.f32.mxu0 0.0
    %1429 = vmatmul.mubr.f32.gmra.mrb[0].mxu0 %v1359
    %v1430 = vpop.f32.mrb[0].mxu0
    %v1431 = vadd.f32 %v1356, %v1430
    %v1432 = vpop.f32.mrb[0].mxu0
    %1433 = vmatprep.mubr.f32.mxu0 0.0
    %1434 = vmatmul.mubr.f32.gmra.mrb[0].mxu0 %v1362
    %v1435 = vpop.f32.mrb[0].mxu0
    %v1436 = vadd.f32 %v1356, %v1435
    %v1437 = vpop.f32.mrb[0].mxu0
    %1438 = vdwg.mxu0
    %s1439 = scalar_lea.vmem %s12, 2
    %v1440 = vld [vmem:[%s1439] sm:$0x3]
    %s1441 = scalar_lea.vmem %s13, 2
    %v1442 = vld [vmem:[%s1441] sm:$0x3]
    %v1444 = vsel %vm372, %v1440, 0
    %1446 = vmatprep.subr.mxu0 0.0
    %1447 = vmatpush1.msra.mxu0 %v1343
    %1448 = vmatprep.subr.mxu0 0.0
    %1449 = vmatpush1.msra.mxu0 %v1344
    %1450 = vmatprep.subr.mxu0 0.0
    %1451 = vmatpush1.msra.mxu0 %v1345
    %1452 = vmatprep.subr.mxu0 0.0
    %1453 = vmatpush1.msra.mxu0 %v1346
    %1454 = vmatprep.subr.mxu0 0.0
    %1455 = vmatpush1.msra.mxu0 0.0
    %1456 = vmatprep.subr.mxu0 0.0
    %1457 = vmatpush1.msra.mxu0 0.0
    %1458 = vmatprep.subr.mxu0 0.0
    %1459 = vmatpush1.msra.mxu0 0.0
    %1460 = vmatprep.subr.mxu0 0.0
    %1461 = vmatpush1.msra.mxu0 0.0
    %1462 = vmatprep.subr.mxu0 0.0
    %1463 = vmatpush1.msra.mxu0 0.0
    %1464 = vmatprep.subr.mxu0 0.0
    %1465 = vmatpush1.msra.mxu0 0.0
    %1466 = vmatprep.subr.mxu0 0.0
    %1467 = vmatpush1.msra.mxu0 0.0
    %1468 = vmatprep.subr.mxu0 0.0
    %1469 = vmatpush1.msra.mxu0 0.0
    %1470 = vmatprep.subr.mxu0 0.0
    %1471 = vmatpush1.msra.mxu0 0.0
    %1472 = vmatprep.subr.mxu0 0.0
    %1473 = vmatpush1.msra.mxu0 0.0
    %1474 = vmatprep.subr.mxu0 0.0
    %1475 = vmatpush1.msra.mxu0 0.0
    %1476 = vmatprep.subr.mxu0 0.0
    %1477 = vmatpush1.msra.mxu0 0.0
    %1478 = vmatprep.subr.mxu0 0.0
    %1479 = vmatpush1.msra.mxu0 0.0
    %1480 = vmatprep.subr.mxu0 0.0
    %1481 = vmatpush1.msra.mxu0 0.0
    %1482 = vmatprep.subr.mxu0 0.0
    %1483 = vmatpush1.msra.mxu0 0.0
    %1484 = vmatprep.subr.mxu0 0.0
    %1485 = vmatpush1.msra.mxu0 0.0
    %1486 = vmatprep.subr.mxu0 0.0
    %1487 = vmatpush1.msra.mxu0 0.0
    %1488 = vmatprep.subr.mxu0 0.0
    %1489 = vmatpush1.msra.mxu0 0.0
    %1490 = vmatprep.subr.mxu0 0.0
    %1491 = vmatpush1.msra.mxu0 0.0
    %1492 = vmatprep.subr.mxu0 0.0
    %1493 = vmatpush1.msra.mxu0 0.0
    %1494 = vmatprep.subr.mxu0 0.0
    %1495 = vmatpush1.msra.mxu0 0.0
    %1496 = vmatprep.subr.mxu0 0.0
    %1497 = vmatpush1.msra.mxu0 0.0
    %1498 = vmatprep.subr.mxu0 0.0
    %1499 = vmatpush1.msra.mxu0 0.0
    %1500 = vmatprep.subr.mxu0 0.0
    %1501 = vmatpush1.msra.mxu0 0.0
    %1502 = vmatprep.subr.mxu0 0.0
    %1503 = vmatpush1.msra.mxu0 0.0
    %1504 = vmatprep.subr.mxu0 0.0
    %1505 = vmatpush1.msra.mxu0 0.0
    %1506 = vmatprep.subr.mxu0 0.0
    %1507 = vmatpush1.msra.mxu0 0.0
    %1508 = vmatprep.subr.mxu0 0.0
    %1509 = vmatpush1.msra.mxu0 0.0
    %1510 = vmatprep.mubr.f32.mxu0 0.0
    %1511 = vmatmul.mubr.f32.gmra.mrb[0].mxu0 %v1444
    %v1512 = vpop.f32.mrb[0].mxu0
    %v1513 = vadd.f32 0.0, %v1512
    %v1514 = vpop.f32.mrb[0].mxu0
    %1515 = vdwg.mxu0
    %v1516 = vadd.f32 %v1431, %v1513
    %v1517 = vxor.u32 %v1516, 2147483648
    %v1518 = vmul.f32 %v1517, 1.442695
    %v1519 = vpow.pop %v1518
    %v1520 = vadd.f32 %v1519, 1.0
    %v1521 = vrcp.pop %v1520
    %v1522 = vmul.f32 1.0, %v1521
    %v1523 = vtanh.pop %v1516
    %1525 = vrot.lane.b32.xlu0 %v1442, 32
    %v1526 = vpop.permute.xlu0 %1525
    %v1528 = vmul.f32 %v1522, %v1526
    %1530 = vrot.lane.b32.xlu0 %v1523, 64
    %v1531 = vpop.permute.xlu0 %1530
    %v1533 = vmul.f32 %v1522, %v1531
    %1535 = vrot.lane.b32.xlu0 %v1533, 32
    %v1536 = vpop.permute.xlu0 %1535
    %v1538 = vadd.f32 %v1528, %v1536
    %v1539 = vtanh.pop %v1538
    %1541 = vrot.lane.b32.xlu0 %v1539, 64
    %v1542 = vpop.permute.xlu0 %1541
    %v1544 = vmul.f32 %v1522, %v1542
    %1546 = vrot.lane.b32.xlu0 %v1544, 32
    %v1547 = vpop.permute.xlu0 %1546
    %1549 = vst.msk [vmem:[#allocation3] sm:$0x3] %vm562, %v1547
    %v1550 = vsel %vm372, %v1547, 0
    %1552 = vmatprep.subr.mxu0 0.0
    %1553 = vmatpush1.msra.mxu0 %v1343
    %1554 = vmatprep.subr.mxu0 0.0
    %1555 = vmatpush1.msra.mxu0 %v1344
    %1556 = vmatprep.subr.mxu0 0.0
    %1557 = vmatpush1.msra.mxu0 %v1345
    %1558 = vmatprep.subr.mxu0 0.0
    %1559 = vmatpush1.msra.mxu0 %v1346
    %1560 = vmatprep.subr.mxu0 0.0
    %1561 = vmatpush1.msra.mxu0 0.0
    %1562 = vmatprep.subr.mxu0 0.0
    %1563 = vmatpush1.msra.mxu0 0.0
    %1564 = vmatprep.subr.mxu0 0.0
    %1565 = vmatpush1.msra.mxu0 0.0
    %1566 = vmatprep.subr.mxu0 0.0
    %1567 = vmatpush1.msra.mxu0 0.0
    %1568 = vmatprep.subr.mxu0 0.0
    %1569 = vmatpush1.msra.mxu0 0.0
    %1570 = vmatprep.subr.mxu0 0.0
    %1571 = vmatpush1.msra.mxu0 0.0
    %1572 = vmatprep.subr.mxu0 0.0
    %1573 = vmatpush1.msra.mxu0 0.0
    %1574 = vmatprep.subr.mxu0 0.0
    %1575 = vmatpush1.msra.mxu0 0.0
    %1576 = vmatprep.subr.mxu0 0.0
    %1577 = vmatpush1.msra.mxu0 0.0
    %1578 = vmatprep.subr.mxu0 0.0
    %1579 = vmatpush1.msra.mxu0 0.0
    %1580 = vmatprep.subr.mxu0 0.0
    %1581 = vmatpush1.msra.mxu0 0.0
    %1582 = vmatprep.subr.mxu0 0.0
    %1583 = vmatpush1.msra.mxu0 0.0
    %1584 = vmatprep.subr.mxu0 0.0
    %1585 = vmatpush1.msra.mxu0 0.0
    %1586 = vmatprep.subr.mxu0 0.0
    %1587 = vmatpush1.msra.mxu0 0.0
    %1588 = vmatprep.subr.mxu0 0.0
    %1589 = vmatpush1.msra.mxu0 0.0
    %1590 = vmatprep.subr.mxu0 0.0
    %1591 = vmatpush1.msra.mxu0 0.0
    %1592 = vmatprep.subr.mxu0 0.0
    %1593 = vmatpush1.msra.mxu0 0.0
    %1594 = vmatprep.subr.mxu0 0.0
    %1595 = vmatpush1.msra.mxu0 0.0
    %1596 = vmatprep.subr.mxu0 0.0
    %1597 = vmatpush1.msra.mxu0 0.0
    %1598 = vmatprep.subr.mxu0 0.0
    %1599 = vmatpush1.msra.mxu0 0.0
    %1600 = vmatprep.subr.mxu0 0.0
    %1601 = vmatpush1.msra.mxu0 0.0
    %1602 = vmatprep.subr.mxu0 0.0
    %1603 = vmatpush1.msra.mxu0 0.0
    %1604 = vmatprep.subr.mxu0 0.0
    %1605 = vmatpush1.msra.mxu0 0.0
    %1606 = vmatprep.subr.mxu0 0.0
    %1607 = vmatpush1.msra.mxu0 0.0
    %1608 = vmatprep.subr.mxu0 0.0
    %1609 = vmatpush1.msra.mxu0 0.0
    %1610 = vmatprep.subr.mxu0 0.0
    %1611 = vmatpush1.msra.mxu0 0.0
    %1612 = vmatprep.subr.mxu0 0.0
    %1613 = vmatpush1.msra.mxu0 0.0
    %1614 = vmatprep.subr.mxu0 0.0
    %1615 = vmatpush1.msra.mxu0 0.0
    %1616 = vmatprep.mubr.f32.mxu0 0.0
    %1617 = vmatmul.mubr.f32.gmra.mrb[0].mxu0 %v1550
    %v1618 = vpop.f32.mrb[0].mxu0
    %v1619 = vadd.f32 0.0, %v1618
    %v1620 = vpop.f32.mrb[0].mxu0
    %1621 = vdwg.mxu0
    %v1623 = vrot.slane %v1619, 6
    %v1625 = vadd.f32 %v1431, %v1623
    %v1626 = vxor.u32 %v1625, 2147483648
    %v1627 = vmul.f32 %v1626, 1.442695
    %v1628 = vpow.pop %v1627
    %v1629 = vadd.f32 %v1628, 1.0
    %v1630 = vrcp.pop %v1629
    %v1631 = vmul.f32 1.0, %v1630
    %v1632 = vtanh.pop %v1625
    %v1634 = vrot.slane %v1538, 6
    %v1636 = vmul.f32 %v1631, %v1634
    %1638 = vrot.lane.b32.xlu0 %v1632, 64
    %v1639 = vpop.permute.xlu0 %1638
    %v1641 = vmul.f32 %v1631, %v1639
    %1643 = vrot.lane.b32.xlu0 %v1641, 32
    %v1644 = vpop.permute.xlu0 %1643
    %v1646 = vadd.f32 %v1636, %v1644
    %v1647 = vtanh.pop %v1646
    %1649 = vrot.lane.b32.xlu0 %v1647, 64
    %v1650 = vpop.permute.xlu0 %1649
    %v1652 = vmul.f32 %v1631, %v1650
    %1654 = vrot.lane.b32.xlu0 %v1652, 32
    %v1655 = vpop.permute.xlu0 %1654
    %1657 = vst.msk [vmem:[#allocation3] sm:$0xc] %vm671, %v1655
    %v1658 = vrot.slane %v1652, 2
    %1659 = vrot.lane.b32.xlu0 %v1658, 32
    %v1660 = vpop.permute.xlu0 %1659
    %v1661 = vsel %vm372, %v1660, 0
    %1663 = vmatprep.subr.mxu0 0.0
    %1664 = vmatpush1.msra.mxu0 %v1343
    %1665 = vmatprep.subr.mxu0 0.0
    %1666 = vmatpush1.msra.mxu0 %v1344
    %1667 = vmatprep.subr.mxu0 0.0
    %1668 = vmatpush1.msra.mxu0 %v1345
    %1669 = vmatprep.subr.mxu0 0.0
    %1670 = vmatpush1.msra.mxu0 %v1346
    %1671 = vmatprep.subr.mxu0 0.0
    %1672 = vmatpush1.msra.mxu0 0.0
    %1673 = vmatprep.subr.mxu0 0.0
    %1674 = vmatpush1.msra.mxu0 0.0
    %1675 = vmatprep.subr.mxu0 0.0
    %1676 = vmatpush1.msra.mxu0 0.0
    %1677 = vmatprep.subr.mxu0 0.0
    %1678 = vmatpush1.msra.mxu0 0.0
    %1679 = vmatprep.subr.mxu0 0.0
    %1680 = vmatpush1.msra.mxu0 0.0
    %1681 = vmatprep.subr.mxu0 0.0
    %1682 = vmatpush1.msra.mxu0 0.0
    %1683 = vmatprep.subr.mxu0 0.0
    %1684 = vmatpush1.msra.mxu0 0.0
    %1685 = vmatprep.subr.mxu0 0.0
    %1686 = vmatpush1.msra.mxu0 0.0
    %1687 = vmatprep.subr.mxu0 0.0
    %1688 = vmatpush1.msra.mxu0 0.0
    %1689 = vmatprep.subr.mxu0 0.0
    %1690 = vmatpush1.msra.mxu0 0.0
    %1691 = vmatprep.subr.mxu0 0.0
    %1692 = vmatpush1.msra.mxu0 0.0
    %1693 = vmatprep.subr.mxu0 0.0
    %1694 = vmatpush1.msra.mxu0 0.0
    %1695 = vmatprep.subr.mxu0 0.0
    %1696 = vmatpush1.msra.mxu0 0.0
    %1697 = vmatprep.subr.mxu0 0.0
    %1698 = vmatpush1.msra.mxu0 0.0
    %1699 = vmatprep.subr.mxu0 0.0
    %1700 = vmatpush1.msra.mxu0 0.0
    %1701 = vmatprep.subr.mxu0 0.0
    %1702 = vmatpush1.msra.mxu0 0.0
    %1703 = vmatprep.subr.mxu0 0.0
    %1704 = vmatpush1.msra.mxu0 0.0
    %1705 = vmatprep.subr.mxu0 0.0
    %1706 = vmatpush1.msra.mxu0 0.0
    %1707 = vmatprep.subr.mxu0 0.0
    %1708 = vmatpush1.msra.mxu0 0.0
    %1709 = vmatprep.subr.mxu0 0.0
    %1710 = vmatpush1.msra.mxu0 0.0
    %1711 = vmatprep.subr.mxu0 0.0
    %1712 = vmatpush1.msra.mxu0 0.0
    %1713 = vmatprep.subr.mxu0 0.0
    %1714 = vmatpush1.msra.mxu0 0.0
    %1715 = vmatprep.subr.mxu0 0.0
    %1716 = vmatpush1.msra.mxu0 0.0
    %1717 = vmatprep.subr.mxu0 0.0
    %1718 = vmatpush1.msra.mxu0 0.0
    %1719 = vmatprep.subr.mxu0 0.0
    %1720 = vmatpush1.msra.mxu0 0.0
    %1721 = vmatprep.subr.mxu0 0.0
    %1722 = vmatpush1.msra.mxu0 0.0
    %1723 = vmatprep.subr.mxu0 0.0
    %1724 = vmatpush1.msra.mxu0 0.0
    %1725 = vmatprep.subr.mxu0 0.0
    %1726 = vmatpush1.msra.mxu0 0.0
    %1727 = vmatprep.mubr.f32.mxu0 0.0
    %1728 = vmatmul.mubr.f32.gmra.mrb[0].mxu0 %v1661
    %v1729 = vpop.f32.mrb[0].mxu0
    %v1730 = vadd.f32 0.0, %v1729
    %v1731 = vpop.f32.mrb[0].mxu0
    %1732 = vdwg.mxu0
    %v1734 = vrot.slane %v1730, 4
    %v1736 = vadd.f32 %v1431, %v1734
    %v1737 = vxor.u32 %v1736, 2147483648
    %v1738 = vmul.f32 %v1737, 1.442695
    %v1739 = vpow.pop %v1738
    %v1740 = vadd.f32 %v1739, 1.0
    %v1741 = vrcp.pop %v1740
    %v1742 = vmul.f32 1.0, %v1741
    %v1743 = vtanh.pop %v1736
    %v1745 = vrot.slane %v1646, 6
    %v1747 = vmul.f32 %v1742, %v1745
    %1749 = vrot.lane.b32.xlu0 %v1743, 64
    %v1750 = vpop.permute.xlu0 %1749
    %v1752 = vmul.f32 %v1742, %v1750
    %1754 = vrot.lane.b32.xlu0 %v1752, 32
    %v1755 = vpop.permute.xlu0 %1754
    %v1757 = vadd.f32 %v1747, %v1755
    %v1758 = vtanh.pop %v1757
    %1760 = vrot.lane.b32.xlu0 %v1758, 64
    %v1761 = vpop.permute.xlu0 %1760
    %v1763 = vmul.f32 %v1742, %v1761
    %1765 = vrot.lane.b32.xlu0 %v1763, 32
    %v1766 = vpop.permute.xlu0 %1765
    %1768 = vst.msk [vmem:[#allocation3] sm:$0x30] %vm783, %v1766
    %v1769 = vrot.slane %v1763, 4
    %1770 = vrot.lane.b32.xlu0 %v1769, 32
    %v1771 = vpop.permute.xlu0 %1770
    %v1772 = vsel %vm372, %v1771, 0
    %1774 = vmatprep.subr.mxu0 0.0
    %1775 = vmatpush1.msra.mxu0 %v1343
    %1776 = vmatprep.subr.mxu0 0.0
    %1777 = vmatpush1.msra.mxu0 %v1344
    %1778 = vmatprep.subr.mxu0 0.0
    %1779 = vmatpush1.msra.mxu0 %v1345
    %1780 = vmatprep.subr.mxu0 0.0
    %1781 = vmatpush1.msra.mxu0 %v1346
    %1782 = vmatprep.subr.mxu0 0.0
    %1783 = vmatpush1.msra.mxu0 0.0
    %1784 = vmatprep.subr.mxu0 0.0
    %1785 = vmatpush1.msra.mxu0 0.0
    %1786 = vmatprep.subr.mxu0 0.0
    %1787 = vmatpush1.msra.mxu0 0.0
    %1788 = vmatprep.subr.mxu0 0.0
    %1789 = vmatpush1.msra.mxu0 0.0
    %1790 = vmatprep.subr.mxu0 0.0
    %1791 = vmatpush1.msra.mxu0 0.0
    %1792 = vmatprep.subr.mxu0 0.0
    %1793 = vmatpush1.msra.mxu0 0.0
    %1794 = vmatprep.subr.mxu0 0.0
    %1795 = vmatpush1.msra.mxu0 0.0
    %1796 = vmatprep.subr.mxu0 0.0
    %1797 = vmatpush1.msra.mxu0 0.0
    %1798 = vmatprep.subr.mxu0 0.0
    %1799 = vmatpush1.msra.mxu0 0.0
    %1800 = vmatprep.subr.mxu0 0.0
    %1801 = vmatpush1.msra.mxu0 0.0
    %1802 = vmatprep.subr.mxu0 0.0
    %1803 = vmatpush1.msra.mxu0 0.0
    %1804 = vmatprep.subr.mxu0 0.0
    %1805 = vmatpush1.msra.mxu0 0.0
    %1806 = vmatprep.subr.mxu0 0.0
    %1807 = vmatpush1.msra.mxu0 0.0
    %1808 = vmatprep.subr.mxu0 0.0
    %1809 = vmatpush1.msra.mxu0 0.0
    %1810 = vmatprep.subr.mxu0 0.0
    %1811 = vmatpush1.msra.mxu0 0.0
    %1812 = vmatprep.subr.mxu0 0.0
    %1813 = vmatpush1.msra.mxu0 0.0
    %1814 = vmatprep.subr.mxu0 0.0
    %1815 = vmatpush1.msra.mxu0 0.0
    %1816 = vmatprep.subr.mxu0 0.0
    %1817 = vmatpush1.msra.mxu0 0.0
    %1818 = vmatprep.subr.mxu0 0.0
    %1819 = vmatpush1.msra.mxu0 0.0
    %1820 = vmatprep.subr.mxu0 0.0
    %1821 = vmatpush1.msra.mxu0 0.0
    %1822 = vmatprep.subr.mxu0 0.0
    %1823 = vmatpush1.msra.mxu0 0.0
    %1824 = vmatprep.subr.mxu0 0.0
    %1825 = vmatpush1.msra.mxu0 0.0
    %1826 = vmatprep.subr.mxu0 0.0
    %1827 = vmatpush1.msra.mxu0 0.0
    %1828 = vmatprep.subr.mxu0 0.0
    %1829 = vmatpush1.msra.mxu0 0.0
    %1830 = vmatprep.subr.mxu0 0.0
    %1831 = vmatpush1.msra.mxu0 0.0
    %1832 = vmatprep.subr.mxu0 0.0
    %1833 = vmatpush1.msra.mxu0 0.0
    %1834 = vmatprep.subr.mxu0 0.0
    %1835 = vmatpush1.msra.mxu0 0.0
    %1836 = vmatprep.subr.mxu0 0.0
    %1837 = vmatpush1.msra.mxu0 0.0
    %1838 = vmatprep.mubr.f32.mxu0 0.0
    %1839 = vmatmul.mubr.f32.gmra.mrb[0].mxu0 %v1772
    %v1840 = vpop.f32.mrb[0].mxu0
    %v1841 = vadd.f32 0.0, %v1840
    %v1842 = vpop.f32.mrb[0].mxu0
    %1843 = vdwg.mxu0
    %v1845 = vrot.slane %v1841, 2
    %v1847 = vadd.f32 %v1431, %v1845
    %v1848 = vxor.u32 %v1847, 2147483648
    %v1849 = vmul.f32 %v1848, 1.442695
    %v1850 = vpow.pop %v1849
    %v1851 = vadd.f32 %v1850, 1.0
    %v1852 = vrcp.pop %v1851
    %v1853 = vmul.f32 1.0, %v1852
    %v1854 = vtanh.pop %v1847
    %v1856 = vrot.slane %v1757, 6
    %v1858 = vmul.f32 %v1853, %v1856
    %1860 = vrot.lane.b32.xlu0 %v1854, 64
    %v1861 = vpop.permute.xlu0 %1860
    %v1863 = vmul.f32 %v1853, %v1861
    %1865 = vrot.lane.b32.xlu0 %v1863, 32
    %v1866 = vpop.permute.xlu0 %1865
    %v1868 = vadd.f32 %v1858, %v1866
    %v1869 = vtanh.pop %v1868
    %1871 = vrot.lane.b32.xlu0 %v1869, 64
    %v1872 = vpop.permute.xlu0 %1871
    %v1874 = vmul.f32 %v1853, %v1872
    %1876 = vrot.lane.b32.xlu0 %v1874, 32
    %v1877 = vpop.permute.xlu0 %1876
    %1879 = vst.msk [vmem:[#allocation3] sm:$0xc0] %vm895, %v1877
    %v1880 = vrot.slane %v1874, 6
    %1881 = vrot.lane.b32.xlu0 %v1880, 32
    %v1882 = vpop.permute.xlu0 %1881
    %v1883 = vsel %vm372, %v1882, 0
    %1885 = vmatprep.subr.mxu0 0.0
    %1886 = vmatpush1.msra.mxu0 %v1343
    %1887 = vmatprep.subr.mxu0 0.0
    %1888 = vmatpush1.msra.mxu0 %v1344
    %1889 = vmatprep.subr.mxu0 0.0
    %1890 = vmatpush1.msra.mxu0 %v1345
    %1891 = vmatprep.subr.mxu0 0.0
    %1892 = vmatpush1.msra.mxu0 %v1346
    %1893 = vmatprep.subr.mxu0 0.0
    %1894 = vmatpush1.msra.mxu0 0.0
    %1895 = vmatprep.subr.mxu0 0.0
    %1896 = vmatpush1.msra.mxu0 0.0
    %1897 = vmatprep.subr.mxu0 0.0
    %1898 = vmatpush1.msra.mxu0 0.0
    %1899 = vmatprep.subr.mxu0 0.0
    %1900 = vmatpush1.msra.mxu0 0.0
    %1901 = vmatprep.subr.mxu0 0.0
    %1902 = vmatpush1.msra.mxu0 0.0
    %1903 = vmatprep.subr.mxu0 0.0
    %1904 = vmatpush1.msra.mxu0 0.0
    %1905 = vmatprep.subr.mxu0 0.0
    %1906 = vmatpush1.msra.mxu0 0.0
    %1907 = vmatprep.subr.mxu0 0.0
    %1908 = vmatpush1.msra.mxu0 0.0
    %1909 = vmatprep.subr.mxu0 0.0
    %1910 = vmatpush1.msra.mxu0 0.0
    %1911 = vmatprep.subr.mxu0 0.0
    %1912 = vmatpush1.msra.mxu0 0.0
    %1913 = vmatprep.subr.mxu0 0.0
    %1914 = vmatpush1.msra.mxu0 0.0
    %1915 = vmatprep.subr.mxu0 0.0
    %1916 = vmatpush1.msra.mxu0 0.0
    %1917 = vmatprep.subr.mxu0 0.0
    %1918 = vmatpush1.msra.mxu0 0.0
    %1919 = vmatprep.subr.mxu0 0.0
    %1920 = vmatpush1.msra.mxu0 0.0
    %1921 = vmatprep.subr.mxu0 0.0
    %1922 = vmatpush1.msra.mxu0 0.0
    %1923 = vmatprep.subr.mxu0 0.0
    %1924 = vmatpush1.msra.mxu0 0.0
    %1925 = vmatprep.subr.mxu0 0.0
    %1926 = vmatpush1.msra.mxu0 0.0
    %1927 = vmatprep.subr.mxu0 0.0
    %1928 = vmatpush1.msra.mxu0 0.0
    %1929 = vmatprep.subr.mxu0 0.0
    %1930 = vmatpush1.msra.mxu0 0.0
    %1931 = vmatprep.subr.mxu0 0.0
    %1932 = vmatpush1.msra.mxu0 0.0
    %1933 = vmatprep.subr.mxu0 0.0
    %1934 = vmatpush1.msra.mxu0 0.0
    %1935 = vmatprep.subr.mxu0 0.0
    %1936 = vmatpush1.msra.mxu0 0.0
    %1937 = vmatprep.subr.mxu0 0.0
    %1938 = vmatpush1.msra.mxu0 0.0
    %1939 = vmatprep.subr.mxu0 0.0
    %1940 = vmatpush1.msra.mxu0 0.0
    %1941 = vmatprep.subr.mxu0 0.0
    %1942 = vmatpush1.msra.mxu0 0.0
    %1943 = vmatprep.subr.mxu0 0.0
    %1944 = vmatpush1.msra.mxu0 0.0
    %1945 = vmatprep.subr.mxu0 0.0
    %1946 = vmatpush1.msra.mxu0 0.0
    %1947 = vmatprep.subr.mxu0 0.0
    %1948 = vmatpush1.msra.mxu0 0.0
    %1949 = vmatprep.mubr.f32.mxu0 0.0
    %1950 = vmatmul.mubr.f32.gmra.mrb[0].mxu0 %v1883
    %v1951 = vpop.f32.mrb[0].mxu0
    %v1952 = vadd.f32 0.0, %v1951
    %v1953 = vpop.f32.mrb[0].mxu0
    %1954 = vdwg.mxu0
    %v1955 = vadd.f32 %v1436, %v1952
    %v1956 = vxor.u32 %v1955, 2147483648
    %v1957 = vmul.f32 %v1956, 1.442695
    %v1958 = vpow.pop %v1957
    %v1959 = vadd.f32 %v1958, 1.0
    %v1960 = vrcp.pop %v1959
    %v1961 = vmul.f32 1.0, %v1960
    %v1962 = vtanh.pop %v1955
    %v1964 = vrot.slane %v1868, 6
    %v1966 = vmul.f32 %v1961, %v1964
    %1968 = vrot.lane.b32.xlu0 %v1962, 64
    %v1969 = vpop.permute.xlu0 %1968
    %v1971 = vmul.f32 %v1961, %v1969
    %1973 = vrot.lane.b32.xlu0 %v1971, 32
    %v1974 = vpop.permute.xlu0 %1973
    %v1976 = vadd.f32 %v1966, %v1974
    %v1977 = vtanh.pop %v1976
    %1979 = vrot.lane.b32.xlu0 %v1977, 64
    %v1980 = vpop.permute.xlu0 %1979
    %v1982 = vmul.f32 %v1961, %v1980
    %1984 = vrot.lane.b32.xlu0 %v1982, 32
    %v1985 = vpop.permute.xlu0 %1984
    %1987 = vst.msk [vmem:[#allocation3 + $0x8] sm:$0x3] %vm562, %v1985
    %v1988 = vsel %vm372, %v1985, 0
    %1990 = vmatprep.subr.mxu0 0.0
    %1991 = vmatpush1.msra.mxu0 %v1343
    %1992 = vmatprep.subr.mxu0 0.0
    %1993 = vmatpush1.msra.mxu0 %v1344
    %1994 = vmatprep.subr.mxu0 0.0
    %1995 = vmatpush1.msra.mxu0 %v1345
    %1996 = vmatprep.subr.mxu0 0.0
    %1997 = vmatpush1.msra.mxu0 %v1346
    %1998 = vmatprep.subr.mxu0 0.0
    %1999 = vmatpush1.msra.mxu0 0.0
    %2000 = vmatprep.subr.mxu0 0.0
    %2001 = vmatpush1.msra.mxu0 0.0
    %2002 = vmatprep.subr.mxu0 0.0
    %2003 = vmatpush1.msra.mxu0 0.0
    %2004 = vmatprep.subr.mxu0 0.0
    %2005 = vmatpush1.msra.mxu0 0.0
    %2006 = vmatprep.subr.mxu0 0.0
    %2007 = vmatpush1.msra.mxu0 0.0
    %2008 = vmatprep.subr.mxu0 0.0
    %2009 = vmatpush1.msra.mxu0 0.0
    %2010 = vmatprep.subr.mxu0 0.0
    %2011 = vmatpush1.msra.mxu0 0.0
    %2012 = vmatprep.subr.mxu0 0.0
    %2013 = vmatpush1.msra.mxu0 0.0
    %2014 = vmatprep.subr.mxu0 0.0
    %2015 = vmatpush1.msra.mxu0 0.0
    %2016 = vmatprep.subr.mxu0 0.0
    %2017 = vmatpush1.msra.mxu0 0.0
    %2018 = vmatprep.subr.mxu0 0.0
    %2019 = vmatpush1.msra.mxu0 0.0
    %2020 = vmatprep.subr.mxu0 0.0
    %2021 = vmatpush1.msra.mxu0 0.0
    %2022 = vmatprep.subr.mxu0 0.0
    %2023 = vmatpush1.msra.mxu0 0.0
    %2024 = vmatprep.subr.mxu0 0.0
    %2025 = vmatpush1.msra.mxu0 0.0
    %2026 = vmatprep.subr.mxu0 0.0
    %2027 = vmatpush1.msra.mxu0 0.0
    %2028 = vmatprep.subr.mxu0 0.0
    %2029 = vmatpush1.msra.mxu0 0.0
    %2030 = vmatprep.subr.mxu0 0.0
    %2031 = vmatpush1.msra.mxu0 0.0
    %2032 = vmatprep.subr.mxu0 0.0
    %2033 = vmatpush1.msra.mxu0 0.0
    %2034 = vmatprep.subr.mxu0 0.0
    %2035 = vmatpush1.msra.mxu0 0.0
    %2036 = vmatprep.subr.mxu0 0.0
    %2037 = vmatpush1.msra.mxu0 0.0
    %2038 = vmatprep.subr.mxu0 0.0
    %2039 = vmatpush1.msra.mxu0 0.0
    %2040 = vmatprep.subr.mxu0 0.0
    %2041 = vmatpush1.msra.mxu0 0.0
    %2042 = vmatprep.subr.mxu0 0.0
    %2043 = vmatpush1.msra.mxu0 0.0
    %2044 = vmatprep.subr.mxu0 0.0
    %2045 = vmatpush1.msra.mxu0 0.0
    %2046 = vmatprep.subr.mxu0 0.0
    %2047 = vmatpush1.msra.mxu0 0.0
    %2048 = vmatprep.subr.mxu0 0.0
    %2049 = vmatpush1.msra.mxu0 0.0
    %2050 = vmatprep.subr.mxu0 0.0
    %2051 = vmatpush1.msra.mxu0 0.0
    %2052 = vmatprep.subr.mxu0 0.0
    %2053 = vmatpush1.msra.mxu0 0.0
    %2054 = vmatprep.mubr.f32.mxu0 0.0
    %2055 = vmatmul.mubr.f32.gmra.mrb[0].mxu0 %v1988
    %v2056 = vpop.f32.mrb[0].mxu0
    %v2057 = vadd.f32 0.0, %v2056
    %v2058 = vpop.f32.mrb[0].mxu0
    %2059 = vdwg.mxu0
    %v2061 = vrot.slane %v2057, 6
    %v2063 = vadd.f32 %v1436, %v2061
    %v2064 = vxor.u32 %v2063, 2147483648
    %v2065 = vmul.f32 %v2064, 1.442695
    %v2066 = vpow.pop %v2065
    %v2067 = vadd.f32 %v2066, 1.0
    %v2068 = vrcp.pop %v2067
    %v2069 = vmul.f32 1.0, %v2068
    %v2070 = vtanh.pop %v2063
    %v2072 = vrot.slane %v1976, 6
    %v2074 = vmul.f32 %v2069, %v2072
    %2076 = vrot.lane.b32.xlu0 %v2070, 64
    %v2077 = vpop.permute.xlu0 %2076
    %v2079 = vmul.f32 %v2069, %v2077
    %2081 = vrot.lane.b32.xlu0 %v2079, 32
    %v2082 = vpop.permute.xlu0 %2081
    %v2084 = vadd.f32 %v2074, %v2082
    %v2085 = vtanh.pop %v2084
    %2087 = vrot.lane.b32.xlu0 %v2085, 64
    %v2088 = vpop.permute.xlu0 %2087
    %v2090 = vmul.f32 %v2069, %v2088
    %2092 = vrot.lane.b32.xlu0 %v2090, 32
    %v2093 = vpop.permute.xlu0 %2092
    %2095 = vst.msk [vmem:[#allocation3 + $0x8] sm:$0xc] %vm671, %v2093
    %v2096 = vrot.slane %v2090, 2
    %2097 = vrot.lane.b32.xlu0 %v2096, 32
    %v2098 = vpop.permute.xlu0 %2097
    %v2099 = vsel %vm372, %v2098, 0
    %2101 = vmatprep.subr.mxu0 0.0
    %2102 = vmatpush1.msra.mxu0 %v1343
    %2103 = vmatprep.subr.mxu0 0.0
    %2104 = vmatpush1.msra.mxu0 %v1344
    %2105 = vmatprep.subr.mxu0 0.0
    %2106 = vmatpush1.msra.mxu0 %v1345
    %2107 = vmatprep.subr.mxu0 0.0
    %2108 = vmatpush1.msra.mxu0 %v1346
    %2109 = vmatprep.subr.mxu0 0.0
    %2110 = vmatpush1.msra.mxu0 0.0
    %2111 = vmatprep.subr.mxu0 0.0
    %2112 = vmatpush1.msra.mxu0 0.0
    %2113 = vmatprep.subr.mxu0 0.0
    %2114 = vmatpush1.msra.mxu0 0.0
    %2115 = vmatprep.subr.mxu0 0.0
    %2116 = vmatpush1.msra.mxu0 0.0
    %2117 = vmatprep.subr.mxu0 0.0
    %2118 = vmatpush1.msra.mxu0 0.0
    %2119 = vmatprep.subr.mxu0 0.0
    %2120 = vmatpush1.msra.mxu0 0.0
    %2121 = vmatprep.subr.mxu0 0.0
    %2122 = vmatpush1.msra.mxu0 0.0
    %2123 = vmatprep.subr.mxu0 0.0
    %2124 = vmatpush1.msra.mxu0 0.0
    %2125 = vmatprep.subr.mxu0 0.0
    %2126 = vmatpush1.msra.mxu0 0.0
    %2127 = vmatprep.subr.mxu0 0.0
    %2128 = vmatpush1.msra.mxu0 0.0
    %2129 = vmatprep.subr.mxu0 0.0
    %2130 = vmatpush1.msra.mxu0 0.0
    %2131 = vmatprep.subr.mxu0 0.0
    %2132 = vmatpush1.msra.mxu0 0.0
    %2133 = vmatprep.subr.mxu0 0.0
    %2134 = vmatpush1.msra.mxu0 0.0
    %2135 = vmatprep.subr.mxu0 0.0
    %2136 = vmatpush1.msra.mxu0 0.0
    %2137 = vmatprep.subr.mxu0 0.0
    %2138 = vmatpush1.msra.mxu0 0.0
    %2139 = vmatprep.subr.mxu0 0.0
    %2140 = vmatpush1.msra.mxu0 0.0
    %2141 = vmatprep.subr.mxu0 0.0
    %2142 = vmatpush1.msra.mxu0 0.0
    %2143 = vmatprep.subr.mxu0 0.0
    %2144 = vmatpush1.msra.mxu0 0.0
    %2145 = vmatprep.subr.mxu0 0.0
    %2146 = vmatpush1.msra.mxu0 0.0
    %2147 = vmatprep.subr.mxu0 0.0
    %2148 = vmatpush1.msra.mxu0 0.0
    %2149 = vmatprep.subr.mxu0 0.0
    %2150 = vmatpush1.msra.mxu0 0.0
    %2151 = vmatprep.subr.mxu0 0.0
    %2152 = vmatpush1.msra.mxu0 0.0
    %2153 = vmatprep.subr.mxu0 0.0
    %2154 = vmatpush1.msra.mxu0 0.0
    %2155 = vmatprep.subr.mxu0 0.0
    %2156 = vmatpush1.msra.mxu0 0.0
    %2157 = vmatprep.subr.mxu0 0.0
    %2158 = vmatpush1.msra.mxu0 0.0
    %2159 = vmatprep.subr.mxu0 0.0
    %2160 = vmatpush1.msra.mxu0 0.0
    %2161 = vmatprep.subr.mxu0 0.0
    %2162 = vmatpush1.msra.mxu0 0.0
    %2163 = vmatprep.subr.mxu0 0.0
    %2164 = vmatpush1.msra.mxu0 0.0
    %2165 = vmatprep.mubr.f32.mxu0 0.0
    %2166 = vmatmul.mubr.f32.gmra.mrb[0].mxu0 %v2099
    %v2167 = vpop.f32.mrb[0].mxu0
    %v2168 = vadd.f32 0.0, %v2167
    %v2169 = vpop.f32.mrb[0].mxu0
    %2170 = vdwg.mxu0
    %v2172 = vrot.slane %v2168, 4
    %v2174 = vadd.f32 %v1436, %v2172
    %v2175 = vxor.u32 %v2174, 2147483648
    %v2176 = vmul.f32 %v2175, 1.442695
    %v2177 = vpow.pop %v2176
    %v2178 = vadd.f32 %v2177, 1.0
    %v2179 = vrcp.pop %v2178
    %v2180 = vmul.f32 1.0, %v2179
    %v2181 = vtanh.pop %v2174
    %v2183 = vrot.slane %v2084, 6
    %v2185 = vmul.f32 %v2180, %v2183
    %2187 = vrot.lane.b32.xlu0 %v2181, 64
    %v2188 = vpop.permute.xlu0 %2187
    %v2190 = vmul.f32 %v2180, %v2188
    %2192 = vrot.lane.b32.xlu0 %v2190, 32
    %v2193 = vpop.permute.xlu0 %2192
    %v2195 = vadd.f32 %v2185, %v2193
    %v2196 = vtanh.pop %v2195
    %2198 = vrot.lane.b32.xlu0 %v2196, 64
    %v2199 = vpop.permute.xlu0 %2198
    %v2201 = vmul.f32 %v2180, %v2199
    %2203 = vrot.lane.b32.xlu0 %v2201, 32
    %v2204 = vpop.permute.xlu0 %2203
    %2206 = vst.msk [vmem:[#allocation3 + $0x8] sm:$0x30] %vm783, %v2204
    %v2207 = vrot.slane %v2201, 4
    %2208 = vrot.lane.b32.xlu0 %v2207, 32
    %v2209 = vpop.permute.xlu0 %2208
    %v2210 = vsel %vm372, %v2209, 0
    %2212 = vmatprep.subr.mxu0 0.0
    %2213 = vmatpush1.msra.mxu0 %v1343
    %2214 = vmatprep.subr.mxu0 0.0
    %2215 = vmatpush1.msra.mxu0 %v1344
    %2216 = vmatprep.subr.mxu0 0.0
    %2217 = vmatpush1.msra.mxu0 %v1345
    %2218 = vmatprep.subr.mxu0 0.0
    %2219 = vmatpush1.msra.mxu0 %v1346
    %2220 = vmatprep.subr.mxu0 0.0
    %2221 = vmatpush1.msra.mxu0 0.0
    %2222 = vmatprep.subr.mxu0 0.0
    %2223 = vmatpush1.msra.mxu0 0.0
    %2224 = vmatprep.subr.mxu0 0.0
    %2225 = vmatpush1.msra.mxu0 0.0
    %2226 = vmatprep.subr.mxu0 0.0
    %2227 = vmatpush1.msra.mxu0 0.0
    %2228 = vmatprep.subr.mxu0 0.0
    %2229 = vmatpush1.msra.mxu0 0.0
    %2230 = vmatprep.subr.mxu0 0.0
    %2231 = vmatpush1.msra.mxu0 0.0
    %2232 = vmatprep.subr.mxu0 0.0
    %2233 = vmatpush1.msra.mxu0 0.0
    %2234 = vmatprep.subr.mxu0 0.0
    %2235 = vmatpush1.msra.mxu0 0.0
    %2236 = vmatprep.subr.mxu0 0.0
    %2237 = vmatpush1.msra.mxu0 0.0
    %2238 = vmatprep.subr.mxu0 0.0
    %2239 = vmatpush1.msra.mxu0 0.0
    %2240 = vmatprep.subr.mxu0 0.0
    %2241 = vmatpush1.msra.mxu0 0.0
    %2242 = vmatprep.subr.mxu0 0.0
    %2243 = vmatpush1.msra.mxu0 0.0
    %2244 = vmatprep.subr.mxu0 0.0
    %2245 = vmatpush1.msra.mxu0 0.0
    %2246 = vmatprep.subr.mxu0 0.0
    %2247 = vmatpush1.msra.mxu0 0.0
    %2248 = vmatprep.subr.mxu0 0.0
    %2249 = vmatpush1.msra.mxu0 0.0
    %2250 = vmatprep.subr.mxu0 0.0
    %2251 = vmatpush1.msra.mxu0 0.0
    %2252 = vmatprep.subr.mxu0 0.0
    %2253 = vmatpush1.msra.mxu0 0.0
    %2254 = vmatprep.subr.mxu0 0.0
    %2255 = vmatpush1.msra.mxu0 0.0
    %2256 = vmatprep.subr.mxu0 0.0
    %2257 = vmatpush1.msra.mxu0 0.0
    %2258 = vmatprep.subr.mxu0 0.0
    %2259 = vmatpush1.msra.mxu0 0.0
    %2260 = vmatprep.subr.mxu0 0.0
    %2261 = vmatpush1.msra.mxu0 0.0
    %2262 = vmatprep.subr.mxu0 0.0
    %2263 = vmatpush1.msra.mxu0 0.0
    %2264 = vmatprep.subr.mxu0 0.0
    %2265 = vmatpush1.msra.mxu0 0.0
    %2266 = vmatprep.subr.mxu0 0.0
    %2267 = vmatpush1.msra.mxu0 0.0
    %2268 = vmatprep.subr.mxu0 0.0
    %2269 = vmatpush1.msra.mxu0 0.0
    %2270 = vmatprep.subr.mxu0 0.0
    %2271 = vmatpush1.msra.mxu0 0.0
    %2272 = vmatprep.subr.mxu0 0.0
    %2273 = vmatpush1.msra.mxu0 0.0
    %2274 = vmatprep.subr.mxu0 0.0
    %2275 = vmatpush1.msra.mxu0 0.0
    %2276 = vmatprep.mubr.f32.mxu0 0.0
    %2277 = vmatmul.mubr.f32.gmra.mrb[0].mxu0 %v2210
    %v2278 = vpop.f32.mrb[0].mxu0
    %v2279 = vadd.f32 0.0, %v2278
    %v2280 = vpop.f32.mrb[0].mxu0
    %2281 = vdwg.mxu0
    %v2283 = vrot.slane %v2279, 2
    %v2285 = vadd.f32 %v1436, %v2283
    %v2286 = vxor.u32 %v2285, 2147483648
    %v2287 = vmul.f32 %v2286, 1.442695
    %v2288 = vpow.pop %v2287
    %v2289 = vadd.f32 %v2288, 1.0
    %v2290 = vrcp.pop %v2289
    %v2291 = vmul.f32 1.0, %v2290
    %v2292 = vtanh.pop %v2285
    %v2294 = vrot.slane %v2195, 6
    %v2296 = vmul.f32 %v2291, %v2294
    %2298 = vrot.lane.b32.xlu0 %v2292, 64
    %v2299 = vpop.permute.xlu0 %2298
    %v2301 = vmul.f32 %v2291, %v2299
    %2303 = vrot.lane.b32.xlu0 %v2301, 32
    %v2304 = vpop.permute.xlu0 %2303
    %v2306 = vadd.f32 %v2296, %v2304
    %v2307 = vtanh.pop %v2306
    %2309 = vrot.lane.b32.xlu0 %v2307, 64
    %v2310 = vpop.permute.xlu0 %2309
    %v2312 = vmul.f32 %v2291, %v2310
    %2314 = vrot.lane.b32.xlu0 %v2312, 32
    %v2315 = vpop.permute.xlu0 %2314
    %2317 = vst.msk [vmem:[#allocation3 + $0x8] sm:$0xc0] %vm895, %v2315
    %s2318 = scalar_lea.vmem [#allocation6], 2
    %2319 = vst.msk [vmem:[%s2318 - $0x6] sm:$0xc0] %vm895, %v2315
    %2321 = vrot.lane.b32.xlu0 %v2306, 96
    %v2322 = vpop.permute.xlu0 %2321
    %s2324 = scalar_lea.vmem [#allocation8], 2
    %2325 = vst.msk [vmem:[%s2324 - $0x6] sm:$0xc0] %vm895, %v2322
    %v2326 = vld [vmem:[#allocation3] sm:$0xff]
    %v2327 = vld [vmem:[#allocation3 + $0x8] sm:$0xff]
    %v2328 = vld [vmem:[%s14] sm:$0xff]
    %v2329 = vld [vmem:[%s14 + $0x8] sm:$0xff]
    %v2330 = vld [vmem:[%s14 + $0x10] sm:$0xff]
    %v2331 = vld [vmem:[%s14 + $0x18] sm:$0xff]
    %v2332 = vld [vmem:[%s15] sm:$0x1]
    %v2334 = vlaneseq
    %v2335 = vshrl.u32 %v2334, 7
    %v2336 = vsub.s32 0, %v2335
    %v2337 = vrot.slane %v2332, %v2336
    %v2340 = vsel %vm372, %v2326, 0
    %v2343 = vsel %vm372, %v2327, 0
    %2345 = vmatprep.subr.mxu0 0.0
    %2346 = vmatpush1.msra.mxu0 %v2328
    %2347 = vmatprep.subr.mxu0 0.0
    %2348 = vmatpush1.msra.mxu0 %v2329
    %2349 = vmatprep.subr.mxu0 0.0
    %2350 = vmatpush1.msra.mxu0 %v2330
    %2351 = vmatprep.subr.mxu0 0.0
    %2352 = vmatpush1.msra.mxu0 %v2331
    %2353 = vmatprep.subr.mxu0 0.0
    %2354 = vmatpush1.msra.mxu0 0.0
    %2355 = vmatprep.subr.mxu0 0.0
    %2356 = vmatpush1.msra.mxu0 0.0
    %2357 = vmatprep.subr.mxu0 0.0
    %2358 = vmatpush1.msra.mxu0 0.0
    %2359 = vmatprep.subr.mxu0 0.0
    %2360 = vmatpush1.msra.mxu0 0.0
    %2361 = vmatprep.subr.mxu0 0.0
    %2362 = vmatpush1.msra.mxu0 0.0
    %2363 = vmatprep.subr.mxu0 0.0
    %2364 = vmatpush1.msra.mxu0 0.0
    %2365 = vmatprep.subr.mxu0 0.0
    %2366 = vmatpush1.msra.mxu0 0.0
    %2367 = vmatprep.subr.mxu0 0.0
    %2368 = vmatpush1.msra.mxu0 0.0
    %2369 = vmatprep.subr.mxu0 0.0
    %2370 = vmatpush1.msra.mxu0 0.0
    %2371 = vmatprep.subr.mxu0 0.0
    %2372 = vmatpush1.msra.mxu0 0.0
    %2373 = vmatprep.subr.mxu0 0.0
    %2374 = vmatpush1.msra.mxu0 0.0
    %2375 = vmatprep.subr.mxu0 0.0
    %2376 = vmatpush1.msra.mxu0 0.0
    %2377 = vmatprep.subr.mxu0 0.0
    %2378 = vmatpush1.msra.mxu0 0.0
    %2379 = vmatprep.subr.mxu0 0.0
    %2380 = vmatpush1.msra.mxu0 0.0
    %2381 = vmatprep.subr.mxu0 0.0
    %2382 = vmatpush1.msra.mxu0 0.0
    %2383 = vmatprep.subr.mxu0 0.0
    %2384 = vmatpush1.msra.mxu0 0.0
    %2385 = vmatprep.subr.mxu0 0.0
    %2386 = vmatpush1.msra.mxu0 0.0
    %2387 = vmatprep.subr.mxu0 0.0
    %2388 = vmatpush1.msra.mxu0 0.0
    %2389 = vmatprep.subr.mxu0 0.0
    %2390 = vmatpush1.msra.mxu0 0.0
    %2391 = vmatprep.subr.mxu0 0.0
    %2392 = vmatpush1.msra.mxu0 0.0
    %2393 = vmatprep.subr.mxu0 0.0
    %2394 = vmatpush1.msra.mxu0 0.0
    %2395 = vmatprep.subr.mxu0 0.0
    %2396 = vmatpush1.msra.mxu0 0.0
    %2397 = vmatprep.subr.mxu0 0.0
    %2398 = vmatpush1.msra.mxu0 0.0
    %2399 = vmatprep.subr.mxu0 0.0
    %2400 = vmatpush1.msra.mxu0 0.0
    %2401 = vmatprep.subr.mxu0 0.0
    %2402 = vmatpush1.msra.mxu0 0.0
    %2403 = vmatprep.subr.mxu0 0.0
    %2404 = vmatpush1.msra.mxu0 0.0
    %2405 = vmatprep.subr.mxu0 0.0
    %2406 = vmatpush1.msra.mxu0 0.0
    %2407 = vmatprep.subr.mxu0 0.0
    %2408 = vmatpush1.msra.mxu0 0.0
    %2409 = vmatprep.mubr.f32.mxu0 0.0
    %2410 = vmatmul.mubr.f32.gmra.mrb[0].mxu0 %v2340
    %v2411 = vpop.f32.mrb[0].mxu0
    %v2412 = vadd.f32 %v2337, %v2411
    %v2413 = vpop.f32.mrb[0].mxu0
    %2414 = vmatprep.mubr.f32.mxu0 0.0
    %2415 = vmatmul.mubr.f32.gmra.mrb[0].mxu0 %v2343
    %v2416 = vpop.f32.mrb[0].mxu0
    %v2417 = vadd.f32 %v2337, %v2416
    %v2418 = vpop.f32.mrb[0].mxu0
    %2419 = vdwg.mxu0
    %2420 = vmax.xlane.f32.xlu0 %v2412
    %v2421 = vpop.xlane.xlu0 %2420
    %2422 = vmax.xlane.f32.xlu0 %v2417
    %v2423 = vpop.xlane.xlu0 %2422
    %v2424 = vsub.f32 %v2412, %v2421
    %v2425 = vsub.f32 %v2417, %v2423
    %v2426 = vmul.f32 %v2424, 1.442695
    %v2427 = vpow.pop %v2426
    %v2428 = vmul.f32 %v2425, 1.442695
    %v2429 = vpow.pop %v2428
    %2430 = vadd.xlane.f32.xlu0 %v2427
    %v2431 = vpop.xlane.xlu0 %2430
    %2432 = vadd.xlane.f32.xlu0 %v2429
    %v2433 = vpop.xlane.xlu0 %2432
    %v2434 = vlog2.pop %v2431
    %v2435 = vmul.f32 %v2434, 0.6931472
    %v2436 = vlog2.pop %v2433
    %v2437 = vmul.f32 %v2436, 0.6931472
    %v2438 = vadd.f32 %v2421, %v2435
    %v2439 = vadd.f32 %v2423, %v2437
    %v2440 = vsub.f32 %v2412, %v2438
    %v2441 = vsub.f32 %v2417, %v2439
    %2442 = vst [vmem:[#allocation4] sm:$0xff] %v2440
    %2443 = vst [vmem:[#allocation4 + $0x8] sm:$0xff] %v2441
    // Predicated region
    $region66: #{tpu_custom_call.1} parent=1 // pred_check
      _
    $region67: #{tpu_custom_call.1} parent=1 // pred_check_branch
      %2445 = sbr.rel (0) target = $region69
    $region68: #{tpu_custom_call.1} parent=1 // pred_region
      %s2447 = ssub.s32 256, 256
      %2448 = vsyncadd [#allocation5], %s2447
      %s2449 = sshll.u32 [#allocation4], 4
      %s2450 = int_to_ptr.vmem [resolvable:$true] %s2449
      %2455 = dma.vmem_to_hbm [thread:$0]  %s2450, 256, %s16, [#allocation5], 128, 128, 8
    $region69: #{tpu_custom_call.1} parent=1 // pred_fallthru
      _
    // Predicated region
    $region70: #{tpu_custom_call.1} parent=1 // pred_check
      _
    $region71: #{tpu_custom_call.1} parent=1 // pred_check_branch
      %2457 = sbr.rel (0) target = $region73
    $region72: #{tpu_custom_call.1} parent=1 // pred_region
      %s2459 = ssub.s32 64, 64
      %2460 = vsyncadd [#allocation7], %s2459
      %s2461 = sshll.u32 [#allocation6], 4
      %s2462 = int_to_ptr.vmem [resolvable:$true] %s2461
      %2467 = dma.vmem_to_hbm [thread:$0]  %s2462, 64, %s17, [#allocation7], 32, 32, 2
    $region73: #{tpu_custom_call.1} parent=1 // pred_fallthru
      _
    // Predicated region
    $region74: #{tpu_custom_call.1} parent=1 // pred_check
      _
    $region75: #{tpu_custom_call.1} parent=1 // pred_check_branch
      %2469 = sbr.rel (0) target = $region77
    $region76: #{tpu_custom_call.1} parent=1 // pred_region
      %s2471 = ssub.s32 64, 64
      %2472 = vsyncadd [#allocation7], %s2471
      %s2473 = sshll.u32 [#allocation8], 4
      %s2474 = int_to_ptr.vmem [resolvable:$true] %s2473
      %2479 = dma.vmem_to_hbm [thread:$0]  %s2474, 64, %s18, [#allocation7], 32, 32, 2
    $region77: #{tpu_custom_call.1} parent=1 // pred_fallthru
      _
    // Predicated region
    $region78: #{tpu_custom_call.1} parent=1 // pred_check
      _
    $region79: #{tpu_custom_call.1} parent=1 // pred_check_branch
      %2481 = sbr.rel (0) target = $region81
    $region80: #{tpu_custom_call.1} parent=1 // pred_region
      %2482 = dma.done [#allocation5], 256
    $region81: #{tpu_custom_call.1} parent=1 // pred_fallthru
      _
    // Predicated region
    $region82: #{tpu_custom_call.1} parent=1 // pred_check
      _
    $region83: #{tpu_custom_call.1} parent=1 // pred_check_branch
      %2484 = sbr.rel (0) target = $region85
    $region84: #{tpu_custom_call.1} parent=1 // pred_region
      %2485 = dma.done [#allocation7], 64
    $region85: #{tpu_custom_call.1} parent=1 // pred_fallthru
      _
    // Predicated region
    $region86: #{tpu_custom_call.1} parent=1 // pred_check
      _
    $region87: #{tpu_custom_call.1} parent=1 // pred_check_branch
      %2487 = sbr.rel (0) target = $region89
    $region88: #{tpu_custom_call.1} parent=1 // pred_region
      %2488 = dma.done [#allocation7], 64
    $region89: #{tpu_custom_call.1} parent=1 // pred_fallthru
      _
    %2489 = vsyncpa [#allocation5], 1
    %2490 = vsyncpa [#allocation7], 1

</llo_original>
